<compile_context>
chip_gen: v7x
topology: tpu7x:2x2x1
jax: 0.10.0
libtpu: 0.0.40
codegen_flags: <defaults>
</compile_context>

<pallas_src>
import functools
import math

import jax
import jax.numpy as jnp
from jax.experimental import pallas as pl
from jax.experimental.pallas import tpu as pltpu

# ---- model dims (from the PyTorch module) ----
d_k = d_v = 32
d_model = 116
n_heads = 4
d_ff = 116
LN_EPS = 1e-5

VEC_ROWS = 16        # packed bias / LayerNorm-vector slab rows (sublane multiple)


def _layer_norm(x, gamma, beta):
    """Plain LayerNorm over the (unpadded) feature axis."""
    mean = jnp.mean(x, axis=-1, keepdims=True)
    c = x - mean
    var = jnp.mean(c * c, axis=-1, keepdims=True)
    return c * jax.lax.rsqrt(var + LN_EPS) * gamma + beta


def _encoder_layer_kernel(x_ref, wqkv_ref, wo_ref, w1_ref, w2_ref, vec_ref,
                          out_ref, *rest, with_attn):
    if with_attn:
        attn_ref, ctx_scr = rest
    else:
        attn_ref = None
        (ctx_scr,) = rest

    Bt, S, D = x_ref.shape                       # D = d_model = 116 (unpadded)
    M = Bt * S
    HD = n_heads * d_k                           # 128

    x2 = x_ref[...].reshape(M, D)                # (M, 116), leading-dim merge only

    vecs = vec_ref[...]                          # (16, 128) packed vectors
    bq, bk, bv = vecs[0:1, :HD], vecs[1:2, :HD], vecs[2:3, :HD]
    bo = vecs[3:4, :d_model]
    g1, be1 = vecs[4:5, :d_model], vecs[5:6, :d_model]
    b1 = vecs[6:7, :d_ff]
    b2 = vecs[7:8, :d_model]
    g2, be2 = vecs[8:9, :d_model], vecs[9:10, :d_model]

    # ---- fused QKV projection: one (M,116)@(116,384) MXU push ----
    # TODO(synk): bf16 operands on v6e/v7x once reference tolerances are relaxed.
    qkv = jnp.dot(x2, wqkv_ref[...], preferred_element_type=jnp.float32)
    q = qkv[:, 0 * HD:1 * HD] + bq               # (M, 128)
    k = qkv[:, 1 * HD:2 * HD] + bk
    v = qkv[:, 2 * HD:3 * HD] + bv

    # ---- attention with heads folded into the leading batch axis ----
    def split_heads(t):                          # (M, 128) -> (H*Bt, S, d_k)
        return jnp.concatenate(
            [t[:, h * d_k:(h + 1) * d_k].reshape(Bt, S, d_k)
             for h in range(n_heads)], axis=0)

    qh, kh, vh = split_heads(q), split_heads(k), split_heads(v)

    scores = jnp.einsum("nqd,nkd->nqk", qh, kh,
                        preferred_element_type=jnp.float32) * (1.0 / math.sqrt(d_k))
    scores = scores - jnp.max(scores, axis=-1, keepdims=True)
    e = jnp.exp(scores)
    a = e * pl.reciprocal(jnp.sum(e, axis=-1, keepdims=True), approx=False)

    if with_attn:
        # Lane-dense attention-weights output: the whole (Bt, 1, H*S*S) block is
        # written back as one contiguous HBM DMA.  The relayout into lanes uses
        # H*S small windowed VMEM stores (cheap at S=8; always lowers).
        for h in range(n_heads):
            for qi in range(S):
                off = (h * S + qi) * S
                attn_ref[:, :, off:off + S] = (
                    a[h * Bt:(h + 1) * Bt, qi:qi + 1, :].astype(attn_ref.dtype))

    ctx = jnp.einsum("nqk,nkd->nqd", a, vh,
                     preferred_element_type=jnp.float32)   # (H*Bt, S, d_v)

    # ---- fused output projection: re-pack heads onto lanes via VMEM scratch,
    # then a single K=128 dot instead of four K=32 dots + accumulates. ----
    for h in range(n_heads):
        ctx_scr[:, h * d_v:(h + 1) * d_v] = ctx[h * Bt:(h + 1) * Bt].reshape(M, d_v)
    attn_out = jnp.dot(ctx_scr[...], wo_ref[...],
                       preferred_element_type=jnp.float32) + bo     # (M, 116)

    # ---- residual + LayerNorm ----
    x1 = _layer_norm(attn_out + x2, g1, be1)

    # ---- position-wise FFN (1x1 convs == pointwise linears) ----
    h1 = jnp.maximum(
        jnp.dot(x1, w1_ref[...], preferred_element_type=jnp.float32) + b1, 0.0)
    h2 = jnp.dot(h1, w2_ref[...], preferred_element_type=jnp.float32) + b2
    out = _layer_norm(h2 + x1, g2, be2)

    out_ref[...] = out.reshape(Bt, S, D).astype(out_ref.dtype)


def pack_params(params):
    """Fuse / pack the PyTorch-shaped params for the kernel.

    Weights keep their true (unpadded) sizes; the (1, dim) bias / LayerNorm
    vectors are packed into a single lane-dense (16, 128) slab (19 refs -> 6).
    """
    (wq, bq, wk, bk, wv, bv, wo, bo, g1, be1, w1, b1, w2, b2, g2, be2) = params
    wqkv = jnp.concatenate([wq, wk, wv], axis=1)            # (116, 384)

    def row(r):
        return jnp.pad(r, ((0, 0), (0, 128 - r.shape[1])))

    rows = [row(r) for r in (bq, bk, bv, bo, g1, be1, b1, b2, g2, be2)]
    vecs = jnp.concatenate(
        rows + [jnp.zeros((VEC_ROWS - len(rows), 128), jnp.float32)], axis=0)
    return wqkv, wo, w1, w2, vecs


def _vmem_budget_bytes():
    """Physical VMEM of the local chip (fallback: v7x's 64 MiB per TensorCore)."""
    try:
        return int(pltpu.get_tpu_info().vmem_capacity_bytes)
    except Exception:
        return 64 << 20


def _vmem_bytes_estimate(bt, S, with_attn):
    """Rough f32 VMEM footprint of one grid step (I/O blocks double-buffered)."""
    M = bt * S
    blocks = 2 * M * d_model + (bt * n_heads * S * S if with_attn else 0)
    weights = (d_model * 3 * n_heads * d_k + n_heads * d_v * d_model +
               d_model * d_ff + d_ff * d_model + VEC_ROWS * 128)
    temps = (M * (6 * n_heads * d_k + n_heads * d_v + 2 * d_model + d_ff)
             + 2 * n_heads * bt * S * S)
    scratch = M * n_heads * d_v
    return 4 * (2 * (blocks + weights) + temps + scratch)


def encoder_layer(x, params, *, batch_tile=None, return_attn=True):
    """x: (B, S, d_model) float32.  Returns (enc_outputs, attn-or-None)."""
    B, S, D = x.shape
    assert D == d_model
    assert S % 8 == 0, "sequence length must be a multiple of 8 (sublane count)"

    wqkv, wo, w1, w2, vecs = pack_params(params)

    budget = _vmem_budget_bytes() // 2            # headroom for compiler scratch
    if batch_tile is None:
        # Largest divisor of B whose per-step M = batch_tile*S stays <= ~512
        # rows and fits the VMEM budget.  No "split for a 2nd core" halving:
        # on single-TC v5e/v6e the grid is a serial loop and splitting only adds
        # ~0.35us/step overhead with zero parallelism gain.
        # TODO(synk): shard the batch axis across v7x's 2 TensorCores with
        # pltpu.CORE_PARALLEL / pl.core_map instead of grid splitting.
        target_rows = 512
        batch_tile = 1
        for t in range(1, B + 1):
            if (B % t == 0 and t * S <= max(target_rows, S)
                    and _vmem_bytes_estimate(t, S, return_attn) <= budget):
                batch_tile = t
    assert B % batch_tile == 0
    # NOTE: for prime/awkward B this degrades to batch_tile=1 (per-step M == S).
    grid = (B // batch_tile,)

    est = _vmem_bytes_estimate(batch_tile, S, return_attn)
    vmem_limit = int(min(max(4 * est, 32 << 20), 64 << 20))

    # TODO(synk): single-buffer the resident weight/vec operands via
    # pipeline_mode=pl.Buffered(1) (their index_map is constant across the grid).
    full = lambda a: pl.BlockSpec(a.shape, lambda i: (0,) * a.ndim)

    in_specs = [
        pl.BlockSpec((batch_tile, S, d_model), lambda i: (i, 0, 0)),
        full(wqkv), full(wo), full(w1), full(w2), full(vecs),
    ]
    out_specs = [pl.BlockSpec((batch_tile, S, d_model), lambda i: (i, 0, 0))]
    out_shapes = [jax.ShapeDtypeStruct((B, S, d_model), jnp.float32)]
    if return_attn:
        attn_lanes = n_heads * S * S              # lane-dense attn slab width
        out_specs.append(
            pl.BlockSpec((batch_tile, 1, attn_lanes), lambda i: (i, 0, 0)))
        out_shapes.append(
            jax.ShapeDtypeStruct((B, 1, attn_lanes), jnp.float32))

    grid_spec = pltpu.PrefetchScalarGridSpec(
        num_scalar_prefetch=0,
        grid=grid,
        in_specs=in_specs,
        out_specs=tuple(out_specs),
        scratch_shapes=[pltpu.VMEM((batch_tile * S, n_heads * d_v), jnp.float32)],
    )

    kernel = functools.partial(_encoder_layer_kernel, with_attn=return_attn)

    result = pl.pallas_call(
        kernel,
        out_shape=tuple(out_shapes),
        grid_spec=grid_spec,
        compiler_params=pltpu.CompilerParams(
            dimension_semantics=("parallel",),
            vmem_limit_bytes=vmem_limit),
    )(x, wqkv, wo, w1, w2, vecs)

    if return_attn:
        out, attn_slab = result
        return out, attn_slab.reshape(B, n_heads, S, S)
    out = result[0] if isinstance(result, (tuple, list)) else result
    return out, None


def init_params(key):
    """Deterministic synthetic parameters matching the PyTorch module shapes.

    Linear / Conv1d weights are stored PRE-TRANSPOSED so `x @ W` applies them.
    Biases / LN params are (1, dim) rows.
    """
    ks = jax.random.split(key, 12)
    scale = 0.05

    def w(k, shape):
        return (scale * jax.random.normal(k, shape)).astype(jnp.float32)

    params = [
        w(ks[0], (d_model, n_heads * d_k)),        # W_Q.weight.T
        w(ks[1], (1, n_heads * d_k)),              # W_Q.bias
        w(ks[2], (d_model, n_heads * d_k)),        # W_K.weight.T
        w(ks[3], (1, n_heads * d_k)),              # W_K.bias
        w(ks[4], (d_model, n_heads * d_v)),        # W_V.weight.T
        w(ks[5], (1, n_heads * d_v)),              # W_V.bias
        w(ks[6], (n_heads * d_v, d_model)),        # linear.weight.T
        w(ks[7], (1, d_model)),                    # linear.bias
        jnp.ones((1, d_model), jnp.float32),       # attn layer_norm.gamma
        jnp.zeros((1, d_model), jnp.float32),      # attn layer_norm.beta
        w(ks[8], (d_model, d_ff)),                 # conv1.weight[:, :, 0].T
        w(ks[9], (1, d_ff)),                       # conv1.bias
        w(ks[10], (d_ff, d_model)),                # conv2.weight[:, :, 0].T
        w(ks[11], (1, d_model)),                   # conv2.bias
        jnp.ones((1, d_model), jnp.float32),       # ffn layer_norm.gamma
        jnp.zeros((1, d_model), jnp.float32),      # ffn layer_norm.beta
    ]
    return params


def _layer_norm_ref(x, gamma, beta):
    mean = jnp.mean(x, axis=-1, keepdims=True)
    var = jnp.mean((x - mean) ** 2, axis=-1, keepdims=True)
    return (x - mean) * jax.lax.rsqrt(var + LN_EPS) * gamma + beta


def reference(x, params):
    """Pure-JAX reference of the PyTorch forward, for a sanity check."""
    (wq, bq, wk, bk, wv, bv, wo, bo, g1, be1, w1, b1, w2, b2, g2, be2) = params
    B, S, D = x.shape
    q = (x @ wq + bq).reshape(B, S, n_heads, d_k).transpose(0, 2, 1, 3)
    k = (x @ wk + bk).reshape(B, S, n_heads, d_k).transpose(0, 2, 1, 3)
    v = (x @ wv + bv).reshape(B, S, n_heads, d_v).transpose(0, 2, 1, 3)
    scores = jnp.einsum("bhqd,bhkd->bhqk", q, k) / math.sqrt(d_k)
    attn = jax.nn.softmax(scores, axis=-1)
    ctx = jnp.einsum("bhqk,bhkd->bhqd", attn, v).transpose(0, 2, 1, 3)
    ctx = ctx.reshape(B, S, n_heads * d_v)
    out = ctx @ wo + bo
    x1 = _layer_norm_ref(out + x, g1, be1)
    h = jnp.maximum(x1 @ w1 + b1, 0.0)
    h = h @ w2 + b2
    return _layer_norm_ref(h + x1, g2, be2), attn


if __name__ == "__main__":
    key = jax.random.PRNGKey(0)
    k_x, k_p = jax.random.split(key)

    B, S = 2, 8
    x = jax.random.normal(k_x, (B, S, d_model), dtype=jnp.float32)
    params = init_params(k_p)

    enc_out, attn = encoder_layer(x, params)
    enc_out = jax.block_until_ready(enc_out)
    attn = jax.block_until_ready(attn)

    ref_out, ref_attn = reference(x, params)
    assert enc_out.shape == (B, S, d_model)
    assert attn.shape == (B, n_heads, S, S)
    assert jnp.allclose(enc_out, ref_out, atol=1e-4, rtol=1e-4)
    assert jnp.allclose(attn, ref_attn, atol=1e-5, rtol=1e-5)

    # attn-less fast path: skips the only O(S^2) HBM writeback.
    enc_out2, no_attn = encoder_layer(x, params, return_attn=False)
    enc_out2 = jax.block_until_ready(enc_out2)
    assert no_attn is None
    assert jnp.allclose(enc_out2, ref_out, atol=1e-4, rtol=1e-4)

    print("KERNEL_OK")
</pallas_src>

<mosaic_0001>
module attributes {stable_mosaic.version = 11 : i64} {
  func.func @_encoder_layer_kernel(%arg0: i32, %arg1: memref<2x8x116xf32, #tpu.memory_space<vmem>>, %arg2: memref<116x384xf32, #tpu.memory_space<vmem>>, %arg3: memref<128x116xf32, #tpu.memory_space<vmem>>, %arg4: memref<116x116xf32, #tpu.memory_space<vmem>>, %arg5: memref<116x116xf32, #tpu.memory_space<vmem>>, %arg6: memref<16x128xf32, #tpu.memory_space<vmem>>, %arg7: memref<2x8x116xf32, #tpu.memory_space<vmem>>, %arg8: memref<2x1x256xf32, #tpu.memory_space<vmem>>, %arg9: memref<16x128xf32, #tpu.memory_space<vmem>>) attributes {dimension_semantics = [#tpu.dimension_semantics<parallel>], iteration_bounds = array<i64: 1>, scalar_prefetch = 0 : i64, scratch_operands = 1 : i64, tpu.core_type = #tpu.core_type<tc>, window_params = [{transform_indices = @transform_0, window_bounds = array<i64: 2, 8, 116>}, {pipeline_mode = #tpu.pipeline_mode<synchronous>, transform_indices = @transform_1, window_bounds = array<i64: 116, 384>}, {pipeline_mode = #tpu.pipeline_mode<synchronous>, transform_indices = @transform_2, window_bounds = array<i64: 128, 116>}, {pipeline_mode = #tpu.pipeline_mode<synchronous>, transform_indices = @transform_3, window_bounds = array<i64: 116, 116>}, {pipeline_mode = #tpu.pipeline_mode<synchronous>, transform_indices = @transform_4, window_bounds = array<i64: 116, 116>}, {pipeline_mode = #tpu.pipeline_mode<synchronous>, transform_indices = @transform_5, window_bounds = array<i64: 16, 128>}, {transform_indices = @transform_6, window_bounds = array<i64: 2, 8, 116>}, {transform_indices = @transform_7, window_bounds = array<i64: 2, 1, 256>}]} {
    %c0 = arith.constant 0 : index
    %c0_0 = arith.constant 0 : index
    %c0_1 = arith.constant 0 : index
    %0 = vector.load %arg1[%c0, %c0_0, %c0_1] : memref<2x8x116xf32, #tpu.memory_space<vmem>>, vector<2x8x116xf32>
    %1 = vector.shape_cast %0 : vector<2x8x116xf32> to vector<16x116xf32>
    %c0_2 = arith.constant 0 : index
    %c0_3 = arith.constant 0 : index
    %2 = vector.load %arg6[%c0_2, %c0_3] : memref<16x128xf32, #tpu.memory_space<vmem>>, vector<16x128xf32>
    %3 = vector.extract_strided_slice %2 {offsets = [0, 0], sizes = [1, 128], strides = [1, 1]} : vector<16x128xf32> to vector<1x128xf32>
    %4 = vector.extract_strided_slice %2 {offsets = [1, 0], sizes = [1, 128], strides = [1, 1]} : vector<16x128xf32> to vector<1x128xf32>
    %5 = vector.extract_strided_slice %2 {offsets = [2, 0], sizes = [1, 128], strides = [1, 1]} : vector<16x128xf32> to vector<1x128xf32>
    %6 = vector.extract_strided_slice %2 {offsets = [3, 0], sizes = [1, 116], strides = [1, 1]} : vector<16x128xf32> to vector<1x116xf32>
    %7 = vector.extract_strided_slice %2 {offsets = [4, 0], sizes = [1, 116], strides = [1, 1]} : vector<16x128xf32> to vector<1x116xf32>
    %8 = vector.extract_strided_slice %2 {offsets = [5, 0], sizes = [1, 116], strides = [1, 1]} : vector<16x128xf32> to vector<1x116xf32>
    %9 = vector.extract_strided_slice %2 {offsets = [6, 0], sizes = [1, 116], strides = [1, 1]} : vector<16x128xf32> to vector<1x116xf32>
    %10 = vector.extract_strided_slice %2 {offsets = [7, 0], sizes = [1, 116], strides = [1, 1]} : vector<16x128xf32> to vector<1x116xf32>
    %11 = vector.extract_strided_slice %2 {offsets = [8, 0], sizes = [1, 116], strides = [1, 1]} : vector<16x128xf32> to vector<1x116xf32>
    %12 = vector.extract_strided_slice %2 {offsets = [9, 0], sizes = [1, 116], strides = [1, 1]} : vector<16x128xf32> to vector<1x116xf32>
    %c0_4 = arith.constant 0 : index
    %c0_5 = arith.constant 0 : index
    %13 = vector.load %arg2[%c0_4, %c0_5] : memref<116x384xf32, #tpu.memory_space<vmem>>, vector<116x384xf32>
    %cst = arith.constant dense<0.000000e+00> : vector<16x384xf32>
    %14 = tpu.matmul %1, %13, %cst {dimension_numbers = #tpu.dot_dimension_numbers<[1], [0], [0], [1], [0, 0, 1, 1], [], []>} : vector<16x116xf32>, vector<116x384xf32>, vector<16x384xf32> -> vector<16x384xf32>
    %15 = vector.extract_strided_slice %14 {offsets = [0, 0], sizes = [16, 128], strides = [1, 1]} : vector<16x384xf32> to vector<16x128xf32>
    %16 = vector.broadcast %3 : vector<1x128xf32> to vector<16x128xf32>
    %17 = arith.addf %15, %16 : vector<16x128xf32>
    %18 = vector.extract_strided_slice %14 {offsets = [0, 128], sizes = [16, 128], strides = [1, 1]} : vector<16x384xf32> to vector<16x128xf32>
    %19 = vector.broadcast %4 : vector<1x128xf32> to vector<16x128xf32>
    %20 = arith.addf %18, %19 : vector<16x128xf32>
    %21 = vector.extract_strided_slice %14 {offsets = [0, 256], sizes = [16, 128], strides = [1, 1]} : vector<16x384xf32> to vector<16x128xf32>
    %22 = vector.broadcast %5 : vector<1x128xf32> to vector<16x128xf32>
    %23 = arith.addf %21, %22 : vector<16x128xf32>
    %24 = vector.extract_strided_slice %17 {offsets = [0, 0], sizes = [16, 32], strides = [1, 1]} : vector<16x128xf32> to vector<16x32xf32>
    %25 = vector.shape_cast %24 : vector<16x32xf32> to vector<2x8x32xf32>
    %26 = vector.extract_strided_slice %17 {offsets = [0, 32], sizes = [16, 32], strides = [1, 1]} : vector<16x128xf32> to vector<16x32xf32>
    %27 = vector.shape_cast %26 : vector<16x32xf32> to vector<2x8x32xf32>
    %28 = vector.extract_strided_slice %17 {offsets = [0, 64], sizes = [16, 32], strides = [1, 1]} : vector<16x128xf32> to vector<16x32xf32>
    %29 = vector.shape_cast %28 : vector<16x32xf32> to vector<2x8x32xf32>
    %30 = vector.extract_strided_slice %17 {offsets = [0, 96], sizes = [16, 32], strides = [1, 1]} : vector<16x128xf32> to vector<16x32xf32>
    %31 = vector.shape_cast %30 : vector<16x32xf32> to vector<2x8x32xf32>
    %32 = tpu.concatenate %25, %27, %29, %31 in 0 : vector<2x8x32xf32>, vector<2x8x32xf32>, vector<2x8x32xf32>, vector<2x8x32xf32> -> vector<8x8x32xf32>
    %33 = vector.extract_strided_slice %20 {offsets = [0, 0], sizes = [16, 32], strides = [1, 1]} : vector<16x128xf32> to vector<16x32xf32>
    %34 = vector.shape_cast %33 : vector<16x32xf32> to vector<2x8x32xf32>
    %35 = vector.extract_strided_slice %20 {offsets = [0, 32], sizes = [16, 32], strides = [1, 1]} : vector<16x128xf32> to vector<16x32xf32>
    %36 = vector.shape_cast %35 : vector<16x32xf32> to vector<2x8x32xf32>
    %37 = vector.extract_strided_slice %20 {offsets = [0, 64], sizes = [16, 32], strides = [1, 1]} : vector<16x128xf32> to vector<16x32xf32>
    %38 = vector.shape_cast %37 : vector<16x32xf32> to vector<2x8x32xf32>
    %39 = vector.extract_strided_slice %20 {offsets = [0, 96], sizes = [16, 32], strides = [1, 1]} : vector<16x128xf32> to vector<16x32xf32>
    %40 = vector.shape_cast %39 : vector<16x32xf32> to vector<2x8x32xf32>
    %41 = tpu.concatenate %34, %36, %38, %40 in 0 : vector<2x8x32xf32>, vector<2x8x32xf32>, vector<2x8x32xf32>, vector<2x8x32xf32> -> vector<8x8x32xf32>
    %42 = vector.extract_strided_slice %23 {offsets = [0, 0], sizes = [16, 32], strides = [1, 1]} : vector<16x128xf32> to vector<16x32xf32>
    %43 = vector.shape_cast %42 : vector<16x32xf32> to vector<2x8x32xf32>
    %44 = vector.extract_strided_slice %23 {offsets = [0, 32], sizes = [16, 32], strides = [1, 1]} : vector<16x128xf32> to vector<16x32xf32>
    %45 = vector.shape_cast %44 : vector<16x32xf32> to vector<2x8x32xf32>
    %46 = vector.extract_strided_slice %23 {offsets = [0, 64], sizes = [16, 32], strides = [1, 1]} : vector<16x128xf32> to vector<16x32xf32>
    %47 = vector.shape_cast %46 : vector<16x32xf32> to vector<2x8x32xf32>
    %48 = vector.extract_strided_slice %23 {offsets = [0, 96], sizes = [16, 32], strides = [1, 1]} : vector<16x128xf32> to vector<16x32xf32>
    %49 = vector.shape_cast %48 : vector<16x32xf32> to vector<2x8x32xf32>
    %50 = tpu.concatenate %43, %45, %47, %49 in 0 : vector<2x8x32xf32>, vector<2x8x32xf32>, vector<2x8x32xf32>, vector<2x8x32xf32> -> vector<8x8x32xf32>
    "tpu.trace_start"() <{level = 10 : i32, message = "nqd,nkd->nqk"}> : () -> ()
    %cst_6 = arith.constant dense<0.000000e+00> : vector<8x8x8xf32>
    %51 = tpu.matmul %32, %41, %cst_6 {dimension_numbers = #tpu.dot_dimension_numbers<[2], [2], [1], [1], [0, 0, 0, 1, 1, 1], [0], [0]>} : vector<8x8x32xf32>, vector<8x8x32xf32>, vector<8x8x8xf32> -> vector<8x8x8xf32>
    "tpu.trace_stop"() : () -> ()
    %cst_7 = arith.constant 0.176776692 : f32
    %52 = vector.broadcast %cst_7 : f32 to vector<8x8x8xf32>
    %53 = arith.mulf %51, %52 : vector<8x8x8xf32>
    %cst_8 = arith.constant dense<0xFF800000> : vector<8x8xf32>
    %54 = vector.multi_reduction <maximumf>, %53, %cst_8 [2] : vector<8x8x8xf32> to vector<8x8xf32>
    %55 = vector.shape_cast %54 : vector<8x8xf32> to vector<8x8x1xf32>
    %56 = vector.broadcast %55 : vector<8x8x1xf32> to vector<8x8x8xf32>
    %57 = arith.subf %53, %56 : vector<8x8x8xf32>
    %58 = math.exp %57 : vector<8x8x8xf32>
    %cst_9 = arith.constant dense<0.000000e+00> : vector<8x8xf32>
    %59 = vector.multi_reduction <add>, %58, %cst_9 [2] : vector<8x8x8xf32> to vector<8x8xf32>
    %60 = vector.shape_cast %59 : vector<8x8xf32> to vector<8x8x1xf32>
    %61 = tpu.reciprocal %60 : vector<8x8x1xf32> -> vector<8x8x1xf32>
    %62 = vector.broadcast %61 : vector<8x8x1xf32> to vector<8x8x8xf32>
    %63 = arith.mulf %58, %62 : vector<8x8x8xf32>
    %64 = vector.extract_strided_slice %63 {offsets = [0, 0, 0], sizes = [2, 1, 8], strides = [1, 1, 1]} : vector<8x8x8xf32> to vector<2x1x8xf32>
    %c0_10 = arith.constant 0 : index
    %c0_11 = arith.constant 0 : index
    %c0_12 = arith.constant 0 : index
    %65 = vector.load %arg8[%c0_10, %c0_11, %c0_12] : memref<2x1x256xf32, #tpu.memory_space<vmem>>, vector<2x1x8xf32>
    tpu.vector_store %arg8[%c0_10, %c0_11, %c0_12], %64 {strides = array<i32>} : memref<2x1x256xf32, #tpu.memory_space<vmem>>, vector<2x1x8xf32>,
    %66 = vector.extract_strided_slice %63 {offsets = [0, 1, 0], sizes = [2, 1, 8], strides = [1, 1, 1]} : vector<8x8x8xf32> to vector<2x1x8xf32>
    %c0_13 = arith.constant 0 : index
    %c0_14 = arith.constant 0 : index
    %c8 = arith.constant 8 : index
    %67 = vector.load %arg8[%c0_13, %c0_14, %c8] : memref<2x1x256xf32, #tpu.memory_space<vmem>>, vector<2x1x8xf32>
    tpu.vector_store %arg8[%c0_13, %c0_14, %c8], %66 {strides = array<i32>} : memref<2x1x256xf32, #tpu.memory_space<vmem>>, vector<2x1x8xf32>,
    %68 = vector.extract_strided_slice %63 {offsets = [0, 2, 0], sizes = [2, 1, 8], strides = [1, 1, 1]} : vector<8x8x8xf32> to vector<2x1x8xf32>
    %c0_15 = arith.constant 0 : index
    %c0_16 = arith.constant 0 : index
    %c16 = arith.constant 16 : index
    %69 = vector.load %arg8[%c0_15, %c0_16, %c16] : memref<2x1x256xf32, #tpu.memory_space<vmem>>, vector<2x1x8xf32>
    tpu.vector_store %arg8[%c0_15, %c0_16, %c16], %68 {strides = array<i32>} : memref<2x1x256xf32, #tpu.memory_space<vmem>>, vector<2x1x8xf32>,
    %70 = vector.extract_strided_slice %63 {offsets = [0, 3, 0], sizes = [2, 1, 8], strides = [1, 1, 1]} : vector<8x8x8xf32> to vector<2x1x8xf32>
    %c0_17 = arith.constant 0 : index
    %c0_18 = arith.constant 0 : index
    %c24 = arith.constant 24 : index
    %71 = vector.load %arg8[%c0_17, %c0_18, %c24] : memref<2x1x256xf32, #tpu.memory_space<vmem>>, vector<2x1x8xf32>
    tpu.vector_store %arg8[%c0_17, %c0_18, %c24], %70 {strides = array<i32>} : memref<2x1x256xf32, #tpu.memory_space<vmem>>, vector<2x1x8xf32>,
    %72 = vector.extract_strided_slice %63 {offsets = [0, 4, 0], sizes = [2, 1, 8], strides = [1, 1, 1]} : vector<8x8x8xf32> to vector<2x1x8xf32>
    %c0_19 = arith.constant 0 : index
    %c0_20 = arith.constant 0 : index
    %c32 = arith.constant 32 : index
    %73 = vector.load %arg8[%c0_19, %c0_20, %c32] : memref<2x1x256xf32, #tpu.memory_space<vmem>>, vector<2x1x8xf32>
    tpu.vector_store %arg8[%c0_19, %c0_20, %c32], %72 {strides = array<i32>} : memref<2x1x256xf32, #tpu.memory_space<vmem>>, vector<2x1x8xf32>,
    %74 = vector.extract_strided_slice %63 {offsets = [0, 5, 0], sizes = [2, 1, 8], strides = [1, 1, 1]} : vector<8x8x8xf32> to vector<2x1x8xf32>
    %c0_21 = arith.constant 0 : index
    %c0_22 = arith.constant 0 : index
    %c40 = arith.constant 40 : index
    %75 = vector.load %arg8[%c0_21, %c0_22, %c40] : memref<2x1x256xf32, #tpu.memory_space<vmem>>, vector<2x1x8xf32>
    tpu.vector_store %arg8[%c0_21, %c0_22, %c40], %74 {strides = array<i32>} : memref<2x1x256xf32, #tpu.memory_space<vmem>>, vector<2x1x8xf32>,
    %76 = vector.extract_strided_slice %63 {offsets = [0, 6, 0], sizes = [2, 1, 8], strides = [1, 1, 1]} : vector<8x8x8xf32> to vector<2x1x8xf32>
    %c0_23 = arith.constant 0 : index
    %c0_24 = arith.constant 0 : index
    %c48 = arith.constant 48 : index
    %77 = vector.load %arg8[%c0_23, %c0_24, %c48] : memref<2x1x256xf32, #tpu.memory_space<vmem>>, vector<2x1x8xf32>
    tpu.vector_store %arg8[%c0_23, %c0_24, %c48], %76 {strides = array<i32>} : memref<2x1x256xf32, #tpu.memory_space<vmem>>, vector<2x1x8xf32>,
    %78 = vector.extract_strided_slice %63 {offsets = [0, 7, 0], sizes = [2, 1, 8], strides = [1, 1, 1]} : vector<8x8x8xf32> to vector<2x1x8xf32>
    %c0_25 = arith.constant 0 : index
    %c0_26 = arith.constant 0 : index
    %c56 = arith.constant 56 : index
    %79 = vector.load %arg8[%c0_25, %c0_26, %c56] : memref<2x1x256xf32, #tpu.memory_space<vmem>>, vector<2x1x8xf32>
    tpu.vector_store %arg8[%c0_25, %c0_26, %c56], %78 {strides = array<i32>} : memref<2x1x256xf32, #tpu.memory_space<vmem>>, vector<2x1x8xf32>,
    %80 = vector.extract_strided_slice %63 {offsets = [2, 0, 0], sizes = [2, 1, 8], strides = [1, 1, 1]} : vector<8x8x8xf32> to vector<2x1x8xf32>
    %c0_27 = arith.constant 0 : index
    %c0_28 = arith.constant 0 : index
    %c64 = arith.constant 64 : index
    %81 = vector.load %arg8[%c0_27, %c0_28, %c64] : memref<2x1x256xf32, #tpu.memory_space<vmem>>, vector<2x1x8xf32>
    tpu.vector_store %arg8[%c0_27, %c0_28, %c64], %80 {strides = array<i32>} : memref<2x1x256xf32, #tpu.memory_space<vmem>>, vector<2x1x8xf32>,
    %82 = vector.extract_strided_slice %63 {offsets = [2, 1, 0], sizes = [2, 1, 8], strides = [1, 1, 1]} : vector<8x8x8xf32> to vector<2x1x8xf32>
    %c0_29 = arith.constant 0 : index
    %c0_30 = arith.constant 0 : index
    %c72 = arith.constant 72 : index
    %83 = vector.load %arg8[%c0_29, %c0_30, %c72] : memref<2x1x256xf32, #tpu.memory_space<vmem>>, vector<2x1x8xf32>
    tpu.vector_store %arg8[%c0_29, %c0_30, %c72], %82 {strides = array<i32>} : memref<2x1x256xf32, #tpu.memory_space<vmem>>, vector<2x1x8xf32>,
    %84 = vector.extract_strided_slice %63 {offsets = [2, 2, 0], sizes = [2, 1, 8], strides = [1, 1, 1]} : vector<8x8x8xf32> to vector<2x1x8xf32>
    %c0_31 = arith.constant 0 : index
    %c0_32 = arith.constant 0 : index
    %c80 = arith.constant 80 : index
    %85 = vector.load %arg8[%c0_31, %c0_32, %c80] : memref<2x1x256xf32, #tpu.memory_space<vmem>>, vector<2x1x8xf32>
    tpu.vector_store %arg8[%c0_31, %c0_32, %c80], %84 {strides = array<i32>} : memref<2x1x256xf32, #tpu.memory_space<vmem>>, vector<2x1x8xf32>,
    %86 = vector.extract_strided_slice %63 {offsets = [2, 3, 0], sizes = [2, 1, 8], strides = [1, 1, 1]} : vector<8x8x8xf32> to vector<2x1x8xf32>
    %c0_33 = arith.constant 0 : index
    %c0_34 = arith.constant 0 : index
    %c88 = arith.constant 88 : index
    %87 = vector.load %arg8[%c0_33, %c0_34, %c88] : memref<2x1x256xf32, #tpu.memory_space<vmem>>, vector<2x1x8xf32>
    tpu.vector_store %arg8[%c0_33, %c0_34, %c88], %86 {strides = array<i32>} : memref<2x1x256xf32, #tpu.memory_space<vmem>>, vector<2x1x8xf32>,
    %88 = vector.extract_strided_slice %63 {offsets = [2, 4, 0], sizes = [2, 1, 8], strides = [1, 1, 1]} : vector<8x8x8xf32> to vector<2x1x8xf32>
    %c0_35 = arith.constant 0 : index
    %c0_36 = arith.constant 0 : index
    %c96 = arith.constant 96 : index
    %89 = vector.load %arg8[%c0_35, %c0_36, %c96] : memref<2x1x256xf32, #tpu.memory_space<vmem>>, vector<2x1x8xf32>
    tpu.vector_store %arg8[%c0_35, %c0_36, %c96], %88 {strides = array<i32>} : memref<2x1x256xf32, #tpu.memory_space<vmem>>, vector<2x1x8xf32>,
    %90 = vector.extract_strided_slice %63 {offsets = [2, 5, 0], sizes = [2, 1, 8], strides = [1, 1, 1]} : vector<8x8x8xf32> to vector<2x1x8xf32>
    %c0_37 = arith.constant 0 : index
    %c0_38 = arith.constant 0 : index
    %c104 = arith.constant 104 : index
    %91 = vector.load %arg8[%c0_37, %c0_38, %c104] : memref<2x1x256xf32, #tpu.memory_space<vmem>>, vector<2x1x8xf32>
    tpu.vector_store %arg8[%c0_37, %c0_38, %c104], %90 {strides = array<i32>} : memref<2x1x256xf32, #tpu.memory_space<vmem>>, vector<2x1x8xf32>,
    %92 = vector.extract_strided_slice %63 {offsets = [2, 6, 0], sizes = [2, 1, 8], strides = [1, 1, 1]} : vector<8x8x8xf32> to vector<2x1x8xf32>
    %c0_39 = arith.constant 0 : index
    %c0_40 = arith.constant 0 : index
    %c112 = arith.constant 112 : index
    %93 = vector.load %arg8[%c0_39, %c0_40, %c112] : memref<2x1x256xf32, #tpu.memory_space<vmem>>, vector<2x1x8xf32>
    tpu.vector_store %arg8[%c0_39, %c0_40, %c112], %92 {strides = array<i32>} : memref<2x1x256xf32, #tpu.memory_space<vmem>>, vector<2x1x8xf32>,
    %94 = vector.extract_strided_slice %63 {offsets = [2, 7, 0], sizes = [2, 1, 8], strides = [1, 1, 1]} : vector<8x8x8xf32> to vector<2x1x8xf32>
    %c0_41 = arith.constant 0 : index
    %c0_42 = arith.constant 0 : index
    %c120 = arith.constant 120 : index
    %95 = vector.load %arg8[%c0_41, %c0_42, %c120] : memref<2x1x256xf32, #tpu.memory_space<vmem>>, vector<2x1x8xf32>
    tpu.vector_store %arg8[%c0_41, %c0_42, %c120], %94 {strides = array<i32>} : memref<2x1x256xf32, #tpu.memory_space<vmem>>, vector<2x1x8xf32>,
    %96 = vector.extract_strided_slice %63 {offsets = [4, 0, 0], sizes = [2, 1, 8], strides = [1, 1, 1]} : vector<8x8x8xf32> to vector<2x1x8xf32>
    %c0_43 = arith.constant 0 : index
    %c0_44 = arith.constant 0 : index
    %c128 = arith.constant 128 : index
    %97 = vector.load %arg8[%c0_43, %c0_44, %c128] : memref<2x1x256xf32, #tpu.memory_space<vmem>>, vector<2x1x8xf32>
    tpu.vector_store %arg8[%c0_43, %c0_44, %c128], %96 {strides = array<i32>} : memref<2x1x256xf32, #tpu.memory_space<vmem>>, vector<2x1x8xf32>,
    %98 = vector.extract_strided_slice %63 {offsets = [4, 1, 0], sizes = [2, 1, 8], strides = [1, 1, 1]} : vector<8x8x8xf32> to vector<2x1x8xf32>
    %c0_45 = arith.constant 0 : index
    %c0_46 = arith.constant 0 : index
    %c136 = arith.constant 136 : index
    %99 = vector.load %arg8[%c0_45, %c0_46, %c136] : memref<2x1x256xf32, #tpu.memory_space<vmem>>, vector<2x1x8xf32>
    tpu.vector_store %arg8[%c0_45, %c0_46, %c136], %98 {strides = array<i32>} : memref<2x1x256xf32, #tpu.memory_space<vmem>>, vector<2x1x8xf32>,
    %100 = vector.extract_strided_slice %63 {offsets = [4, 2, 0], sizes = [2, 1, 8], strides = [1, 1, 1]} : vector<8x8x8xf32> to vector<2x1x8xf32>
    %c0_47 = arith.constant 0 : index
    %c0_48 = arith.constant 0 : index
    %c144 = arith.constant 144 : index
    %101 = vector.load %arg8[%c0_47, %c0_48, %c144] : memref<2x1x256xf32, #tpu.memory_space<vmem>>, vector<2x1x8xf32>
    tpu.vector_store %arg8[%c0_47, %c0_48, %c144], %100 {strides = array<i32>} : memref<2x1x256xf32, #tpu.memory_space<vmem>>, vector<2x1x8xf32>,
    %102 = vector.extract_strided_slice %63 {offsets = [4, 3, 0], sizes = [2, 1, 8], strides = [1, 1, 1]} : vector<8x8x8xf32> to vector<2x1x8xf32>
    %c0_49 = arith.constant 0 : index
    %c0_50 = arith.constant 0 : index
    %c152 = arith.constant 152 : index
    %103 = vector.load %arg8[%c0_49, %c0_50, %c152] : memref<2x1x256xf32, #tpu.memory_space<vmem>>, vector<2x1x8xf32>
    tpu.vector_store %arg8[%c0_49, %c0_50, %c152], %102 {strides = array<i32>} : memref<2x1x256xf32, #tpu.memory_space<vmem>>, vector<2x1x8xf32>,
    %104 = vector.extract_strided_slice %63 {offsets = [4, 4, 0], sizes = [2, 1, 8], strides = [1, 1, 1]} : vector<8x8x8xf32> to vector<2x1x8xf32>
    %c0_51 = arith.constant 0 : index
    %c0_52 = arith.constant 0 : index
    %c160 = arith.constant 160 : index
    %105 = vector.load %arg8[%c0_51, %c0_52, %c160] : memref<2x1x256xf32, #tpu.memory_space<vmem>>, vector<2x1x8xf32>
    tpu.vector_store %arg8[%c0_51, %c0_52, %c160], %104 {strides = array<i32>} : memref<2x1x256xf32, #tpu.memory_space<vmem>>, vector<2x1x8xf32>,
    %106 = vector.extract_strided_slice %63 {offsets = [4, 5, 0], sizes = [2, 1, 8], strides = [1, 1, 1]} : vector<8x8x8xf32> to vector<2x1x8xf32>
    %c0_53 = arith.constant 0 : index
    %c0_54 = arith.constant 0 : index
    %c168 = arith.constant 168 : index
    %107 = vector.load %arg8[%c0_53, %c0_54, %c168] : memref<2x1x256xf32, #tpu.memory_space<vmem>>, vector<2x1x8xf32>
    tpu.vector_store %arg8[%c0_53, %c0_54, %c168], %106 {strides = array<i32>} : memref<2x1x256xf32, #tpu.memory_space<vmem>>, vector<2x1x8xf32>,
    %108 = vector.extract_strided_slice %63 {offsets = [4, 6, 0], sizes = [2, 1, 8], strides = [1, 1, 1]} : vector<8x8x8xf32> to vector<2x1x8xf32>
    %c0_55 = arith.constant 0 : index
    %c0_56 = arith.constant 0 : index
    %c176 = arith.constant 176 : index
    %109 = vector.load %arg8[%c0_55, %c0_56, %c176] : memref<2x1x256xf32, #tpu.memory_space<vmem>>, vector<2x1x8xf32>
    tpu.vector_store %arg8[%c0_55, %c0_56, %c176], %108 {strides = array<i32>} : memref<2x1x256xf32, #tpu.memory_space<vmem>>, vector<2x1x8xf32>,
    %110 = vector.extract_strided_slice %63 {offsets = [4, 7, 0], sizes = [2, 1, 8], strides = [1, 1, 1]} : vector<8x8x8xf32> to vector<2x1x8xf32>
    %c0_57 = arith.constant 0 : index
    %c0_58 = arith.constant 0 : index
    %c184 = arith.constant 184 : index
    %111 = vector.load %arg8[%c0_57, %c0_58, %c184] : memref<2x1x256xf32, #tpu.memory_space<vmem>>, vector<2x1x8xf32>
    tpu.vector_store %arg8[%c0_57, %c0_58, %c184], %110 {strides = array<i32>} : memref<2x1x256xf32, #tpu.memory_space<vmem>>, vector<2x1x8xf32>,
    %112 = vector.extract_strided_slice %63 {offsets = [6, 0, 0], sizes = [2, 1, 8], strides = [1, 1, 1]} : vector<8x8x8xf32> to vector<2x1x8xf32>
    %c0_59 = arith.constant 0 : index
    %c0_60 = arith.constant 0 : index
    %c192 = arith.constant 192 : index
    %113 = vector.load %arg8[%c0_59, %c0_60, %c192] : memref<2x1x256xf32, #tpu.memory_space<vmem>>, vector<2x1x8xf32>
    tpu.vector_store %arg8[%c0_59, %c0_60, %c192], %112 {strides = array<i32>} : memref<2x1x256xf32, #tpu.memory_space<vmem>>, vector<2x1x8xf32>,
    %114 = vector.extract_strided_slice %63 {offsets = [6, 1, 0], sizes = [2, 1, 8], strides = [1, 1, 1]} : vector<8x8x8xf32> to vector<2x1x8xf32>
    %c0_61 = arith.constant 0 : index
    %c0_62 = arith.constant 0 : index
    %c200 = arith.constant 200 : index
    %115 = vector.load %arg8[%c0_61, %c0_62, %c200] : memref<2x1x256xf32, #tpu.memory_space<vmem>>, vector<2x1x8xf32>
    tpu.vector_store %arg8[%c0_61, %c0_62, %c200], %114 {strides = array<i32>} : memref<2x1x256xf32, #tpu.memory_space<vmem>>, vector<2x1x8xf32>,
    %116 = vector.extract_strided_slice %63 {offsets = [6, 2, 0], sizes = [2, 1, 8], strides = [1, 1, 1]} : vector<8x8x8xf32> to vector<2x1x8xf32>
    %c0_63 = arith.constant 0 : index
    %c0_64 = arith.constant 0 : index
    %c208 = arith.constant 208 : index
    %117 = vector.load %arg8[%c0_63, %c0_64, %c208] : memref<2x1x256xf32, #tpu.memory_space<vmem>>, vector<2x1x8xf32>
    tpu.vector_store %arg8[%c0_63, %c0_64, %c208], %116 {strides = array<i32>} : memref<2x1x256xf32, #tpu.memory_space<vmem>>, vector<2x1x8xf32>,
    %118 = vector.extract_strided_slice %63 {offsets = [6, 3, 0], sizes = [2, 1, 8], strides = [1, 1, 1]} : vector<8x8x8xf32> to vector<2x1x8xf32>
    %c0_65 = arith.constant 0 : index
    %c0_66 = arith.constant 0 : index
    %c216 = arith.constant 216 : index
    %119 = vector.load %arg8[%c0_65, %c0_66, %c216] : memref<2x1x256xf32, #tpu.memory_space<vmem>>, vector<2x1x8xf32>
    tpu.vector_store %arg8[%c0_65, %c0_66, %c216], %118 {strides = array<i32>} : memref<2x1x256xf32, #tpu.memory_space<vmem>>, vector<2x1x8xf32>,
    %120 = vector.extract_strided_slice %63 {offsets = [6, 4, 0], sizes = [2, 1, 8], strides = [1, 1, 1]} : vector<8x8x8xf32> to vector<2x1x8xf32>
    %c0_67 = arith.constant 0 : index
    %c0_68 = arith.constant 0 : index
    %c224 = arith.constant 224 : index
    %121 = vector.load %arg8[%c0_67, %c0_68, %c224] : memref<2x1x256xf32, #tpu.memory_space<vmem>>, vector<2x1x8xf32>
    tpu.vector_store %arg8[%c0_67, %c0_68, %c224], %120 {strides = array<i32>} : memref<2x1x256xf32, #tpu.memory_space<vmem>>, vector<2x1x8xf32>,
    %122 = vector.extract_strided_slice %63 {offsets = [6, 5, 0], sizes = [2, 1, 8], strides = [1, 1, 1]} : vector<8x8x8xf32> to vector<2x1x8xf32>
    %c0_69 = arith.constant 0 : index
    %c0_70 = arith.constant 0 : index
    %c232 = arith.constant 232 : index
    %123 = vector.load %arg8[%c0_69, %c0_70, %c232] : memref<2x1x256xf32, #tpu.memory_space<vmem>>, vector<2x1x8xf32>
    tpu.vector_store %arg8[%c0_69, %c0_70, %c232], %122 {strides = array<i32>} : memref<2x1x256xf32, #tpu.memory_space<vmem>>, vector<2x1x8xf32>,
    %124 = vector.extract_strided_slice %63 {offsets = [6, 6, 0], sizes = [2, 1, 8], strides = [1, 1, 1]} : vector<8x8x8xf32> to vector<2x1x8xf32>
    %c0_71 = arith.constant 0 : index
    %c0_72 = arith.constant 0 : index
    %c240 = arith.constant 240 : index
    %125 = vector.load %arg8[%c0_71, %c0_72, %c240] : memref<2x1x256xf32, #tpu.memory_space<vmem>>, vector<2x1x8xf32>
    tpu.vector_store %arg8[%c0_71, %c0_72, %c240], %124 {strides = array<i32>} : memref<2x1x256xf32, #tpu.memory_space<vmem>>, vector<2x1x8xf32>,
    %126 = vector.extract_strided_slice %63 {offsets = [6, 7, 0], sizes = [2, 1, 8], strides = [1, 1, 1]} : vector<8x8x8xf32> to vector<2x1x8xf32>
    %c0_73 = arith.constant 0 : index
    %c0_74 = arith.constant 0 : index
    %c248 = arith.constant 248 : index
    %127 = vector.load %arg8[%c0_73, %c0_74, %c248] : memref<2x1x256xf32, #tpu.memory_space<vmem>>, vector<2x1x8xf32>
    tpu.vector_store %arg8[%c0_73, %c0_74, %c248], %126 {strides = array<i32>} : memref<2x1x256xf32, #tpu.memory_space<vmem>>, vector<2x1x8xf32>,
    "tpu.trace_start"() <{level = 10 : i32, message = "nqk,nkd->nqd"}> : () -> ()
    %cst_75 = arith.constant dense<0.000000e+00> : vector<8x8x32xf32>
    %128 = tpu.matmul %63, %50, %cst_75 {dimension_numbers = #tpu.dot_dimension_numbers<[2], [1], [1], [2], [0, 0, 0, 1, 1, 2], [0], [0]>} : vector<8x8x8xf32>, vector<8x8x32xf32>, vector<8x8x32xf32> -> vector<8x8x32xf32>
    "tpu.trace_stop"() : () -> ()
    %129 = vector.extract_strided_slice %128 {offsets = [0, 0, 0], sizes = [2, 8, 32], strides = [1, 1, 1]} : vector<8x8x32xf32> to vector<2x8x32xf32>
    %130 = vector.shape_cast %129 : vector<2x8x32xf32> to vector<16x32xf32>
    %c0_76 = arith.constant 0 : index
    %c0_77 = arith.constant 0 : index
    %131 = vector.load %arg9[%c0_76, %c0_77] : memref<16x128xf32, #tpu.memory_space<vmem>>, vector<16x32xf32>
    tpu.vector_store %arg9[%c0_76, %c0_77], %130 {strides = array<i32>} : memref<16x128xf32, #tpu.memory_space<vmem>>, vector<16x32xf32>,
    %132 = vector.extract_strided_slice %128 {offsets = [2, 0, 0], sizes = [2, 8, 32], strides = [1, 1, 1]} : vector<8x8x32xf32> to vector<2x8x32xf32>
    %133 = vector.shape_cast %132 : vector<2x8x32xf32> to vector<16x32xf32>
    %c0_78 = arith.constant 0 : index
    %c32_79 = arith.constant 32 : index
    %134 = vector.load %arg9[%c0_78, %c32_79] : memref<16x128xf32, #tpu.memory_space<vmem>>, vector<16x32xf32>
    tpu.vector_store %arg9[%c0_78, %c32_79], %133 {strides = array<i32>} : memref<16x128xf32, #tpu.memory_space<vmem>>, vector<16x32xf32>,
    %135 = vector.extract_strided_slice %128 {offsets = [4, 0, 0], sizes = [2, 8, 32], strides = [1, 1, 1]} : vector<8x8x32xf32> to vector<2x8x32xf32>
    %136 = vector.shape_cast %135 : vector<2x8x32xf32> to vector<16x32xf32>
    %c0_80 = arith.constant 0 : index
    %c64_81 = arith.constant 64 : index
    %137 = vector.load %arg9[%c0_80, %c64_81] : memref<16x128xf32, #tpu.memory_space<vmem>>, vector<16x32xf32>
    tpu.vector_store %arg9[%c0_80, %c64_81], %136 {strides = array<i32>} : memref<16x128xf32, #tpu.memory_space<vmem>>, vector<16x32xf32>,
    %138 = vector.extract_strided_slice %128 {offsets = [6, 0, 0], sizes = [2, 8, 32], strides = [1, 1, 1]} : vector<8x8x32xf32> to vector<2x8x32xf32>
    %139 = vector.shape_cast %138 : vector<2x8x32xf32> to vector<16x32xf32>
    %c0_82 = arith.constant 0 : index
    %c96_83 = arith.constant 96 : index
    %140 = vector.load %arg9[%c0_82, %c96_83] : memref<16x128xf32, #tpu.memory_space<vmem>>, vector<16x32xf32>
    tpu.vector_store %arg9[%c0_82, %c96_83], %139 {strides = array<i32>} : memref<16x128xf32, #tpu.memory_space<vmem>>, vector<16x32xf32>,
    %c0_84 = arith.constant 0 : index
    %c0_85 = arith.constant 0 : index
    %141 = vector.load %arg9[%c0_84, %c0_85] : memref<16x128xf32, #tpu.memory_space<vmem>>, vector<16x128xf32>
    %c0_86 = arith.constant 0 : index
    %c0_87 = arith.constant 0 : index
    %142 = vector.load %arg3[%c0_86, %c0_87] : memref<128x116xf32, #tpu.memory_space<vmem>>, vector<128x116xf32>
    %cst_88 = arith.constant dense<0.000000e+00> : vector<16x116xf32>
    %143 = tpu.matmul %141, %142, %cst_88 {dimension_numbers = #tpu.dot_dimension_numbers<[1], [0], [0], [1], [0, 0, 1, 1], [], []>} : vector<16x128xf32>, vector<128x116xf32>, vector<16x116xf32> -> vector<16x116xf32>
    %144 = vector.broadcast %6 : vector<1x116xf32> to vector<16x116xf32>
    %145 = arith.addf %143, %144 : vector<16x116xf32>
    %146 = arith.addf %145, %1 : vector<16x116xf32>
    %cst_89 = arith.constant dense<0.000000e+00> : vector<16xf32>
    %147 = vector.multi_reduction <add>, %146, %cst_89 [1] : vector<16x116xf32> to vector<16xf32>
    %148 = vector.shape_cast %147 : vector<16xf32> to vector<16x1xf32>
    %cst_90 = arith.constant 1.160000e+02 : f32
    %149 = vector.broadcast %cst_90 : f32 to vector<16x1xf32>
    %150 = arith.divf %148, %149 : vector<16x1xf32>
    %151 = vector.broadcast %150 : vector<16x1xf32> to vector<16x116xf32>
    %152 = arith.subf %146, %151 : vector<16x116xf32>
    %153 = arith.mulf %152, %152 : vector<16x116xf32>
    %cst_91 = arith.constant dense<0.000000e+00> : vector<16xf32>
    %154 = vector.multi_reduction <add>, %153, %cst_91 [1] : vector<16x116xf32> to vector<16xf32>
    %155 = vector.shape_cast %154 : vector<16xf32> to vector<16x1xf32>
    %cst_92 = arith.constant 1.160000e+02 : f32
    %156 = vector.broadcast %cst_92 : f32 to vector<16x1xf32>
    %157 = arith.divf %155, %156 : vector<16x1xf32>
    %cst_93 = arith.constant 9.99999974E-6 : f32
    %158 = vector.broadcast %cst_93 : f32 to vector<16x1xf32>
    %159 = arith.addf %157, %158 : vector<16x1xf32>
    %160 = math.rsqrt %159 : vector<16x1xf32>
    %161 = vector.broadcast %160 : vector<16x1xf32> to vector<16x116xf32>
    %162 = arith.mulf %152, %161 : vector<16x116xf32>
    %163 = vector.broadcast %7 : vector<1x116xf32> to vector<16x116xf32>
    %164 = arith.mulf %162, %163 : vector<16x116xf32>
    %165 = vector.broadcast %8 : vector<1x116xf32> to vector<16x116xf32>
    %166 = arith.addf %164, %165 : vector<16x116xf32>
    %c0_94 = arith.constant 0 : index
    %c0_95 = arith.constant 0 : index
    %167 = vector.load %arg4[%c0_94, %c0_95] : memref<116x116xf32, #tpu.memory_space<vmem>>, vector<116x116xf32>
    %cst_96 = arith.constant dense<0.000000e+00> : vector<16x116xf32>
    %168 = tpu.matmul %166, %167, %cst_96 {dimension_numbers = #tpu.dot_dimension_numbers<[1], [0], [0], [1], [0, 0, 1, 1], [], []>} : vector<16x116xf32>, vector<116x116xf32>, vector<16x116xf32> -> vector<16x116xf32>
    %169 = vector.broadcast %9 : vector<1x116xf32> to vector<16x116xf32>
    %170 = arith.addf %168, %169 : vector<16x116xf32>
    %cst_97 = arith.constant 0.000000e+00 : f32
    %171 = vector.broadcast %cst_97 : f32 to vector<16x116xf32>
    %172 = arith.maximumf %170, %171 : vector<16x116xf32>
    %c0_98 = arith.constant 0 : index
    %c0_99 = arith.constant 0 : index
    %173 = vector.load %arg5[%c0_98, %c0_99] : memref<116x116xf32, #tpu.memory_space<vmem>>, vector<116x116xf32>
    %cst_100 = arith.constant dense<0.000000e+00> : vector<16x116xf32>
    %174 = tpu.matmul %172, %173, %cst_100 {dimension_numbers = #tpu.dot_dimension_numbers<[1], [0], [0], [1], [0, 0, 1, 1], [], []>} : vector<16x116xf32>, vector<116x116xf32>, vector<16x116xf32> -> vector<16x116xf32>
    %175 = vector.broadcast %10 : vector<1x116xf32> to vector<16x116xf32>
    %176 = arith.addf %174, %175 : vector<16x116xf32>
    %177 = arith.addf %176, %166 : vector<16x116xf32>
    %cst_101 = arith.constant dense<0.000000e+00> : vector<16xf32>
    %178 = vector.multi_reduction <add>, %177, %cst_101 [1] : vector<16x116xf32> to vector<16xf32>
    %179 = vector.shape_cast %178 : vector<16xf32> to vector<16x1xf32>
    %cst_102 = arith.constant 1.160000e+02 : f32
    %180 = vector.broadcast %cst_102 : f32 to vector<16x1xf32>
    %181 = arith.divf %179, %180 : vector<16x1xf32>
    %182 = vector.broadcast %181 : vector<16x1xf32> to vector<16x116xf32>
    %183 = arith.subf %177, %182 : vector<16x116xf32>
    %184 = arith.mulf %183, %183 : vector<16x116xf32>
    %cst_103 = arith.constant dense<0.000000e+00> : vector<16xf32>
    %185 = vector.multi_reduction <add>, %184, %cst_103 [1] : vector<16x116xf32> to vector<16xf32>
    %186 = vector.shape_cast %185 : vector<16xf32> to vector<16x1xf32>
    %cst_104 = arith.constant 1.160000e+02 : f32
    %187 = vector.broadcast %cst_104 : f32 to vector<16x1xf32>
    %188 = arith.divf %186, %187 : vector<16x1xf32>
    %cst_105 = arith.constant 9.99999974E-6 : f32
    %189 = vector.broadcast %cst_105 : f32 to vector<16x1xf32>
    %190 = arith.addf %188, %189 : vector<16x1xf32>
    %191 = math.rsqrt %190 : vector<16x1xf32>
    %192 = vector.broadcast %191 : vector<16x1xf32> to vector<16x116xf32>
    %193 = arith.mulf %183, %192 : vector<16x116xf32>
    %194 = vector.broadcast %11 : vector<1x116xf32> to vector<16x116xf32>
    %195 = arith.mulf %193, %194 : vector<16x116xf32>
    %196 = vector.broadcast %12 : vector<1x116xf32> to vector<16x116xf32>
    %197 = arith.addf %195, %196 : vector<16x116xf32>
    %198 = vector.shape_cast %197 : vector<16x116xf32> to vector<2x8x116xf32>
    %c0_106 = arith.constant 0 : index
    %c0_107 = arith.constant 0 : index
    %c0_108 = arith.constant 0 : index
    %199 = vector.load %arg7[%c0_106, %c0_107, %c0_108] : memref<2x8x116xf32, #tpu.memory_space<vmem>>, vector<2x8x116xf32>
    tpu.vector_store %arg7[%c0_106, %c0_107, %c0_108], %198 {strides = array<i32>} : memref<2x8x116xf32, #tpu.memory_space<vmem>>, vector<2x8x116xf32>,
    return
  }
  func.func @transform_0(%arg0: i32) -> (i32, i32, i32) {
    %c0_i32 = arith.constant 0 : i32
    %c0_i32_0 = arith.constant 0 : i32
    %c0_i32_1 = arith.constant 0 : i32
    return %arg0, %c0_i32, %c0_i32_0 : i32, i32, i32
  }
  func.func @transform_1(%arg0: i32) -> (i32, i32) {
    %c0_i32 = arith.constant 0 : i32
    %c0_i32_0 = arith.constant 0 : i32
    %c0_i32_1 = arith.constant 0 : i32
    return %c0_i32, %c0_i32_0 : i32, i32
  }
  func.func @transform_2(%arg0: i32) -> (i32, i32) {
    %c0_i32 = arith.constant 0 : i32
    %c0_i32_0 = arith.constant 0 : i32
    %c0_i32_1 = arith.constant 0 : i32
    return %c0_i32, %c0_i32_0 : i32, i32
  }
  func.func @transform_3(%arg0: i32) -> (i32, i32) {
    %c0_i32 = arith.constant 0 : i32
    %c0_i32_0 = arith.constant 0 : i32
    %c0_i32_1 = arith.constant 0 : i32
    return %c0_i32, %c0_i32_0 : i32, i32
  }
  func.func @transform_4(%arg0: i32) -> (i32, i32) {
    %c0_i32 = arith.constant 0 : i32
    %c0_i32_0 = arith.constant 0 : i32
    %c0_i32_1 = arith.constant 0 : i32
    return %c0_i32, %c0_i32_0 : i32, i32
  }
  func.func @transform_5(%arg0: i32) -> (i32, i32) {
    %c0_i32 = arith.constant 0 : i32
    %c0_i32_0 = arith.constant 0 : i32
    %c0_i32_1 = arith.constant 0 : i32
    return %c0_i32, %c0_i32_0 : i32, i32
  }
  func.func @transform_6(%arg0: i32) -> (i32, i32, i32) {
    %c0_i32 = arith.constant 0 : i32
    %c0_i32_0 = arith.constant 0 : i32
    %c0_i32_1 = arith.constant 0 : i32
    return %arg0, %c0_i32, %c0_i32_0 : i32, i32, i32
  }
  func.func @transform_7(%arg0: i32) -> (i32, i32, i32) {
    %c0_i32 = arith.constant 0 : i32
    %c0_i32_0 = arith.constant 0 : i32
    %c0_i32_1 = arith.constant 0 : i32
    return %arg0, %c0_i32, %c0_i32_0 : i32, i32, i32
  }
}

</mosaic_0001>

<llo_original>
// kernel: tpu_custom_call.1
$region0: #{tpu_custom_call.1}
  #allocation0 [shape = 'u32[]', space=smem, size = 0x4, offset = 0x4, fixed_abs, tag = 'smem constant byte address 0x4 - core index']
  #allocation1 [shape = 'u32[144,128]{1,0:T(1,128)}', space=vmem, size = 0x12000, scoped, tag = 'internal scratch']
  #allocation2 [shape = 'f32[16,128]{1,0:T(8,128)}', space=vmem, size = 0x2000, scoped, tag = 'scratch operand']
  %s0 = inlined_call_operand.hbm [shape: f32[2,8,116], index: 0, kind: input, shape index: {}]
  %s1 = inlined_call_operand.hbm [shape: f32[116,384], index: 1, kind: input, shape index: {}]
  %s2 = inlined_call_operand.vmem [shape: f32[128,116], index: 2, kind: input, shape index: {}]
  %s3 = inlined_call_operand.vmem [shape: f32[116,116], index: 3, kind: input, shape index: {}]
  %s4 = inlined_call_operand.vmem [shape: f32[116,116], index: 4, kind: input, shape index: {}]
  %s5 = inlined_call_operand.vmem [shape: f32[16,128], index: 5, kind: input, shape index: {}]
  %s6 = inlined_call_operand.hbm [shape: f32[2,8,116], index: 6, kind: output, shape index: {0}]
  %s7 = inlined_call_operand.hbm [shape: f32[2,1,256], index: 7, kind: output, shape index: {1}]
  %8 = xla_tuple %s6, %s7
  %s9 = sld [smem:[#allocation0]]
  $region50: #{tpu_custom_call.1} parent=0
    _
  %s11 = ssub.s32 1, %s9
  %s12 = scalar_select 0, %s11, %s9
  $region1: #{tpu_custom_call.1} parent=0
    #allocation3 [shape = 'u8[8192]{0}', space=vmem, size = 0x2000, scoped, tag = 'input window, operand 0, single buffered']
    #allocation4 [shape = 's32[1]{0}', space=sflag, size = 0x4, scoped, tag = 'scoped memory for tpu_custom_call.1']
    #allocation5 [shape = 's32[1]{0}', space=sflag, size = 0x4, scoped, tag = 'scoped memory for tpu_custom_call.1']
    #allocation6 [shape = 'u8[184320]{0}', space=vmem, size = 0x2d000, scoped, tag = 'input window, operand 1, single buffered']
    #allocation7 [shape = 's32[1]{0}', space=sflag, size = 0x4, scoped, tag = 'scoped memory for tpu_custom_call.1']
    #allocation8 [shape = 'u8[8192]{0}', space=vmem, size = 0x2000, scoped, tag = 'output window, operand 0, single buffered']
    #allocation9 [shape = 'u8[2048]{0}', space=vmem, size = 0x800, scoped, tag = 'output window, operand 1, single buffered']
    #allocation10 [shape = 's32[1]{0}', space=sflag, size = 0x4, scoped, tag = 'scoped memory for tpu_custom_call.1']
    %13 = vsyncpa [#allocation4], 0
    %14 = vsyncpa [#allocation7], 0
    %15 = vsyncpa [#allocation5], 0
    %16 = vsyncpa [#allocation10], 0
    // Predicated region
    $region2: #{tpu_custom_call.1} parent=1 // pred_check
      _
    $region3: #{tpu_custom_call.1} parent=1 // pred_check_branch
      %18 = sbr.rel (0) target = $region5
    $region4: #{tpu_custom_call.1} parent=1 // pred_region
      %s20 = ssub.s32 256, 256
      %21 = vsyncadd [#allocation4], %s20
      %s22 = sshll.u32 [#allocation3], 4
      %s23 = int_to_ptr.vmem [resolvable:$true] %s22
      %28 = dma.hbm_to_vmem [thread:$0]  %s0, 256, %s23, [#allocation4], 128, 128, 8
    $region5: #{tpu_custom_call.1} parent=1 // pred_fallthru
      _
    // Predicated region
    $region6: #{tpu_custom_call.1} parent=1 // pred_check
      _
    $region7: #{tpu_custom_call.1} parent=1 // pred_check_branch
      %30 = sbr.rel (0) target = $region9
    $region8: #{tpu_custom_call.1} parent=1 // pred_region
      %s32 = ssub.s32 5760, 5760
      %33 = vsyncadd [#allocation7], %s32
      %s34 = sshll.u32 [#allocation6], 4
      %s35 = int_to_ptr.vmem [resolvable:$true] %s34
      %40 = dma.hbm_to_vmem [thread:$0]  %s1, 5760, %s35, [#allocation7], 384, 384, 24
    $region9: #{tpu_custom_call.1} parent=1 // pred_fallthru
      _
    // Predicated region
    $region10: #{tpu_custom_call.1} parent=1 // pred_check
      _
    $region11: #{tpu_custom_call.1} parent=1 // pred_check_branch
      %42 = sbr.rel (0) target = $region13
    $region12: #{tpu_custom_call.1} parent=1 // pred_region
      _
    $region13: #{tpu_custom_call.1} parent=1 // pred_fallthru
      _
    // Predicated region
    $region14: #{tpu_custom_call.1} parent=1 // pred_check
      _
    $region15: #{tpu_custom_call.1} parent=1 // pred_check_branch
      %44 = sbr.rel (0) target = $region17
    $region16: #{tpu_custom_call.1} parent=1 // pred_region
      _
    $region17: #{tpu_custom_call.1} parent=1 // pred_fallthru
      _
    // Predicated region
    $region18: #{tpu_custom_call.1} parent=1 // pred_check
      _
    $region19: #{tpu_custom_call.1} parent=1 // pred_check_branch
      %46 = sbr.rel (0) target = $region21
    $region20: #{tpu_custom_call.1} parent=1 // pred_region
      _
    $region21: #{tpu_custom_call.1} parent=1 // pred_fallthru
      _
    // Predicated region
    $region22: #{tpu_custom_call.1} parent=1 // pred_check
      _
    $region23: #{tpu_custom_call.1} parent=1 // pred_check_branch
      %48 = sbr.rel (0) target = $region25
    $region24: #{tpu_custom_call.1} parent=1 // pred_region
      _
    $region25: #{tpu_custom_call.1} parent=1 // pred_fallthru
      _
    // Predicated region
    $region26: #{tpu_custom_call.1} parent=1 // pred_check
      _
    $region27: #{tpu_custom_call.1} parent=1 // pred_check_branch
      %50 = sbr.rel (0) target = $region29
    $region28: #{tpu_custom_call.1} parent=1 // pred_region
      %51 = dma.done [#allocation4], 256
    $region29: #{tpu_custom_call.1} parent=1 // pred_fallthru
      _
    // Predicated region
    $region30: #{tpu_custom_call.1} parent=1 // pred_check
      _
    $region31: #{tpu_custom_call.1} parent=1 // pred_check_branch
      %53 = sbr.rel (0) target = $region33
    $region32: #{tpu_custom_call.1} parent=1 // pred_region
      %54 = dma.done [#allocation7], 5760
    $region33: #{tpu_custom_call.1} parent=1 // pred_fallthru
      _
    %v55 = vld [vmem:[#allocation3] sm:$0xff]
    %v56 = vld [vmem:[#allocation3 + $0x8] sm:$0xff]
    %v57 = vld [vmem:[%s5] sm:$0xff]
    %v58 = vld [vmem:[%s5 + $0x8] sm:$0xff]
    %v59 = vld [vmem:[#allocation6] sm:$0xff]
    %v60 = vld [vmem:[#allocation6 + $0x8] sm:$0xff]
    %v61 = vld [vmem:[#allocation6 + $0x10] sm:$0xff]
    %v62 = vld [vmem:[#allocation6 + $0x18] sm:$0xff]
    %v63 = vld [vmem:[#allocation6 + $0x20] sm:$0xff]
    %v64 = vld [vmem:[#allocation6 + $0x28] sm:$0xff]
    %v65 = vld [vmem:[#allocation6 + $0x30] sm:$0xff]
    %v66 = vld [vmem:[#allocation6 + $0x38] sm:$0xff]
    %v67 = vld [vmem:[#allocation6 + $0x40] sm:$0xff]
    %v68 = vld [vmem:[#allocation6 + $0x48] sm:$0xff]
    %v69 = vld [vmem:[#allocation6 + $0x50] sm:$0xff]
    %v70 = vld [vmem:[#allocation6 + $0x58] sm:$0xff]
    %v71 = vld [vmem:[#allocation6 + $0x60] sm:$0xff]
    %v72 = vld [vmem:[#allocation6 + $0x68] sm:$0xff]
    %v73 = vld [vmem:[#allocation6 + $0x70] sm:$0xff]
    %v74 = vld [vmem:[#allocation6 + $0x78] sm:$0xff]
    %v75 = vld [vmem:[#allocation6 + $0x80] sm:$0xff]
    %v76 = vld [vmem:[#allocation6 + $0x88] sm:$0xff]
    %v77 = vld [vmem:[#allocation6 + $0x90] sm:$0xff]
    %v78 = vld [vmem:[#allocation6 + $0x98] sm:$0xff]
    %v79 = vld [vmem:[#allocation6 + $0xa0] sm:$0xff]
    %v80 = vld [vmem:[#allocation6 + $0xa8] sm:$0xff]
    %v81 = vld [vmem:[#allocation6 + $0xb0] sm:$0xff]
    %v82 = vld [vmem:[#allocation6 + $0xb8] sm:$0xff]
    %v83 = vld [vmem:[#allocation6 + $0xc0] sm:$0xff]
    %v84 = vld [vmem:[#allocation6 + $0xc8] sm:$0xff]
    %v85 = vld [vmem:[#allocation6 + $0xd0] sm:$0xff]
    %v86 = vld [vmem:[#allocation6 + $0xd8] sm:$0xff]
    %v87 = vld [vmem:[#allocation6 + $0xe0] sm:$0xff]
    %v88 = vld [vmem:[#allocation6 + $0xe8] sm:$0xff]
    %v89 = vld [vmem:[#allocation6 + $0xf0] sm:$0xff]
    %v90 = vld [vmem:[#allocation6 + $0xf8] sm:$0xff]
    %v91 = vld [vmem:[#allocation6 + $0x100] sm:$0xff]
    %v92 = vld [vmem:[#allocation6 + $0x108] sm:$0xff]
    %v93 = vld [vmem:[#allocation6 + $0x110] sm:$0xff]
    %v94 = vld [vmem:[#allocation6 + $0x118] sm:$0xff]
    %v95 = vld [vmem:[#allocation6 + $0x120] sm:$0xff]
    %v96 = vld [vmem:[#allocation6 + $0x128] sm:$0xff]
    %v97 = vld [vmem:[#allocation6 + $0x130] sm:$0xff]
    %v98 = vld [vmem:[#allocation6 + $0x138] sm:$0xff]
    %v99 = vld [vmem:[#allocation6 + $0x140] sm:$0xff]
    %v100 = vld [vmem:[#allocation6 + $0x148] sm:$0xff]
    %v101 = vld [vmem:[#allocation6 + $0x150] sm:$0xf]
    %v102 = vld [vmem:[#allocation6 + $0x158] sm:$0xf]
    %v103 = vld [vmem:[#allocation6 + $0x160] sm:$0xf]
    %vm104 = vcmask 949248
    %v106 = vsel %vm104, %v55, 0
    %v109 = vsel %vm104, %v56, 0
    %vm111 = vcmask 1043456
    %v113 = vsel %vm111, %v101, 0
    %v116 = vsel %vm111, %v102, 0
    %v119 = vsel %vm111, %v103, 0
    %121 = vmatprep.subr.mxu0 %v60
    %122 = vmatpush1.msra.mxu0 %v59
    %123 = vmatprep.subr.mxu0 %v63
    %124 = vmatpush1.msra.mxu0 %v62
    %125 = vmatprep.subr.mxu0 %v66
    %126 = vmatpush1.msra.mxu0 %v65
    %127 = vmatprep.subr.mxu0 %v69
    %128 = vmatpush1.msra.mxu0 %v68
    %129 = vmatprep.subr.mxu0 %v72
    %130 = vmatpush1.msra.mxu0 %v71
    %131 = vmatprep.subr.mxu0 %v75
    %132 = vmatpush1.msra.mxu0 %v74
    %133 = vmatprep.subr.mxu0 %v78
    %134 = vmatpush1.msra.mxu0 %v77
    %135 = vmatprep.subr.mxu0 %v81
    %136 = vmatpush1.msra.mxu0 %v80
    %137 = vmatprep.subr.mxu0 %v84
    %138 = vmatpush1.msra.mxu0 %v83
    %139 = vmatprep.subr.mxu0 %v87
    %140 = vmatpush1.msra.mxu0 %v86
    %141 = vmatprep.subr.mxu0 %v90
    %142 = vmatpush1.msra.mxu0 %v89
    %143 = vmatprep.subr.mxu0 %v93
    %144 = vmatpush1.msra.mxu0 %v92
    %145 = vmatprep.subr.mxu0 %v96
    %146 = vmatpush1.msra.mxu0 %v95
    %147 = vmatprep.subr.mxu0 %v99
    %148 = vmatpush1.msra.mxu0 %v98
    %149 = vmatprep.subr.mxu0 %v116
    %150 = vmatpush1.msra.mxu0 %v113
    %151 = vmatprep.subr.mxu0 0.0
    %152 = vmatpush1.msra.mxu0 0.0
    %153 = vmatprep.subr.mxu0 0.0
    %154 = vmatpush1.msra.mxu0 0.0
    %155 = vmatprep.subr.mxu0 0.0
    %156 = vmatpush1.msra.mxu0 0.0
    %157 = vmatprep.subr.mxu0 0.0
    %158 = vmatpush1.msra.mxu0 0.0
    %159 = vmatprep.subr.mxu0 0.0
    %160 = vmatpush1.msra.mxu0 0.0
    %161 = vmatprep.subr.mxu0 0.0
    %162 = vmatpush1.msra.mxu0 0.0
    %163 = vmatprep.subr.mxu0 0.0
    %164 = vmatpush1.msra.mxu0 0.0
    %165 = vmatprep.subr.mxu0 0.0
    %166 = vmatpush1.msra.mxu0 0.0
    %167 = vmatprep.subr.mxu0 0.0
    %168 = vmatpush1.msra.mxu0 0.0
    %169 = vmatprep.subr.mxu0 0.0
    %170 = vmatpush1.msra.mxu0 0.0
    %171 = vmatprep.subr.mxu0 0.0
    %172 = vmatpush1.msra.mxu0 0.0
    %173 = vmatprep.subr.mxu0 0.0
    %174 = vmatpush1.msra.mxu0 0.0
    %175 = vmatprep.subr.mxu0 0.0
    %176 = vmatpush1.msra.mxu0 0.0
    %177 = vmatprep.subr.mxu0 0.0
    %178 = vmatpush1.msra.mxu0 0.0
    %179 = vmatprep.subr.mxu0 0.0
    %180 = vmatpush1.msra.mxu0 0.0
    %181 = vmatprep.subr.mxu0 0.0
    %182 = vmatpush1.msra.mxu0 0.0
    %183 = vmatprep.subr.mxu0 0.0
    %184 = vmatpush1.msra.mxu0 0.0
    %185 = vmatprep.mubr.f32.mxu0 0.0
    %186 = vmatmul.mubr.f32.gmra.mrb[0].mxu0 %v106
    %v187 = vpop.f32.mrb[0].mxu0
    %v188 = vadd.f32 0.0, %v187
    %v189 = vpop.f32.mrb[0].mxu0
    %v190 = vadd.f32 0.0, %v189
    %191 = vmatprep.mubr.f32.mxu0 0.0
    %192 = vmatmul.mubr.f32.gmra.mrb[0].mxu0 %v109
    %v193 = vpop.f32.mrb[0].mxu0
    %v194 = vadd.f32 0.0, %v193
    %v195 = vpop.f32.mrb[0].mxu0
    %v196 = vadd.f32 0.0, %v195
    %197 = vdwg.mxu0
    %198 = vmatprep.subr.mxu0 0.0
    %199 = vmatpush1.msra.mxu0 %v61
    %200 = vmatprep.subr.mxu0 0.0
    %201 = vmatpush1.msra.mxu0 %v64
    %202 = vmatprep.subr.mxu0 0.0
    %203 = vmatpush1.msra.mxu0 %v67
    %204 = vmatprep.subr.mxu0 0.0
    %205 = vmatpush1.msra.mxu0 %v70
    %206 = vmatprep.subr.mxu0 0.0
    %207 = vmatpush1.msra.mxu0 %v73
    %208 = vmatprep.subr.mxu0 0.0
    %209 = vmatpush1.msra.mxu0 %v76
    %210 = vmatprep.subr.mxu0 0.0
    %211 = vmatpush1.msra.mxu0 %v79
    %212 = vmatprep.subr.mxu0 0.0
    %213 = vmatpush1.msra.mxu0 %v82
    %214 = vmatprep.subr.mxu0 0.0
    %215 = vmatpush1.msra.mxu0 %v85
    %216 = vmatprep.subr.mxu0 0.0
    %217 = vmatpush1.msra.mxu0 %v88
    %218 = vmatprep.subr.mxu0 0.0
    %219 = vmatpush1.msra.mxu0 %v91
    %220 = vmatprep.subr.mxu0 0.0
    %221 = vmatpush1.msra.mxu0 %v94
    %222 = vmatprep.subr.mxu0 0.0
    %223 = vmatpush1.msra.mxu0 %v97
    %224 = vmatprep.subr.mxu0 0.0
    %225 = vmatpush1.msra.mxu0 %v100
    %226 = vmatprep.subr.mxu0 0.0
    %227 = vmatpush1.msra.mxu0 %v119
    %228 = vmatprep.subr.mxu0 0.0
    %229 = vmatpush1.msra.mxu0 0.0
    %230 = vmatprep.subr.mxu0 0.0
    %231 = vmatpush1.msra.mxu0 0.0
    %232 = vmatprep.subr.mxu0 0.0
    %233 = vmatpush1.msra.mxu0 0.0
    %234 = vmatprep.subr.mxu0 0.0
    %235 = vmatpush1.msra.mxu0 0.0
    %236 = vmatprep.subr.mxu0 0.0
    %237 = vmatpush1.msra.mxu0 0.0
    %238 = vmatprep.subr.mxu0 0.0
    %239 = vmatpush1.msra.mxu0 0.0
    %240 = vmatprep.subr.mxu0 0.0
    %241 = vmatpush1.msra.mxu0 0.0
    %242 = vmatprep.subr.mxu0 0.0
    %243 = vmatpush1.msra.mxu0 0.0
    %244 = vmatprep.subr.mxu0 0.0
    %245 = vmatpush1.msra.mxu0 0.0
    %246 = vmatprep.subr.mxu0 0.0
    %247 = vmatpush1.msra.mxu0 0.0
    %248 = vmatprep.subr.mxu0 0.0
    %249 = vmatpush1.msra.mxu0 0.0
    %250 = vmatprep.subr.mxu0 0.0
    %251 = vmatpush1.msra.mxu0 0.0
    %252 = vmatprep.subr.mxu0 0.0
    %253 = vmatpush1.msra.mxu0 0.0
    %254 = vmatprep.subr.mxu0 0.0
    %255 = vmatpush1.msra.mxu0 0.0
    %256 = vmatprep.subr.mxu0 0.0
    %257 = vmatpush1.msra.mxu0 0.0
    %258 = vmatprep.subr.mxu0 0.0
    %259 = vmatpush1.msra.mxu0 0.0
    %260 = vmatprep.subr.mxu0 0.0
    %261 = vmatpush1.msra.mxu0 0.0
    %262 = vmatprep.mubr.f32.mxu0 0.0
    %263 = vmatmul.mubr.f32.gmra.mrb[0].mxu0 %v106
    %v264 = vpop.f32.mrb[0].mxu0
    %v265 = vadd.f32 0.0, %v264
    %v266 = vpop.f32.mrb[0].mxu0
    %267 = vmatprep.mubr.f32.mxu0 0.0
    %268 = vmatmul.mubr.f32.gmra.mrb[0].mxu0 %v109
    %v269 = vpop.f32.mrb[0].mxu0
    %v270 = vadd.f32 0.0, %v269
    %v271 = vpop.f32.mrb[0].mxu0
    %272 = vdwg.mxu0
    %v273 = vlaneseq
    %v274 = vshrl.u32 %v273, 7
    %v275 = vsub.s32 0, %v274
    %v276 = vrot.slane %v57, %v275
    %v277 = vadd.f32 %v188, %v276
    %v278 = vadd.f32 %v194, %v276
    %v279 = vlaneseq
    %v280 = vshrl.u32 %v279, 7
    %v281 = vsub.s32 1, %v280
    %v282 = vrot.slane %v57, %v281
    %v283 = vadd.f32 %v190, %v282
    %v284 = vadd.f32 %v196, %v282
    %v285 = vlaneseq
    %v286 = vshrl.u32 %v285, 7
    %v287 = vsub.s32 2, %v286
    %v288 = vrot.slane %v57, %v287
    %v289 = vadd.f32 %v265, %v288
    %v290 = vadd.f32 %v270, %v288
    %293 = vrot.lane.b32.xlu0 %v277, 96
    %v294 = vpop.permute.xlu0 %293
    %295 = vrot.lane.b32.xlu0 %v278, 96
    %v296 = vpop.permute.xlu0 %295
    %297 = vrot.lane.b32.xlu0 %v277, 64
    %v298 = vpop.permute.xlu0 %297
    %299 = vrot.lane.b32.xlu0 %v278, 64
    %v300 = vpop.permute.xlu0 %299
    %301 = vrot.lane.b32.xlu0 %v277, 32
    %v302 = vpop.permute.xlu0 %301
    %303 = vrot.lane.b32.xlu0 %v278, 32
    %v304 = vpop.permute.xlu0 %303
    %307 = vrot.lane.b32.xlu0 %v283, 96
    %v308 = vpop.permute.xlu0 %307
    %309 = vrot.lane.b32.xlu0 %v284, 96
    %v310 = vpop.permute.xlu0 %309
    %311 = vrot.lane.b32.xlu0 %v283, 64
    %v312 = vpop.permute.xlu0 %311
    %313 = vrot.lane.b32.xlu0 %v284, 64
    %v314 = vpop.permute.xlu0 %313
    %315 = vrot.lane.b32.xlu0 %v283, 32
    %v316 = vpop.permute.xlu0 %315
    %317 = vrot.lane.b32.xlu0 %v284, 32
    %v318 = vpop.permute.xlu0 %317
    %321 = vrot.lane.b32.xlu0 %v289, 96
    %v322 = vpop.permute.xlu0 %321
    %323 = vrot.lane.b32.xlu0 %v290, 96
    %v324 = vpop.permute.xlu0 %323
    %327 = vrot.lane.b32.xlu0 %v289, 64
    %v328 = vpop.permute.xlu0 %327
    %329 = vrot.lane.b32.xlu0 %v290, 64
    %v330 = vpop.permute.xlu0 %329
    %333 = vrot.lane.b32.xlu0 %v289, 32
    %v334 = vpop.permute.xlu0 %333
    %335 = vrot.lane.b32.xlu0 %v290, 32
    %v336 = vpop.permute.xlu0 %335
    %vm339 = vcmask 261120
    %v340 = vsel %vm339, %v277, 0
    %v342 = vsel %vm339, %v283, 0
    %344 = vmatprep.subr.mxu0 0.0
    %345 = vmatpush1.xpose.msra.mxu0 %v342
    %346 = vmatprep.subr.mxu0 0.0
    %347 = vmatpush1.xpose.msra.mxu0 0.0
    %348 = vmatprep.subr.mxu0 0.0
    %349 = vmatpush1.xpose.msra.mxu0 0.0
    %350 = vmatprep.subr.mxu0 0.0
    %351 = vmatpush1.xpose.msra.mxu0 0.0
    %352 = vmatprep.subr.mxu0 0.0
    %353 = vmatpush1.xpose.msra.mxu0 0.0
    %354 = vmatprep.subr.mxu0 0.0
    %355 = vmatpush1.xpose.msra.mxu0 0.0
    %356 = vmatprep.subr.mxu0 0.0
    %357 = vmatpush1.xpose.msra.mxu0 0.0
    %358 = vmatprep.subr.mxu0 0.0
    %359 = vmatpush1.xpose.msra.mxu0 0.0
    %360 = vmatprep.subr.mxu0 0.0
    %361 = vmatpush1.xpose.msra.mxu0 0.0
    %362 = vmatprep.subr.mxu0 0.0
    %363 = vmatpush1.xpose.msra.mxu0 0.0
    %364 = vmatprep.subr.mxu0 0.0
    %365 = vmatpush1.xpose.msra.mxu0 0.0
    %366 = vmatprep.subr.mxu0 0.0
    %367 = vmatpush1.xpose.msra.mxu0 0.0
    %368 = vmatprep.subr.mxu0 0.0
    %369 = vmatpush1.xpose.msra.mxu0 0.0
    %370 = vmatprep.subr.mxu0 0.0
    %371 = vmatpush1.xpose.msra.mxu0 0.0
    %372 = vmatprep.subr.mxu0 0.0
    %373 = vmatpush1.xpose.msra.mxu0 0.0
    %374 = vmatprep.subr.mxu0 0.0
    %375 = vmatpush1.xpose.msra.mxu0 0.0
    %376 = vmatprep.subr.mxu0 0.0
    %377 = vmatpush1.xpose.msra.mxu0 0.0
    %378 = vmatprep.subr.mxu0 0.0
    %379 = vmatpush1.xpose.msra.mxu0 0.0
    %380 = vmatprep.subr.mxu0 0.0
    %381 = vmatpush1.xpose.msra.mxu0 0.0
    %382 = vmatprep.subr.mxu0 0.0
    %383 = vmatpush1.xpose.msra.mxu0 0.0
    %384 = vmatprep.subr.mxu0 0.0
    %385 = vmatpush1.xpose.msra.mxu0 0.0
    %386 = vmatprep.subr.mxu0 0.0
    %387 = vmatpush1.xpose.msra.mxu0 0.0
    %388 = vmatprep.subr.mxu0 0.0
    %389 = vmatpush1.xpose.msra.mxu0 0.0
    %390 = vmatprep.subr.mxu0 0.0
    %391 = vmatpush1.xpose.msra.mxu0 0.0
    %392 = vmatprep.subr.mxu0 0.0
    %393 = vmatpush1.xpose.msra.mxu0 0.0
    %394 = vmatprep.subr.mxu0 0.0
    %395 = vmatpush1.xpose.msra.mxu0 0.0
    %396 = vmatprep.subr.mxu0 0.0
    %397 = vmatpush1.xpose.msra.mxu0 0.0
    %398 = vmatprep.subr.mxu0 0.0
    %399 = vmatpush1.xpose.msra.mxu0 0.0
    %400 = vmatprep.subr.mxu0 0.0
    %401 = vmatpush1.xpose.msra.mxu0 0.0
    %402 = vmatprep.subr.mxu0 0.0
    %403 = vmatpush1.xpose.msra.mxu0 0.0
    %404 = vmatprep.subr.mxu0 0.0
    %405 = vmatpush1.xpose.msra.mxu0 0.0
    %406 = vmatprep.subr.mxu0 0.0
    %407 = vmatpush1.xpose.msra.mxu0 0.0
    %408 = vmatprep.mubr.f32.mxu0 0.0
    %409 = vmatmul.mubr.f32.gmra.mrb[0].mxu0 %v340
    %v410 = vpop.f32.mrb[0].mxu0
    %v411 = vadd.f32 0.0, %v410
    %v412 = vpop.f32.mrb[0].mxu0
    %413 = vdwg.mxu0
    %v414 = vsel %vm339, %v278, 0
    %v416 = vsel %vm339, %v284, 0
    %418 = vmatprep.subr.mxu0 0.0
    %419 = vmatpush1.xpose.msra.mxu0 %v416
    %420 = vmatprep.subr.mxu0 0.0
    %421 = vmatpush1.xpose.msra.mxu0 0.0
    %422 = vmatprep.subr.mxu0 0.0
    %423 = vmatpush1.xpose.msra.mxu0 0.0
    %424 = vmatprep.subr.mxu0 0.0
    %425 = vmatpush1.xpose.msra.mxu0 0.0
    %426 = vmatprep.subr.mxu0 0.0
    %427 = vmatpush1.xpose.msra.mxu0 0.0
    %428 = vmatprep.subr.mxu0 0.0
    %429 = vmatpush1.xpose.msra.mxu0 0.0
    %430 = vmatprep.subr.mxu0 0.0
    %431 = vmatpush1.xpose.msra.mxu0 0.0
    %432 = vmatprep.subr.mxu0 0.0
    %433 = vmatpush1.xpose.msra.mxu0 0.0
    %434 = vmatprep.subr.mxu0 0.0
    %435 = vmatpush1.xpose.msra.mxu0 0.0
    %436 = vmatprep.subr.mxu0 0.0
    %437 = vmatpush1.xpose.msra.mxu0 0.0
    %438 = vmatprep.subr.mxu0 0.0
    %439 = vmatpush1.xpose.msra.mxu0 0.0
    %440 = vmatprep.subr.mxu0 0.0
    %441 = vmatpush1.xpose.msra.mxu0 0.0
    %442 = vmatprep.subr.mxu0 0.0
    %443 = vmatpush1.xpose.msra.mxu0 0.0
    %444 = vmatprep.subr.mxu0 0.0
    %445 = vmatpush1.xpose.msra.mxu0 0.0
    %446 = vmatprep.subr.mxu0 0.0
    %447 = vmatpush1.xpose.msra.mxu0 0.0
    %448 = vmatprep.subr.mxu0 0.0
    %449 = vmatpush1.xpose.msra.mxu0 0.0
    %450 = vmatprep.subr.mxu0 0.0
    %451 = vmatpush1.xpose.msra.mxu0 0.0
    %452 = vmatprep.subr.mxu0 0.0
    %453 = vmatpush1.xpose.msra.mxu0 0.0
    %454 = vmatprep.subr.mxu0 0.0
    %455 = vmatpush1.xpose.msra.mxu0 0.0
    %456 = vmatprep.subr.mxu0 0.0
    %457 = vmatpush1.xpose.msra.mxu0 0.0
    %458 = vmatprep.subr.mxu0 0.0
    %459 = vmatpush1.xpose.msra.mxu0 0.0
    %460 = vmatprep.subr.mxu0 0.0
    %461 = vmatpush1.xpose.msra.mxu0 0.0
    %462 = vmatprep.subr.mxu0 0.0
    %463 = vmatpush1.xpose.msra.mxu0 0.0
    %464 = vmatprep.subr.mxu0 0.0
    %465 = vmatpush1.xpose.msra.mxu0 0.0
    %466 = vmatprep.subr.mxu0 0.0
    %467 = vmatpush1.xpose.msra.mxu0 0.0
    %468 = vmatprep.subr.mxu0 0.0
    %469 = vmatpush1.xpose.msra.mxu0 0.0
    %470 = vmatprep.subr.mxu0 0.0
    %471 = vmatpush1.xpose.msra.mxu0 0.0
    %472 = vmatprep.subr.mxu0 0.0
    %473 = vmatpush1.xpose.msra.mxu0 0.0
    %474 = vmatprep.subr.mxu0 0.0
    %475 = vmatpush1.xpose.msra.mxu0 0.0
    %476 = vmatprep.subr.mxu0 0.0
    %477 = vmatpush1.xpose.msra.mxu0 0.0
    %478 = vmatprep.subr.mxu0 0.0
    %479 = vmatpush1.xpose.msra.mxu0 0.0
    %480 = vmatprep.subr.mxu0 0.0
    %481 = vmatpush1.xpose.msra.mxu0 0.0
    %482 = vmatprep.mubr.f32.mxu0 0.0
    %483 = vmatmul.mubr.f32.gmra.mrb[0].mxu0 %v414
    %v484 = vpop.f32.mrb[0].mxu0
    %v485 = vadd.f32 0.0, %v484
    %v486 = vpop.f32.mrb[0].mxu0
    %487 = vdwg.mxu0
    %v488 = vsel %vm339, %v294, 0
    %v490 = vsel %vm339, %v308, 0
    %492 = vmatprep.subr.mxu0 0.0
    %493 = vmatpush1.xpose.msra.mxu0 %v490
    %494 = vmatprep.subr.mxu0 0.0
    %495 = vmatpush1.xpose.msra.mxu0 0.0
    %496 = vmatprep.subr.mxu0 0.0
    %497 = vmatpush1.xpose.msra.mxu0 0.0
    %498 = vmatprep.subr.mxu0 0.0
    %499 = vmatpush1.xpose.msra.mxu0 0.0
    %500 = vmatprep.subr.mxu0 0.0
    %501 = vmatpush1.xpose.msra.mxu0 0.0
    %502 = vmatprep.subr.mxu0 0.0
    %503 = vmatpush1.xpose.msra.mxu0 0.0
    %504 = vmatprep.subr.mxu0 0.0
    %505 = vmatpush1.xpose.msra.mxu0 0.0
    %506 = vmatprep.subr.mxu0 0.0
    %507 = vmatpush1.xpose.msra.mxu0 0.0
    %508 = vmatprep.subr.mxu0 0.0
    %509 = vmatpush1.xpose.msra.mxu0 0.0
    %510 = vmatprep.subr.mxu0 0.0
    %511 = vmatpush1.xpose.msra.mxu0 0.0
    %512 = vmatprep.subr.mxu0 0.0
    %513 = vmatpush1.xpose.msra.mxu0 0.0
    %514 = vmatprep.subr.mxu0 0.0
    %515 = vmatpush1.xpose.msra.mxu0 0.0
    %516 = vmatprep.subr.mxu0 0.0
    %517 = vmatpush1.xpose.msra.mxu0 0.0
    %518 = vmatprep.subr.mxu0 0.0
    %519 = vmatpush1.xpose.msra.mxu0 0.0
    %520 = vmatprep.subr.mxu0 0.0
    %521 = vmatpush1.xpose.msra.mxu0 0.0
    %522 = vmatprep.subr.mxu0 0.0
    %523 = vmatpush1.xpose.msra.mxu0 0.0
    %524 = vmatprep.subr.mxu0 0.0
    %525 = vmatpush1.xpose.msra.mxu0 0.0
    %526 = vmatprep.subr.mxu0 0.0
    %527 = vmatpush1.xpose.msra.mxu0 0.0
    %528 = vmatprep.subr.mxu0 0.0
    %529 = vmatpush1.xpose.msra.mxu0 0.0
    %530 = vmatprep.subr.mxu0 0.0
    %531 = vmatpush1.xpose.msra.mxu0 0.0
    %532 = vmatprep.subr.mxu0 0.0
    %533 = vmatpush1.xpose.msra.mxu0 0.0
    %534 = vmatprep.subr.mxu0 0.0
    %535 = vmatpush1.xpose.msra.mxu0 0.0
    %536 = vmatprep.subr.mxu0 0.0
    %537 = vmatpush1.xpose.msra.mxu0 0.0
    %538 = vmatprep.subr.mxu0 0.0
    %539 = vmatpush1.xpose.msra.mxu0 0.0
    %540 = vmatprep.subr.mxu0 0.0
    %541 = vmatpush1.xpose.msra.mxu0 0.0
    %542 = vmatprep.subr.mxu0 0.0
    %543 = vmatpush1.xpose.msra.mxu0 0.0
    %544 = vmatprep.subr.mxu0 0.0
    %545 = vmatpush1.xpose.msra.mxu0 0.0
    %546 = vmatprep.subr.mxu0 0.0
    %547 = vmatpush1.xpose.msra.mxu0 0.0
    %548 = vmatprep.subr.mxu0 0.0
    %549 = vmatpush1.xpose.msra.mxu0 0.0
    %550 = vmatprep.subr.mxu0 0.0
    %551 = vmatpush1.xpose.msra.mxu0 0.0
    %552 = vmatprep.subr.mxu0 0.0
    %553 = vmatpush1.xpose.msra.mxu0 0.0
    %554 = vmatprep.subr.mxu0 0.0
    %555 = vmatpush1.xpose.msra.mxu0 0.0
    %556 = vmatprep.mubr.f32.mxu0 0.0
    %557 = vmatmul.mubr.f32.gmra.mrb[0].mxu0 %v488
    %v558 = vpop.f32.mrb[0].mxu0
    %v559 = vadd.f32 0.0, %v558
    %v560 = vpop.f32.mrb[0].mxu0
    %561 = vdwg.mxu0
    %v562 = vsel %vm339, %v296, 0
    %v564 = vsel %vm339, %v310, 0
    %566 = vmatprep.subr.mxu0 0.0
    %567 = vmatpush1.xpose.msra.mxu0 %v564
    %568 = vmatprep.subr.mxu0 0.0
    %569 = vmatpush1.xpose.msra.mxu0 0.0
    %570 = vmatprep.subr.mxu0 0.0
    %571 = vmatpush1.xpose.msra.mxu0 0.0
    %572 = vmatprep.subr.mxu0 0.0
    %573 = vmatpush1.xpose.msra.mxu0 0.0
    %574 = vmatprep.subr.mxu0 0.0
    %575 = vmatpush1.xpose.msra.mxu0 0.0
    %576 = vmatprep.subr.mxu0 0.0
    %577 = vmatpush1.xpose.msra.mxu0 0.0
    %578 = vmatprep.subr.mxu0 0.0
    %579 = vmatpush1.xpose.msra.mxu0 0.0
    %580 = vmatprep.subr.mxu0 0.0
    %581 = vmatpush1.xpose.msra.mxu0 0.0
    %582 = vmatprep.subr.mxu0 0.0
    %583 = vmatpush1.xpose.msra.mxu0 0.0
    %584 = vmatprep.subr.mxu0 0.0
    %585 = vmatpush1.xpose.msra.mxu0 0.0
    %586 = vmatprep.subr.mxu0 0.0
    %587 = vmatpush1.xpose.msra.mxu0 0.0
    %588 = vmatprep.subr.mxu0 0.0
    %589 = vmatpush1.xpose.msra.mxu0 0.0
    %590 = vmatprep.subr.mxu0 0.0
    %591 = vmatpush1.xpose.msra.mxu0 0.0
    %592 = vmatprep.subr.mxu0 0.0
    %593 = vmatpush1.xpose.msra.mxu0 0.0
    %594 = vmatprep.subr.mxu0 0.0
    %595 = vmatpush1.xpose.msra.mxu0 0.0
    %596 = vmatprep.subr.mxu0 0.0
    %597 = vmatpush1.xpose.msra.mxu0 0.0
    %598 = vmatprep.subr.mxu0 0.0
    %599 = vmatpush1.xpose.msra.mxu0 0.0
    %600 = vmatprep.subr.mxu0 0.0
    %601 = vmatpush1.xpose.msra.mxu0 0.0
    %602 = vmatprep.subr.mxu0 0.0
    %603 = vmatpush1.xpose.msra.mxu0 0.0
    %604 = vmatprep.subr.mxu0 0.0
    %605 = vmatpush1.xpose.msra.mxu0 0.0
    %606 = vmatprep.subr.mxu0 0.0
    %607 = vmatpush1.xpose.msra.mxu0 0.0
    %608 = vmatprep.subr.mxu0 0.0
    %609 = vmatpush1.xpose.msra.mxu0 0.0
    %610 = vmatprep.subr.mxu0 0.0
    %611 = vmatpush1.xpose.msra.mxu0 0.0
    %612 = vmatprep.subr.mxu0 0.0
    %613 = vmatpush1.xpose.msra.mxu0 0.0
    %614 = vmatprep.subr.mxu0 0.0
    %615 = vmatpush1.xpose.msra.mxu0 0.0
    %616 = vmatprep.subr.mxu0 0.0
    %617 = vmatpush1.xpose.msra.mxu0 0.0
    %618 = vmatprep.subr.mxu0 0.0
    %619 = vmatpush1.xpose.msra.mxu0 0.0
    %620 = vmatprep.subr.mxu0 0.0
    %621 = vmatpush1.xpose.msra.mxu0 0.0
    %622 = vmatprep.subr.mxu0 0.0
    %623 = vmatpush1.xpose.msra.mxu0 0.0
    %624 = vmatprep.subr.mxu0 0.0
    %625 = vmatpush1.xpose.msra.mxu0 0.0
    %626 = vmatprep.subr.mxu0 0.0
    %627 = vmatpush1.xpose.msra.mxu0 0.0
    %628 = vmatprep.subr.mxu0 0.0
    %629 = vmatpush1.xpose.msra.mxu0 0.0
    %630 = vmatprep.mubr.f32.mxu0 0.0
    %631 = vmatmul.mubr.f32.gmra.mrb[0].mxu0 %v562
    %v632 = vpop.f32.mrb[0].mxu0
    %v633 = vadd.f32 0.0, %v632
    %v634 = vpop.f32.mrb[0].mxu0
    %635 = vdwg.mxu0
    %v636 = vsel %vm339, %v298, 0
    %v638 = vsel %vm339, %v312, 0
    %640 = vmatprep.subr.mxu0 0.0
    %641 = vmatpush1.xpose.msra.mxu0 %v638
    %642 = vmatprep.subr.mxu0 0.0
    %643 = vmatpush1.xpose.msra.mxu0 0.0
    %644 = vmatprep.subr.mxu0 0.0
    %645 = vmatpush1.xpose.msra.mxu0 0.0
    %646 = vmatprep.subr.mxu0 0.0
    %647 = vmatpush1.xpose.msra.mxu0 0.0
    %648 = vmatprep.subr.mxu0 0.0
    %649 = vmatpush1.xpose.msra.mxu0 0.0
    %650 = vmatprep.subr.mxu0 0.0
    %651 = vmatpush1.xpose.msra.mxu0 0.0
    %652 = vmatprep.subr.mxu0 0.0
    %653 = vmatpush1.xpose.msra.mxu0 0.0
    %654 = vmatprep.subr.mxu0 0.0
    %655 = vmatpush1.xpose.msra.mxu0 0.0
    %656 = vmatprep.subr.mxu0 0.0
    %657 = vmatpush1.xpose.msra.mxu0 0.0
    %658 = vmatprep.subr.mxu0 0.0
    %659 = vmatpush1.xpose.msra.mxu0 0.0
    %660 = vmatprep.subr.mxu0 0.0
    %661 = vmatpush1.xpose.msra.mxu0 0.0
    %662 = vmatprep.subr.mxu0 0.0
    %663 = vmatpush1.xpose.msra.mxu0 0.0
    %664 = vmatprep.subr.mxu0 0.0
    %665 = vmatpush1.xpose.msra.mxu0 0.0
    %666 = vmatprep.subr.mxu0 0.0
    %667 = vmatpush1.xpose.msra.mxu0 0.0
    %668 = vmatprep.subr.mxu0 0.0
    %669 = vmatpush1.xpose.msra.mxu0 0.0
    %670 = vmatprep.subr.mxu0 0.0
    %671 = vmatpush1.xpose.msra.mxu0 0.0
    %672 = vmatprep.subr.mxu0 0.0
    %673 = vmatpush1.xpose.msra.mxu0 0.0
    %674 = vmatprep.subr.mxu0 0.0
    %675 = vmatpush1.xpose.msra.mxu0 0.0
    %676 = vmatprep.subr.mxu0 0.0
    %677 = vmatpush1.xpose.msra.mxu0 0.0
    %678 = vmatprep.subr.mxu0 0.0
    %679 = vmatpush1.xpose.msra.mxu0 0.0
    %680 = vmatprep.subr.mxu0 0.0
    %681 = vmatpush1.xpose.msra.mxu0 0.0
    %682 = vmatprep.subr.mxu0 0.0
    %683 = vmatpush1.xpose.msra.mxu0 0.0
    %684 = vmatprep.subr.mxu0 0.0
    %685 = vmatpush1.xpose.msra.mxu0 0.0
    %686 = vmatprep.subr.mxu0 0.0
    %687 = vmatpush1.xpose.msra.mxu0 0.0
    %688 = vmatprep.subr.mxu0 0.0
    %689 = vmatpush1.xpose.msra.mxu0 0.0
    %690 = vmatprep.subr.mxu0 0.0
    %691 = vmatpush1.xpose.msra.mxu0 0.0
    %692 = vmatprep.subr.mxu0 0.0
    %693 = vmatpush1.xpose.msra.mxu0 0.0
    %694 = vmatprep.subr.mxu0 0.0
    %695 = vmatpush1.xpose.msra.mxu0 0.0
    %696 = vmatprep.subr.mxu0 0.0
    %697 = vmatpush1.xpose.msra.mxu0 0.0
    %698 = vmatprep.subr.mxu0 0.0
    %699 = vmatpush1.xpose.msra.mxu0 0.0
    %700 = vmatprep.subr.mxu0 0.0
    %701 = vmatpush1.xpose.msra.mxu0 0.0
    %702 = vmatprep.subr.mxu0 0.0
    %703 = vmatpush1.xpose.msra.mxu0 0.0
    %704 = vmatprep.mubr.f32.mxu0 0.0
    %705 = vmatmul.mubr.f32.gmra.mrb[0].mxu0 %v636
    %v706 = vpop.f32.mrb[0].mxu0
    %v707 = vadd.f32 0.0, %v706
    %v708 = vpop.f32.mrb[0].mxu0
    %709 = vdwg.mxu0
    %v710 = vsel %vm339, %v300, 0
    %v712 = vsel %vm339, %v314, 0
    %714 = vmatprep.subr.mxu0 0.0
    %715 = vmatpush1.xpose.msra.mxu0 %v712
    %716 = vmatprep.subr.mxu0 0.0
    %717 = vmatpush1.xpose.msra.mxu0 0.0
    %718 = vmatprep.subr.mxu0 0.0
    %719 = vmatpush1.xpose.msra.mxu0 0.0
    %720 = vmatprep.subr.mxu0 0.0
    %721 = vmatpush1.xpose.msra.mxu0 0.0
    %722 = vmatprep.subr.mxu0 0.0
    %723 = vmatpush1.xpose.msra.mxu0 0.0
    %724 = vmatprep.subr.mxu0 0.0
    %725 = vmatpush1.xpose.msra.mxu0 0.0
    %726 = vmatprep.subr.mxu0 0.0
    %727 = vmatpush1.xpose.msra.mxu0 0.0
    %728 = vmatprep.subr.mxu0 0.0
    %729 = vmatpush1.xpose.msra.mxu0 0.0
    %730 = vmatprep.subr.mxu0 0.0
    %731 = vmatpush1.xpose.msra.mxu0 0.0
    %732 = vmatprep.subr.mxu0 0.0
    %733 = vmatpush1.xpose.msra.mxu0 0.0
    %734 = vmatprep.subr.mxu0 0.0
    %735 = vmatpush1.xpose.msra.mxu0 0.0
    %736 = vmatprep.subr.mxu0 0.0
    %737 = vmatpush1.xpose.msra.mxu0 0.0
    %738 = vmatprep.subr.mxu0 0.0
    %739 = vmatpush1.xpose.msra.mxu0 0.0
    %740 = vmatprep.subr.mxu0 0.0
    %741 = vmatpush1.xpose.msra.mxu0 0.0
    %742 = vmatprep.subr.mxu0 0.0
    %743 = vmatpush1.xpose.msra.mxu0 0.0
    %744 = vmatprep.subr.mxu0 0.0
    %745 = vmatpush1.xpose.msra.mxu0 0.0
    %746 = vmatprep.subr.mxu0 0.0
    %747 = vmatpush1.xpose.msra.mxu0 0.0
    %748 = vmatprep.subr.mxu0 0.0
    %749 = vmatpush1.xpose.msra.mxu0 0.0
    %750 = vmatprep.subr.mxu0 0.0
    %751 = vmatpush1.xpose.msra.mxu0 0.0
    %752 = vmatprep.subr.mxu0 0.0
    %753 = vmatpush1.xpose.msra.mxu0 0.0
    %754 = vmatprep.subr.mxu0 0.0
    %755 = vmatpush1.xpose.msra.mxu0 0.0
    %756 = vmatprep.subr.mxu0 0.0
    %757 = vmatpush1.xpose.msra.mxu0 0.0
    %758 = vmatprep.subr.mxu0 0.0
    %759 = vmatpush1.xpose.msra.mxu0 0.0
    %760 = vmatprep.subr.mxu0 0.0
    %761 = vmatpush1.xpose.msra.mxu0 0.0
    %762 = vmatprep.subr.mxu0 0.0
    %763 = vmatpush1.xpose.msra.mxu0 0.0
    %764 = vmatprep.subr.mxu0 0.0
    %765 = vmatpush1.xpose.msra.mxu0 0.0
    %766 = vmatprep.subr.mxu0 0.0
    %767 = vmatpush1.xpose.msra.mxu0 0.0
    %768 = vmatprep.subr.mxu0 0.0
    %769 = vmatpush1.xpose.msra.mxu0 0.0
    %770 = vmatprep.subr.mxu0 0.0
    %771 = vmatpush1.xpose.msra.mxu0 0.0
    %772 = vmatprep.subr.mxu0 0.0
    %773 = vmatpush1.xpose.msra.mxu0 0.0
    %774 = vmatprep.subr.mxu0 0.0
    %775 = vmatpush1.xpose.msra.mxu0 0.0
    %776 = vmatprep.subr.mxu0 0.0
    %777 = vmatpush1.xpose.msra.mxu0 0.0
    %778 = vmatprep.mubr.f32.mxu0 0.0
    %779 = vmatmul.mubr.f32.gmra.mrb[0].mxu0 %v710
    %v780 = vpop.f32.mrb[0].mxu0
    %v781 = vadd.f32 0.0, %v780
    %v782 = vpop.f32.mrb[0].mxu0
    %783 = vdwg.mxu0
    %v784 = vsel %vm339, %v302, 0
    %v786 = vsel %vm339, %v316, 0
    %788 = vmatprep.subr.mxu0 0.0
    %789 = vmatpush1.xpose.msra.mxu0 %v786
    %790 = vmatprep.subr.mxu0 0.0
    %791 = vmatpush1.xpose.msra.mxu0 0.0
    %792 = vmatprep.subr.mxu0 0.0
    %793 = vmatpush1.xpose.msra.mxu0 0.0
    %794 = vmatprep.subr.mxu0 0.0
    %795 = vmatpush1.xpose.msra.mxu0 0.0
    %796 = vmatprep.subr.mxu0 0.0
    %797 = vmatpush1.xpose.msra.mxu0 0.0
    %798 = vmatprep.subr.mxu0 0.0
    %799 = vmatpush1.xpose.msra.mxu0 0.0
    %800 = vmatprep.subr.mxu0 0.0
    %801 = vmatpush1.xpose.msra.mxu0 0.0
    %802 = vmatprep.subr.mxu0 0.0
    %803 = vmatpush1.xpose.msra.mxu0 0.0
    %804 = vmatprep.subr.mxu0 0.0
    %805 = vmatpush1.xpose.msra.mxu0 0.0
    %806 = vmatprep.subr.mxu0 0.0
    %807 = vmatpush1.xpose.msra.mxu0 0.0
    %808 = vmatprep.subr.mxu0 0.0
    %809 = vmatpush1.xpose.msra.mxu0 0.0
    %810 = vmatprep.subr.mxu0 0.0
    %811 = vmatpush1.xpose.msra.mxu0 0.0
    %812 = vmatprep.subr.mxu0 0.0
    %813 = vmatpush1.xpose.msra.mxu0 0.0
    %814 = vmatprep.subr.mxu0 0.0
    %815 = vmatpush1.xpose.msra.mxu0 0.0
    %816 = vmatprep.subr.mxu0 0.0
    %817 = vmatpush1.xpose.msra.mxu0 0.0
    %818 = vmatprep.subr.mxu0 0.0
    %819 = vmatpush1.xpose.msra.mxu0 0.0
    %820 = vmatprep.subr.mxu0 0.0
    %821 = vmatpush1.xpose.msra.mxu0 0.0
    %822 = vmatprep.subr.mxu0 0.0
    %823 = vmatpush1.xpose.msra.mxu0 0.0
    %824 = vmatprep.subr.mxu0 0.0
    %825 = vmatpush1.xpose.msra.mxu0 0.0
    %826 = vmatprep.subr.mxu0 0.0
    %827 = vmatpush1.xpose.msra.mxu0 0.0
    %828 = vmatprep.subr.mxu0 0.0
    %829 = vmatpush1.xpose.msra.mxu0 0.0
    %830 = vmatprep.subr.mxu0 0.0
    %831 = vmatpush1.xpose.msra.mxu0 0.0
    %832 = vmatprep.subr.mxu0 0.0
    %833 = vmatpush1.xpose.msra.mxu0 0.0
    %834 = vmatprep.subr.mxu0 0.0
    %835 = vmatpush1.xpose.msra.mxu0 0.0
    %836 = vmatprep.subr.mxu0 0.0
    %837 = vmatpush1.xpose.msra.mxu0 0.0
    %838 = vmatprep.subr.mxu0 0.0
    %839 = vmatpush1.xpose.msra.mxu0 0.0
    %840 = vmatprep.subr.mxu0 0.0
    %841 = vmatpush1.xpose.msra.mxu0 0.0
    %842 = vmatprep.subr.mxu0 0.0
    %843 = vmatpush1.xpose.msra.mxu0 0.0
    %844 = vmatprep.subr.mxu0 0.0
    %845 = vmatpush1.xpose.msra.mxu0 0.0
    %846 = vmatprep.subr.mxu0 0.0
    %847 = vmatpush1.xpose.msra.mxu0 0.0
    %848 = vmatprep.subr.mxu0 0.0
    %849 = vmatpush1.xpose.msra.mxu0 0.0
    %850 = vmatprep.subr.mxu0 0.0
    %851 = vmatpush1.xpose.msra.mxu0 0.0
    %852 = vmatprep.mubr.f32.mxu0 0.0
    %853 = vmatmul.mubr.f32.gmra.mrb[0].mxu0 %v784
    %v854 = vpop.f32.mrb[0].mxu0
    %v855 = vadd.f32 0.0, %v854
    %v856 = vpop.f32.mrb[0].mxu0
    %857 = vdwg.mxu0
    %v858 = vsel %vm339, %v304, 0
    %v860 = vsel %vm339, %v318, 0
    %862 = vmatprep.subr.mxu0 0.0
    %863 = vmatpush1.xpose.msra.mxu0 %v860
    %864 = vmatprep.subr.mxu0 0.0
    %865 = vmatpush1.xpose.msra.mxu0 0.0
    %866 = vmatprep.subr.mxu0 0.0
    %867 = vmatpush1.xpose.msra.mxu0 0.0
    %868 = vmatprep.subr.mxu0 0.0
    %869 = vmatpush1.xpose.msra.mxu0 0.0
    %870 = vmatprep.subr.mxu0 0.0
    %871 = vmatpush1.xpose.msra.mxu0 0.0
    %872 = vmatprep.subr.mxu0 0.0
    %873 = vmatpush1.xpose.msra.mxu0 0.0
    %874 = vmatprep.subr.mxu0 0.0
    %875 = vmatpush1.xpose.msra.mxu0 0.0
    %876 = vmatprep.subr.mxu0 0.0
    %877 = vmatpush1.xpose.msra.mxu0 0.0
    %878 = vmatprep.subr.mxu0 0.0
    %879 = vmatpush1.xpose.msra.mxu0 0.0
    %880 = vmatprep.subr.mxu0 0.0
    %881 = vmatpush1.xpose.msra.mxu0 0.0
    %882 = vmatprep.subr.mxu0 0.0
    %883 = vmatpush1.xpose.msra.mxu0 0.0
    %884 = vmatprep.subr.mxu0 0.0
    %885 = vmatpush1.xpose.msra.mxu0 0.0
    %886 = vmatprep.subr.mxu0 0.0
    %887 = vmatpush1.xpose.msra.mxu0 0.0
    %888 = vmatprep.subr.mxu0 0.0
    %889 = vmatpush1.xpose.msra.mxu0 0.0
    %890 = vmatprep.subr.mxu0 0.0
    %891 = vmatpush1.xpose.msra.mxu0 0.0
    %892 = vmatprep.subr.mxu0 0.0
    %893 = vmatpush1.xpose.msra.mxu0 0.0
    %894 = vmatprep.subr.mxu0 0.0
    %895 = vmatpush1.xpose.msra.mxu0 0.0
    %896 = vmatprep.subr.mxu0 0.0
    %897 = vmatpush1.xpose.msra.mxu0 0.0
    %898 = vmatprep.subr.mxu0 0.0
    %899 = vmatpush1.xpose.msra.mxu0 0.0
    %900 = vmatprep.subr.mxu0 0.0
    %901 = vmatpush1.xpose.msra.mxu0 0.0
    %902 = vmatprep.subr.mxu0 0.0
    %903 = vmatpush1.xpose.msra.mxu0 0.0
    %904 = vmatprep.subr.mxu0 0.0
    %905 = vmatpush1.xpose.msra.mxu0 0.0
    %906 = vmatprep.subr.mxu0 0.0
    %907 = vmatpush1.xpose.msra.mxu0 0.0
    %908 = vmatprep.subr.mxu0 0.0
    %909 = vmatpush1.xpose.msra.mxu0 0.0
    %910 = vmatprep.subr.mxu0 0.0
    %911 = vmatpush1.xpose.msra.mxu0 0.0
    %912 = vmatprep.subr.mxu0 0.0
    %913 = vmatpush1.xpose.msra.mxu0 0.0
    %914 = vmatprep.subr.mxu0 0.0
    %915 = vmatpush1.xpose.msra.mxu0 0.0
    %916 = vmatprep.subr.mxu0 0.0
    %917 = vmatpush1.xpose.msra.mxu0 0.0
    %918 = vmatprep.subr.mxu0 0.0
    %919 = vmatpush1.xpose.msra.mxu0 0.0
    %920 = vmatprep.subr.mxu0 0.0
    %921 = vmatpush1.xpose.msra.mxu0 0.0
    %922 = vmatprep.subr.mxu0 0.0
    %923 = vmatpush1.xpose.msra.mxu0 0.0
    %924 = vmatprep.subr.mxu0 0.0
    %925 = vmatpush1.xpose.msra.mxu0 0.0
    %926 = vmatprep.mubr.f32.mxu0 0.0
    %927 = vmatmul.mubr.f32.gmra.mrb[0].mxu0 %v858
    %v928 = vpop.f32.mrb[0].mxu0
    %v929 = vadd.f32 0.0, %v928
    %v930 = vpop.f32.mrb[0].mxu0
    %931 = vdwg.mxu0
    %v932 = vmul.f32 %v411, 0.17677669
    %v933 = vmul.f32 %v485, 0.17677669
    %v934 = vmul.f32 %v559, 0.17677669
    %v935 = vmul.f32 %v633, 0.17677669
    %v936 = vmul.f32 %v707, 0.17677669
    %v937 = vmul.f32 %v781, 0.17677669
    %v938 = vmul.f32 %v855, 0.17677669
    %v939 = vmul.f32 %v929, 0.17677669
    %vm940 = vcmask 64512
    %v941 = vsel %vm940, %v932, -inf
    %942 = vmax.xlane.f32.xlu0 %v941
    %v943 = vpop.xlane.xlu0 %942
    %v944 = vsel %vm940, %v933, -inf
    %945 = vmax.xlane.f32.xlu0 %v944
    %v946 = vpop.xlane.xlu0 %945
    %v947 = vsel %vm940, %v934, -inf
    %948 = vmax.xlane.f32.xlu0 %v947
    %v949 = vpop.xlane.xlu0 %948
    %v950 = vsel %vm940, %v935, -inf
    %951 = vmax.xlane.f32.xlu0 %v950
    %v952 = vpop.xlane.xlu0 %951
    %v953 = vsel %vm940, %v936, -inf
    %954 = vmax.xlane.f32.xlu0 %v953
    %v955 = vpop.xlane.xlu0 %954
    %v956 = vsel %vm940, %v937, -inf
    %957 = vmax.xlane.f32.xlu0 %v956
    %v958 = vpop.xlane.xlu0 %957
    %v959 = vsel %vm940, %v938, -inf
    %960 = vmax.xlane.f32.xlu0 %v959
    %v961 = vpop.xlane.xlu0 %960
    %v962 = vsel %vm940, %v939, -inf
    %963 = vmax.xlane.f32.xlu0 %v962
    %v964 = vpop.xlane.xlu0 %963
    %v965 = vsub.f32 %v932, %v943
    %v966 = vsub.f32 %v933, %v946
    %v967 = vsub.f32 %v934, %v949
    %v968 = vsub.f32 %v935, %v952
    %v969 = vsub.f32 %v936, %v955
    %v970 = vsub.f32 %v937, %v958
    %v971 = vsub.f32 %v938, %v961
    %v972 = vsub.f32 %v939, %v964
    %v973 = vmul.f32 %v965, 1.442695
    %v974 = vpow.pop %v973
    %v975 = vmul.f32 %v966, 1.442695
    %v976 = vpow.pop %v975
    %v977 = vmul.f32 %v967, 1.442695
    %v978 = vpow.pop %v977
    %v979 = vmul.f32 %v968, 1.442695
    %v980 = vpow.pop %v979
    %v981 = vmul.f32 %v969, 1.442695
    %v982 = vpow.pop %v981
    %v983 = vmul.f32 %v970, 1.442695
    %v984 = vpow.pop %v983
    %v985 = vmul.f32 %v971, 1.442695
    %v986 = vpow.pop %v985
    %v987 = vmul.f32 %v972, 1.442695
    %v988 = vpow.pop %v987
    %v989 = vsel %vm940, %v974, 0.0
    %990 = vadd.xlane.f32.xlu0 %v989
    %v991 = vpop.xlane.xlu0 %990
    %v992 = vsel %vm940, %v976, 0.0
    %993 = vadd.xlane.f32.xlu0 %v992
    %v994 = vpop.xlane.xlu0 %993
    %v995 = vsel %vm940, %v978, 0.0
    %996 = vadd.xlane.f32.xlu0 %v995
    %v997 = vpop.xlane.xlu0 %996
    %v998 = vsel %vm940, %v980, 0.0
    %999 = vadd.xlane.f32.xlu0 %v998
    %v1000 = vpop.xlane.xlu0 %999
    %v1001 = vsel %vm940, %v982, 0.0
    %1002 = vadd.xlane.f32.xlu0 %v1001
    %v1003 = vpop.xlane.xlu0 %1002
    %v1004 = vsel %vm940, %v984, 0.0
    %1005 = vadd.xlane.f32.xlu0 %v1004
    %v1006 = vpop.xlane.xlu0 %1005
    %v1007 = vsel %vm940, %v986, 0.0
    %1008 = vadd.xlane.f32.xlu0 %v1007
    %v1009 = vpop.xlane.xlu0 %1008
    %v1010 = vsel %vm940, %v988, 0.0
    %1011 = vadd.xlane.f32.xlu0 %v1010
    %v1012 = vpop.xlane.xlu0 %1011
    %v1013 = vrcp.pop %v991
    %v1014 = vrcp.pop %v994
    %v1015 = vrcp.pop %v997
    %v1016 = vrcp.pop %v1000
    %v1017 = vrcp.pop %v1003
    %v1018 = vrcp.pop %v1006
    %v1019 = vrcp.pop %v1009
    %v1020 = vrcp.pop %v1012
    %v1021 = vmul.f32 %v974, %v1013
    %v1022 = vmul.f32 %v976, %v1014
    %v1023 = vmul.f32 %v978, %v1015
    %v1024 = vmul.f32 %v980, %v1016
    %v1025 = vmul.f32 %v982, %v1017
    %v1026 = vmul.f32 %v984, %v1018
    %v1027 = vmul.f32 %v986, %v1019
    %v1028 = vmul.f32 %v988, %v1020
    %v1029 = vlaneseq
    %vm1030 = vcmp.ge.s32.totalorder %v1029, 0
    %vm1031 = vcmp.lt.s32.totalorder %v1029, 8
    %vm1032 = vmand %vm1030, %vm1031
    %1033 = vst.msk [vmem:[#allocation9] sm:$0x1] %vm1032, %v1021
    %1034 = vst.msk [vmem:[#allocation9 + $0x2] sm:$0x1] %vm1032, %v1022
    %v1038 = vunpack.c.l.s4 1966171168
    %v1039 = vunpack.c.0.s8 %v1038
    %v1040 = vlaneseq
    %v1041 = vshrl.u32 %v1040, 7
    %v1042 = vsub.s32 %v1039, %v1041
    %v1043 = vrot.slane %v1021, %v1042
    %v1044 = vcombine.high %v1043, %v1043
    %v1046 = vunpack.c.l.s4 1966171168
    %v1047 = vunpack.c.0.s8 %v1046
    %v1048 = vlaneseq
    %v1049 = vshrl.u32 %v1048, 7
    %v1050 = vsub.s32 %v1047, %v1049
    %v1051 = vrot.slane %v1043, %v1050
    %v1053 = vunpack.c.l.s4 1966171168
    %v1054 = vunpack.c.0.s8 %v1053
    %v1055 = vlaneseq
    %v1056 = vshrl.u32 %v1055, 7
    %v1057 = vsub.s32 %v1054, %v1056
    %v1058 = vrot.slane %v1044, %v1057
    %v1060 = vunpack.c.l.s4 1966171168
    %v1061 = vunpack.c.0.s8 %v1060
    %v1062 = vlaneseq
    %v1063 = vshrl.u32 %v1062, 7
    %v1064 = vsub.s32 %v1061, %v1063
    %v1065 = vrot.slane %v1022, %v1064
    %v1066 = vcombine.high %v1065, %v1065
    %v1068 = vunpack.c.l.s4 1966171168
    %v1069 = vunpack.c.0.s8 %v1068
    %v1070 = vlaneseq
    %v1071 = vshrl.u32 %v1070, 7
    %v1072 = vsub.s32 %v1069, %v1071
    %v1073 = vrot.slane %v1065, %v1072
    %v1075 = vunpack.c.l.s4 1966171168
    %v1076 = vunpack.c.0.s8 %v1075
    %v1077 = vlaneseq
    %v1078 = vshrl.u32 %v1077, 7
    %v1079 = vsub.s32 %v1076, %v1078
    %v1080 = vrot.slane %v1066, %v1079
    %1081 = vrot.lane.b32.xlu0 %v1058, 8
    %v1082 = vpop.permute.xlu0 %1081
    %1083 = vrot.lane.b32.xlu0 %v1080, 8
    %v1084 = vpop.permute.xlu0 %1083
    %vm1087 = vcmp.ge.s32.totalorder %v1029, 8
    %vm1088 = vcmp.lt.s32.totalorder %v1029, 16
    %vm1089 = vmand %vm1087, %vm1088
    %1090 = vst.msk [vmem:[#allocation9] sm:$0x1] %vm1089, %v1082
    %1091 = vst.msk [vmem:[#allocation9 + $0x2] sm:$0x1] %vm1089, %v1084
    %v1092 = vcombine.high %v1051, %v1051
    %v1093 = vcombine.high %v1073, %v1073
    %1094 = vrot.lane.b32.xlu0 %v1092, 16
    %v1095 = vpop.permute.xlu0 %1094
    %1096 = vrot.lane.b32.xlu0 %v1093, 16
    %v1097 = vpop.permute.xlu0 %1096
    %vm1100 = vcmp.ge.s32.totalorder %v1029, 16
    %vm1101 = vcmp.lt.s32.totalorder %v1029, 24
    %vm1102 = vmand %vm1100, %vm1101
    %1103 = vst.msk [vmem:[#allocation9] sm:$0x1] %vm1102, %v1095
    %1104 = vst.msk [vmem:[#allocation9 + $0x2] sm:$0x1] %vm1102, %v1097
    %v1105 = vcombine.high %v1058, %v1058
    %v1106 = vcombine.high %v1080, %v1080
    %1107 = vrot.lane.b32.xlu0 %v1105, 24
    %v1108 = vpop.permute.xlu0 %1107
    %1109 = vrot.lane.b32.xlu0 %v1106, 24
    %v1110 = vpop.permute.xlu0 %1109
    %vm1113 = vcmp.ge.s32.totalorder %v1029, 24
    %vm1114 = vcmp.lt.s32.totalorder %v1029, 32
    %vm1115 = vmand %vm1113, %vm1114
    %1116 = vst.msk [vmem:[#allocation9] sm:$0x1] %vm1115, %v1108
    %1117 = vst.msk [vmem:[#allocation9 + $0x2] sm:$0x1] %vm1115, %v1110
    %v1118 = vcombine.high %v1021, %v1021
    %v1120 = vunpack.c.l.s4 1966171168
    %v1121 = vunpack.c.0.s8 %v1120
    %v1122 = vlaneseq
    %v1123 = vshrl.u32 %v1122, 7
    %v1124 = vsub.s32 %v1121, %v1123
    %v1125 = vrot.slane %v1118, %v1124
    %v1127 = vunpack.c.l.s4 1966171168
    %v1128 = vunpack.c.0.s8 %v1127
    %v1129 = vlaneseq
    %v1130 = vshrl.u32 %v1129, 7
    %v1131 = vsub.s32 %v1128, %v1130
    %v1132 = vrot.slane %v1125, %v1131
    %v1133 = vcombine.high %v1022, %v1022
    %v1135 = vunpack.c.l.s4 1966171168
    %v1136 = vunpack.c.0.s8 %v1135
    %v1137 = vlaneseq
    %v1138 = vshrl.u32 %v1137, 7
    %v1139 = vsub.s32 %v1136, %v1138
    %v1140 = vrot.slane %v1133, %v1139
    %v1142 = vunpack.c.l.s4 1966171168
    %v1143 = vunpack.c.0.s8 %v1142
    %v1144 = vlaneseq
    %v1145 = vshrl.u32 %v1144, 7
    %v1146 = vsub.s32 %v1143, %v1145
    %v1147 = vrot.slane %v1140, %v1146
    %1148 = vrot.lane.b32.xlu0 %v1132, 32
    %v1149 = vpop.permute.xlu0 %1148
    %1150 = vrot.lane.b32.xlu0 %v1147, 32
    %v1151 = vpop.permute.xlu0 %1150
    %vm1154 = vcmp.ge.s32.totalorder %v1029, 32
    %vm1155 = vcmp.lt.s32.totalorder %v1029, 40
    %vm1156 = vmand %vm1154, %vm1155
    %1157 = vst.msk [vmem:[#allocation9] sm:$0x1] %vm1156, %v1149
    %1158 = vst.msk [vmem:[#allocation9 + $0x2] sm:$0x1] %vm1156, %v1151
    %v1159 = vcombine.high %v1125, %v1125
    %v1161 = vunpack.c.l.s4 1966171168
    %v1162 = vunpack.c.0.s8 %v1161
    %v1163 = vlaneseq
    %v1164 = vshrl.u32 %v1163, 7
    %v1165 = vsub.s32 %v1162, %v1164
    %v1166 = vrot.slane %v1159, %v1165
    %v1167 = vcombine.high %v1140, %v1140
    %v1169 = vunpack.c.l.s4 1966171168
    %v1170 = vunpack.c.0.s8 %v1169
    %v1171 = vlaneseq
    %v1172 = vshrl.u32 %v1171, 7
    %v1173 = vsub.s32 %v1170, %v1172
    %v1174 = vrot.slane %v1167, %v1173
    %1175 = vrot.lane.b32.xlu0 %v1166, 40
    %v1176 = vpop.permute.xlu0 %1175
    %1177 = vrot.lane.b32.xlu0 %v1174, 40
    %v1178 = vpop.permute.xlu0 %1177
    %vm1181 = vcmp.ge.s32.totalorder %v1029, 40
    %vm1182 = vcmp.lt.s32.totalorder %v1029, 48
    %vm1183 = vmand %vm1181, %vm1182
    %1184 = vst.msk [vmem:[#allocation9] sm:$0x1] %vm1183, %v1176
    %1185 = vst.msk [vmem:[#allocation9 + $0x2] sm:$0x1] %vm1183, %v1178
    %v1186 = vcombine.high %v1132, %v1132
    %v1187 = vcombine.high %v1147, %v1147
    %1188 = vrot.lane.b32.xlu0 %v1186, 48
    %v1189 = vpop.permute.xlu0 %1188
    %1190 = vrot.lane.b32.xlu0 %v1187, 48
    %v1191 = vpop.permute.xlu0 %1190
    %vm1194 = vcmp.ge.s32.totalorder %v1029, 48
    %vm1195 = vcmp.lt.s32.totalorder %v1029, 56
    %vm1196 = vmand %vm1194, %vm1195
    %1197 = vst.msk [vmem:[#allocation9] sm:$0x1] %vm1196, %v1189
    %1198 = vst.msk [vmem:[#allocation9 + $0x2] sm:$0x1] %vm1196, %v1191
    %v1199 = vcombine.high %v1166, %v1166
    %v1200 = vcombine.high %v1174, %v1174
    %1201 = vrot.lane.b32.xlu0 %v1199, 56
    %v1202 = vpop.permute.xlu0 %1201
    %1203 = vrot.lane.b32.xlu0 %v1200, 56
    %v1204 = vpop.permute.xlu0 %1203
    %vm1207 = vcmp.ge.s32.totalorder %v1029, 56
    %vm1208 = vcmp.lt.s32.totalorder %v1029, 64
    %vm1209 = vmand %vm1207, %vm1208
    %1210 = vst.msk [vmem:[#allocation9] sm:$0x1] %vm1209, %v1202
    %1211 = vst.msk [vmem:[#allocation9 + $0x2] sm:$0x1] %vm1209, %v1204
    %v1215 = vunpack.c.l.s4 1966171168
    %v1216 = vunpack.c.0.s8 %v1215
    %v1217 = vlaneseq
    %v1218 = vshrl.u32 %v1217, 7
    %v1219 = vsub.s32 %v1216, %v1218
    %v1220 = vrot.slane %v1023, %v1219
    %v1222 = vunpack.c.l.s4 1966171168
    %v1223 = vunpack.c.0.s8 %v1222
    %v1224 = vlaneseq
    %v1225 = vshrl.u32 %v1224, 7
    %v1226 = vsub.s32 %v1223, %v1225
    %v1227 = vrot.slane %v1220, %v1226
    %v1229 = vunpack.c.l.s4 1966171168
    %v1230 = vunpack.c.0.s8 %v1229
    %v1231 = vlaneseq
    %v1232 = vshrl.u32 %v1231, 7
    %v1233 = vsub.s32 %v1230, %v1232
    %v1234 = vrot.slane %v1024, %v1233
    %v1236 = vunpack.c.l.s4 1966171168
    %v1237 = vunpack.c.0.s8 %v1236
    %v1238 = vlaneseq
    %v1239 = vshrl.u32 %v1238, 7
    %v1240 = vsub.s32 %v1237, %v1239
    %v1241 = vrot.slane %v1234, %v1240
    %1242 = vrot.lane.b32.xlu0 %v1227, 64
    %v1243 = vpop.permute.xlu0 %1242
    %1244 = vrot.lane.b32.xlu0 %v1241, 64
    %v1245 = vpop.permute.xlu0 %1244
    %vm1248 = vcmp.ge.s32.totalorder %v1029, 64
    %vm1249 = vcmp.lt.s32.totalorder %v1029, 72
    %vm1250 = vmand %vm1248, %vm1249
    %1251 = vst.msk [vmem:[#allocation9] sm:$0x1] %vm1250, %v1243
    %1252 = vst.msk [vmem:[#allocation9 + $0x2] sm:$0x1] %vm1250, %v1245
    %v1253 = vcombine.high %v1220, %v1220
    %v1255 = vunpack.c.l.s4 1966171168
    %v1256 = vunpack.c.0.s8 %v1255
    %v1257 = vlaneseq
    %v1258 = vshrl.u32 %v1257, 7
    %v1259 = vsub.s32 %v1256, %v1258
    %v1260 = vrot.slane %v1253, %v1259
    %v1261 = vcombine.high %v1234, %v1234
    %v1263 = vunpack.c.l.s4 1966171168
    %v1264 = vunpack.c.0.s8 %v1263
    %v1265 = vlaneseq
    %v1266 = vshrl.u32 %v1265, 7
    %v1267 = vsub.s32 %v1264, %v1266
    %v1268 = vrot.slane %v1261, %v1267
    %1269 = vrot.lane.b32.xlu0 %v1260, 72
    %v1270 = vpop.permute.xlu0 %1269
    %1271 = vrot.lane.b32.xlu0 %v1268, 72
    %v1272 = vpop.permute.xlu0 %1271
    %vm1275 = vcmp.ge.s32.totalorder %v1029, 72
    %vm1276 = vcmp.lt.s32.totalorder %v1029, 80
    %vm1277 = vmand %vm1275, %vm1276
    %1278 = vst.msk [vmem:[#allocation9] sm:$0x1] %vm1277, %v1270
    %1279 = vst.msk [vmem:[#allocation9 + $0x2] sm:$0x1] %vm1277, %v1272
    %v1280 = vcombine.high %v1227, %v1227
    %v1281 = vcombine.high %v1241, %v1241
    %1282 = vrot.lane.b32.xlu0 %v1280, 80
    %v1283 = vpop.permute.xlu0 %1282
    %1284 = vrot.lane.b32.xlu0 %v1281, 80
    %v1285 = vpop.permute.xlu0 %1284
    %vm1288 = vcmp.ge.s32.totalorder %v1029, 80
    %vm1289 = vcmp.lt.s32.totalorder %v1029, 88
    %vm1290 = vmand %vm1288, %vm1289
    %1291 = vst.msk [vmem:[#allocation9] sm:$0x1] %vm1290, %v1283
    %1292 = vst.msk [vmem:[#allocation9 + $0x2] sm:$0x1] %vm1290, %v1285
    %v1293 = vcombine.high %v1260, %v1260
    %v1294 = vcombine.high %v1268, %v1268
    %1295 = vrot.lane.b32.xlu0 %v1293, 88
    %v1296 = vpop.permute.xlu0 %1295
    %1297 = vrot.lane.b32.xlu0 %v1294, 88
    %v1298 = vpop.permute.xlu0 %1297
    %vm1301 = vcmp.ge.s32.totalorder %v1029, 88
    %vm1302 = vcmp.lt.s32.totalorder %v1029, 96
    %vm1303 = vmand %vm1301, %vm1302
    %1304 = vst.msk [vmem:[#allocation9] sm:$0x1] %vm1303, %v1296
    %1305 = vst.msk [vmem:[#allocation9 + $0x2] sm:$0x1] %vm1303, %v1298
    %v1306 = vcombine.high %v1023, %v1023
    %v1308 = vunpack.c.l.s4 1966171168
    %v1309 = vunpack.c.0.s8 %v1308
    %v1310 = vlaneseq
    %v1311 = vshrl.u32 %v1310, 7
    %v1312 = vsub.s32 %v1309, %v1311
    %v1313 = vrot.slane %v1306, %v1312
    %v1315 = vunpack.c.l.s4 1966171168
    %v1316 = vunpack.c.0.s8 %v1315
    %v1317 = vlaneseq
    %v1318 = vshrl.u32 %v1317, 7
    %v1319 = vsub.s32 %v1316, %v1318
    %v1320 = vrot.slane %v1313, %v1319
    %v1321 = vcombine.high %v1024, %v1024
    %v1323 = vunpack.c.l.s4 1966171168
    %v1324 = vunpack.c.0.s8 %v1323
    %v1325 = vlaneseq
    %v1326 = vshrl.u32 %v1325, 7
    %v1327 = vsub.s32 %v1324, %v1326
    %v1328 = vrot.slane %v1321, %v1327
    %v1330 = vunpack.c.l.s4 1966171168
    %v1331 = vunpack.c.0.s8 %v1330
    %v1332 = vlaneseq
    %v1333 = vshrl.u32 %v1332, 7
    %v1334 = vsub.s32 %v1331, %v1333
    %v1335 = vrot.slane %v1328, %v1334
    %1336 = vrot.lane.b32.xlu0 %v1320, 96
    %v1337 = vpop.permute.xlu0 %1336
    %1338 = vrot.lane.b32.xlu0 %v1335, 96
    %v1339 = vpop.permute.xlu0 %1338
    %vm1342 = vcmp.ge.s32.totalorder %v1029, 96
    %vm1343 = vcmp.lt.s32.totalorder %v1029, 104
    %vm1344 = vmand %vm1342, %vm1343
    %1345 = vst.msk [vmem:[#allocation9] sm:$0x1] %vm1344, %v1337
    %1346 = vst.msk [vmem:[#allocation9 + $0x2] sm:$0x1] %vm1344, %v1339
    %v1347 = vcombine.high %v1313, %v1313
    %v1349 = vunpack.c.l.s4 1966171168
    %v1350 = vunpack.c.0.s8 %v1349
    %v1351 = vlaneseq
    %v1352 = vshrl.u32 %v1351, 7
    %v1353 = vsub.s32 %v1350, %v1352
    %v1354 = vrot.slane %v1347, %v1353
    %v1355 = vcombine.high %v1328, %v1328
    %v1357 = vunpack.c.l.s4 1966171168
    %v1358 = vunpack.c.0.s8 %v1357
    %v1359 = vlaneseq
    %v1360 = vshrl.u32 %v1359, 7
    %v1361 = vsub.s32 %v1358, %v1360
    %v1362 = vrot.slane %v1355, %v1361
    %1363 = vrot.lane.b32.xlu0 %v1354, 104
    %v1364 = vpop.permute.xlu0 %1363
    %1365 = vrot.lane.b32.xlu0 %v1362, 104
    %v1366 = vpop.permute.xlu0 %1365
    %vm1369 = vcmp.ge.s32.totalorder %v1029, 104
    %vm1370 = vcmp.lt.s32.totalorder %v1029, 112
    %vm1371 = vmand %vm1369, %vm1370
    %1372 = vst.msk [vmem:[#allocation9] sm:$0x1] %vm1371, %v1364
    %1373 = vst.msk [vmem:[#allocation9 + $0x2] sm:$0x1] %vm1371, %v1366
    %v1374 = vcombine.high %v1320, %v1320
    %v1375 = vcombine.high %v1335, %v1335
    %1376 = vrot.lane.b32.xlu0 %v1374, 112
    %v1377 = vpop.permute.xlu0 %1376
    %1378 = vrot.lane.b32.xlu0 %v1375, 112
    %v1379 = vpop.permute.xlu0 %1378
    %vm1382 = vcmp.ge.s32.totalorder %v1029, 112
    %vm1383 = vcmp.lt.s32.totalorder %v1029, 120
    %vm1384 = vmand %vm1382, %vm1383
    %1385 = vst.msk [vmem:[#allocation9] sm:$0x1] %vm1384, %v1377
    %1386 = vst.msk [vmem:[#allocation9 + $0x2] sm:$0x1] %vm1384, %v1379
    %v1387 = vcombine.high %v1354, %v1354
    %v1388 = vcombine.high %v1362, %v1362
    %1389 = vrot.lane.b32.xlu0 %v1387, 120
    %v1390 = vpop.permute.xlu0 %1389
    %1391 = vrot.lane.b32.xlu0 %v1388, 120
    %v1392 = vpop.permute.xlu0 %1391
    %vm1395 = vcmp.ge.s32.totalorder %v1029, 120
    %vm1396 = vcmp.lt.s32.totalorder %v1029, 128
    %vm1397 = vmand %vm1395, %vm1396
    %1398 = vst.msk [vmem:[#allocation9] sm:$0x1] %vm1397, %v1390
    %1399 = vst.msk [vmem:[#allocation9 + $0x2] sm:$0x1] %vm1397, %v1392
    %1400 = vst.msk [vmem:[#allocation9 + $0x1] sm:$0x1] %vm1032, %v1025
    %1401 = vst.msk [vmem:[#allocation9 + $0x3] sm:$0x1] %vm1032, %v1026
    %v1405 = vunpack.c.l.s4 1966171168
    %v1406 = vunpack.c.0.s8 %v1405
    %v1407 = vlaneseq
    %v1408 = vshrl.u32 %v1407, 7
    %v1409 = vsub.s32 %v1406, %v1408
    %v1410 = vrot.slane %v1025, %v1409
    %v1411 = vcombine.high %v1410, %v1410
    %v1413 = vunpack.c.l.s4 1966171168
    %v1414 = vunpack.c.0.s8 %v1413
    %v1415 = vlaneseq
    %v1416 = vshrl.u32 %v1415, 7
    %v1417 = vsub.s32 %v1414, %v1416
    %v1418 = vrot.slane %v1410, %v1417
    %v1420 = vunpack.c.l.s4 1966171168
    %v1421 = vunpack.c.0.s8 %v1420
    %v1422 = vlaneseq
    %v1423 = vshrl.u32 %v1422, 7
    %v1424 = vsub.s32 %v1421, %v1423
    %v1425 = vrot.slane %v1411, %v1424
    %v1427 = vunpack.c.l.s4 1966171168
    %v1428 = vunpack.c.0.s8 %v1427
    %v1429 = vlaneseq
    %v1430 = vshrl.u32 %v1429, 7
    %v1431 = vsub.s32 %v1428, %v1430
    %v1432 = vrot.slane %v1026, %v1431
    %v1433 = vcombine.high %v1432, %v1432
    %v1435 = vunpack.c.l.s4 1966171168
    %v1436 = vunpack.c.0.s8 %v1435
    %v1437 = vlaneseq
    %v1438 = vshrl.u32 %v1437, 7
    %v1439 = vsub.s32 %v1436, %v1438
    %v1440 = vrot.slane %v1432, %v1439
    %v1442 = vunpack.c.l.s4 1966171168
    %v1443 = vunpack.c.0.s8 %v1442
    %v1444 = vlaneseq
    %v1445 = vshrl.u32 %v1444, 7
    %v1446 = vsub.s32 %v1443, %v1445
    %v1447 = vrot.slane %v1433, %v1446
    %1448 = vrot.lane.b32.xlu0 %v1425, 8
    %v1449 = vpop.permute.xlu0 %1448
    %1450 = vrot.lane.b32.xlu0 %v1447, 8
    %v1451 = vpop.permute.xlu0 %1450
    %1454 = vst.msk [vmem:[#allocation9 + $0x1] sm:$0x1] %vm1089, %v1449
    %1455 = vst.msk [vmem:[#allocation9 + $0x3] sm:$0x1] %vm1089, %v1451
    %v1456 = vcombine.high %v1418, %v1418
    %v1457 = vcombine.high %v1440, %v1440
    %1458 = vrot.lane.b32.xlu0 %v1456, 16
    %v1459 = vpop.permute.xlu0 %1458
    %1460 = vrot.lane.b32.xlu0 %v1457, 16
    %v1461 = vpop.permute.xlu0 %1460
    %1464 = vst.msk [vmem:[#allocation9 + $0x1] sm:$0x1] %vm1102, %v1459
    %1465 = vst.msk [vmem:[#allocation9 + $0x3] sm:$0x1] %vm1102, %v1461
    %v1466 = vcombine.high %v1425, %v1425
    %v1467 = vcombine.high %v1447, %v1447
    %1468 = vrot.lane.b32.xlu0 %v1466, 24
    %v1469 = vpop.permute.xlu0 %1468
    %1470 = vrot.lane.b32.xlu0 %v1467, 24
    %v1471 = vpop.permute.xlu0 %1470
    %1474 = vst.msk [vmem:[#allocation9 + $0x1] sm:$0x1] %vm1115, %v1469
    %1475 = vst.msk [vmem:[#allocation9 + $0x3] sm:$0x1] %vm1115, %v1471
    %v1476 = vcombine.high %v1025, %v1025
    %v1478 = vunpack.c.l.s4 1966171168
    %v1479 = vunpack.c.0.s8 %v1478
    %v1480 = vlaneseq
    %v1481 = vshrl.u32 %v1480, 7
    %v1482 = vsub.s32 %v1479, %v1481
    %v1483 = vrot.slane %v1476, %v1482
    %v1485 = vunpack.c.l.s4 1966171168
    %v1486 = vunpack.c.0.s8 %v1485
    %v1487 = vlaneseq
    %v1488 = vshrl.u32 %v1487, 7
    %v1489 = vsub.s32 %v1486, %v1488
    %v1490 = vrot.slane %v1483, %v1489
    %v1491 = vcombine.high %v1026, %v1026
    %v1493 = vunpack.c.l.s4 1966171168
    %v1494 = vunpack.c.0.s8 %v1493
    %v1495 = vlaneseq
    %v1496 = vshrl.u32 %v1495, 7
    %v1497 = vsub.s32 %v1494, %v1496
    %v1498 = vrot.slane %v1491, %v1497
    %v1500 = vunpack.c.l.s4 1966171168
    %v1501 = vunpack.c.0.s8 %v1500
    %v1502 = vlaneseq
    %v1503 = vshrl.u32 %v1502, 7
    %v1504 = vsub.s32 %v1501, %v1503
    %v1505 = vrot.slane %v1498, %v1504
    %1506 = vrot.lane.b32.xlu0 %v1490, 32
    %v1507 = vpop.permute.xlu0 %1506
    %1508 = vrot.lane.b32.xlu0 %v1505, 32
    %v1509 = vpop.permute.xlu0 %1508
    %1512 = vst.msk [vmem:[#allocation9 + $0x1] sm:$0x1] %vm1156, %v1507
    %1513 = vst.msk [vmem:[#allocation9 + $0x3] sm:$0x1] %vm1156, %v1509
    %v1514 = vcombine.high %v1483, %v1483
    %v1516 = vunpack.c.l.s4 1966171168
    %v1517 = vunpack.c.0.s8 %v1516
    %v1518 = vlaneseq
    %v1519 = vshrl.u32 %v1518, 7
    %v1520 = vsub.s32 %v1517, %v1519
    %v1521 = vrot.slane %v1514, %v1520
    %v1522 = vcombine.high %v1498, %v1498
    %v1524 = vunpack.c.l.s4 1966171168
    %v1525 = vunpack.c.0.s8 %v1524
    %v1526 = vlaneseq
    %v1527 = vshrl.u32 %v1526, 7
    %v1528 = vsub.s32 %v1525, %v1527
    %v1529 = vrot.slane %v1522, %v1528
    %1530 = vrot.lane.b32.xlu0 %v1521, 40
    %v1531 = vpop.permute.xlu0 %1530
    %1532 = vrot.lane.b32.xlu0 %v1529, 40
    %v1533 = vpop.permute.xlu0 %1532
    %1536 = vst.msk [vmem:[#allocation9 + $0x1] sm:$0x1] %vm1183, %v1531
    %1537 = vst.msk [vmem:[#allocation9 + $0x3] sm:$0x1] %vm1183, %v1533
    %v1538 = vcombine.high %v1490, %v1490
    %v1539 = vcombine.high %v1505, %v1505
    %1540 = vrot.lane.b32.xlu0 %v1538, 48
    %v1541 = vpop.permute.xlu0 %1540
    %1542 = vrot.lane.b32.xlu0 %v1539, 48
    %v1543 = vpop.permute.xlu0 %1542
    %1546 = vst.msk [vmem:[#allocation9 + $0x1] sm:$0x1] %vm1196, %v1541
    %1547 = vst.msk [vmem:[#allocation9 + $0x3] sm:$0x1] %vm1196, %v1543
    %v1548 = vcombine.high %v1521, %v1521
    %v1549 = vcombine.high %v1529, %v1529
    %1550 = vrot.lane.b32.xlu0 %v1548, 56
    %v1551 = vpop.permute.xlu0 %1550
    %1552 = vrot.lane.b32.xlu0 %v1549, 56
    %v1553 = vpop.permute.xlu0 %1552
    %1556 = vst.msk [vmem:[#allocation9 + $0x1] sm:$0x1] %vm1209, %v1551
    %1557 = vst.msk [vmem:[#allocation9 + $0x3] sm:$0x1] %vm1209, %v1553
    %v1561 = vunpack.c.l.s4 1966171168
    %v1562 = vunpack.c.0.s8 %v1561
    %v1563 = vlaneseq
    %v1564 = vshrl.u32 %v1563, 7
    %v1565 = vsub.s32 %v1562, %v1564
    %v1566 = vrot.slane %v1027, %v1565
    %v1568 = vunpack.c.l.s4 1966171168
    %v1569 = vunpack.c.0.s8 %v1568
    %v1570 = vlaneseq
    %v1571 = vshrl.u32 %v1570, 7
    %v1572 = vsub.s32 %v1569, %v1571
    %v1573 = vrot.slane %v1566, %v1572
    %v1575 = vunpack.c.l.s4 1966171168
    %v1576 = vunpack.c.0.s8 %v1575
    %v1577 = vlaneseq
    %v1578 = vshrl.u32 %v1577, 7
    %v1579 = vsub.s32 %v1576, %v1578
    %v1580 = vrot.slane %v1028, %v1579
    %v1582 = vunpack.c.l.s4 1966171168
    %v1583 = vunpack.c.0.s8 %v1582
    %v1584 = vlaneseq
    %v1585 = vshrl.u32 %v1584, 7
    %v1586 = vsub.s32 %v1583, %v1585
    %v1587 = vrot.slane %v1580, %v1586
    %1588 = vrot.lane.b32.xlu0 %v1573, 64
    %v1589 = vpop.permute.xlu0 %1588
    %1590 = vrot.lane.b32.xlu0 %v1587, 64
    %v1591 = vpop.permute.xlu0 %1590
    %1594 = vst.msk [vmem:[#allocation9 + $0x1] sm:$0x1] %vm1250, %v1589
    %1595 = vst.msk [vmem:[#allocation9 + $0x3] sm:$0x1] %vm1250, %v1591
    %v1596 = vcombine.high %v1566, %v1566
    %v1598 = vunpack.c.l.s4 1966171168
    %v1599 = vunpack.c.0.s8 %v1598
    %v1600 = vlaneseq
    %v1601 = vshrl.u32 %v1600, 7
    %v1602 = vsub.s32 %v1599, %v1601
    %v1603 = vrot.slane %v1596, %v1602
    %v1604 = vcombine.high %v1580, %v1580
    %v1606 = vunpack.c.l.s4 1966171168
    %v1607 = vunpack.c.0.s8 %v1606
    %v1608 = vlaneseq
    %v1609 = vshrl.u32 %v1608, 7
    %v1610 = vsub.s32 %v1607, %v1609
    %v1611 = vrot.slane %v1604, %v1610
    %1612 = vrot.lane.b32.xlu0 %v1603, 72
    %v1613 = vpop.permute.xlu0 %1612
    %1614 = vrot.lane.b32.xlu0 %v1611, 72
    %v1615 = vpop.permute.xlu0 %1614
    %1618 = vst.msk [vmem:[#allocation9 + $0x1] sm:$0x1] %vm1277, %v1613
    %1619 = vst.msk [vmem:[#allocation9 + $0x3] sm:$0x1] %vm1277, %v1615
    %v1620 = vcombine.high %v1573, %v1573
    %v1621 = vcombine.high %v1587, %v1587
    %1622 = vrot.lane.b32.xlu0 %v1620, 80
    %v1623 = vpop.permute.xlu0 %1622
    %1624 = vrot.lane.b32.xlu0 %v1621, 80
    %v1625 = vpop.permute.xlu0 %1624
    %1628 = vst.msk [vmem:[#allocation9 + $0x1] sm:$0x1] %vm1290, %v1623
    %1629 = vst.msk [vmem:[#allocation9 + $0x3] sm:$0x1] %vm1290, %v1625
    %v1630 = vcombine.high %v1603, %v1603
    %v1631 = vcombine.high %v1611, %v1611
    %1632 = vrot.lane.b32.xlu0 %v1630, 88
    %v1633 = vpop.permute.xlu0 %1632
    %1634 = vrot.lane.b32.xlu0 %v1631, 88
    %v1635 = vpop.permute.xlu0 %1634
    %1638 = vst.msk [vmem:[#allocation9 + $0x1] sm:$0x1] %vm1303, %v1633
    %1639 = vst.msk [vmem:[#allocation9 + $0x3] sm:$0x1] %vm1303, %v1635
    %v1640 = vcombine.high %v1027, %v1027
    %v1642 = vunpack.c.l.s4 1966171168
    %v1643 = vunpack.c.0.s8 %v1642
    %v1644 = vlaneseq
    %v1645 = vshrl.u32 %v1644, 7
    %v1646 = vsub.s32 %v1643, %v1645
    %v1647 = vrot.slane %v1640, %v1646
    %v1649 = vunpack.c.l.s4 1966171168
    %v1650 = vunpack.c.0.s8 %v1649
    %v1651 = vlaneseq
    %v1652 = vshrl.u32 %v1651, 7
    %v1653 = vsub.s32 %v1650, %v1652
    %v1654 = vrot.slane %v1647, %v1653
    %v1655 = vcombine.high %v1028, %v1028
    %v1657 = vunpack.c.l.s4 1966171168
    %v1658 = vunpack.c.0.s8 %v1657
    %v1659 = vlaneseq
    %v1660 = vshrl.u32 %v1659, 7
    %v1661 = vsub.s32 %v1658, %v1660
    %v1662 = vrot.slane %v1655, %v1661
    %v1664 = vunpack.c.l.s4 1966171168
    %v1665 = vunpack.c.0.s8 %v1664
    %v1666 = vlaneseq
    %v1667 = vshrl.u32 %v1666, 7
    %v1668 = vsub.s32 %v1665, %v1667
    %v1669 = vrot.slane %v1662, %v1668
    %1670 = vrot.lane.b32.xlu0 %v1654, 96
    %v1671 = vpop.permute.xlu0 %1670
    %1672 = vrot.lane.b32.xlu0 %v1669, 96
    %v1673 = vpop.permute.xlu0 %1672
    %1676 = vst.msk [vmem:[#allocation9 + $0x1] sm:$0x1] %vm1344, %v1671
    %1677 = vst.msk [vmem:[#allocation9 + $0x3] sm:$0x1] %vm1344, %v1673
    %v1678 = vcombine.high %v1647, %v1647
    %v1680 = vunpack.c.l.s4 1966171168
    %v1681 = vunpack.c.0.s8 %v1680
    %v1682 = vlaneseq
    %v1683 = vshrl.u32 %v1682, 7
    %v1684 = vsub.s32 %v1681, %v1683
    %v1685 = vrot.slane %v1678, %v1684
    %v1686 = vcombine.high %v1662, %v1662
    %v1688 = vunpack.c.l.s4 1966171168
    %v1689 = vunpack.c.0.s8 %v1688
    %v1690 = vlaneseq
    %v1691 = vshrl.u32 %v1690, 7
    %v1692 = vsub.s32 %v1689, %v1691
    %v1693 = vrot.slane %v1686, %v1692
    %1694 = vrot.lane.b32.xlu0 %v1685, 104
    %v1695 = vpop.permute.xlu0 %1694
    %1696 = vrot.lane.b32.xlu0 %v1693, 104
    %v1697 = vpop.permute.xlu0 %1696
    %1700 = vst.msk [vmem:[#allocation9 + $0x1] sm:$0x1] %vm1371, %v1695
    %1701 = vst.msk [vmem:[#allocation9 + $0x3] sm:$0x1] %vm1371, %v1697
    %v1702 = vcombine.high %v1654, %v1654
    %v1703 = vcombine.high %v1669, %v1669
    %1704 = vrot.lane.b32.xlu0 %v1702, 112
    %v1705 = vpop.permute.xlu0 %1704
    %1706 = vrot.lane.b32.xlu0 %v1703, 112
    %v1707 = vpop.permute.xlu0 %1706
    %1710 = vst.msk [vmem:[#allocation9 + $0x1] sm:$0x1] %vm1384, %v1705
    %1711 = vst.msk [vmem:[#allocation9 + $0x3] sm:$0x1] %vm1384, %v1707
    %v1712 = vcombine.high %v1685, %v1685
    %v1713 = vcombine.high %v1693, %v1693
    %1714 = vrot.lane.b32.xlu0 %v1712, 120
    %v1715 = vpop.permute.xlu0 %1714
    %1716 = vrot.lane.b32.xlu0 %v1713, 120
    %v1717 = vpop.permute.xlu0 %1716
    %1720 = vst.msk [vmem:[#allocation9 + $0x1] sm:$0x1] %vm1397, %v1715
    %1721 = vst.msk [vmem:[#allocation9 + $0x3] sm:$0x1] %vm1397, %v1717
    %v1722 = vsel %vm940, %v1021, 0
    %1724 = vmatprep.subr.mxu0 0.0
    %1725 = vmatpush1.msra.mxu0 %v289
    %1726 = vmatprep.subr.mxu0 0.0
    %1727 = vmatpush1.msra.mxu0 0.0
    %1728 = vmatprep.subr.mxu0 0.0
    %1729 = vmatpush1.msra.mxu0 0.0
    %1730 = vmatprep.subr.mxu0 0.0
    %1731 = vmatpush1.msra.mxu0 0.0
    %1732 = vmatprep.subr.mxu0 0.0
    %1733 = vmatpush1.msra.mxu0 0.0
    %1734 = vmatprep.subr.mxu0 0.0
    %1735 = vmatpush1.msra.mxu0 0.0
    %1736 = vmatprep.subr.mxu0 0.0
    %1737 = vmatpush1.msra.mxu0 0.0
    %1738 = vmatprep.subr.mxu0 0.0
    %1739 = vmatpush1.msra.mxu0 0.0
    %1740 = vmatprep.subr.mxu0 0.0
    %1741 = vmatpush1.msra.mxu0 0.0
    %1742 = vmatprep.subr.mxu0 0.0
    %1743 = vmatpush1.msra.mxu0 0.0
    %1744 = vmatprep.subr.mxu0 0.0
    %1745 = vmatpush1.msra.mxu0 0.0
    %1746 = vmatprep.subr.mxu0 0.0
    %1747 = vmatpush1.msra.mxu0 0.0
    %1748 = vmatprep.subr.mxu0 0.0
    %1749 = vmatpush1.msra.mxu0 0.0
    %1750 = vmatprep.subr.mxu0 0.0
    %1751 = vmatpush1.msra.mxu0 0.0
    %1752 = vmatprep.subr.mxu0 0.0
    %1753 = vmatpush1.msra.mxu0 0.0
    %1754 = vmatprep.subr.mxu0 0.0
    %1755 = vmatpush1.msra.mxu0 0.0
    %1756 = vmatprep.subr.mxu0 0.0
    %1757 = vmatpush1.msra.mxu0 0.0
    %1758 = vmatprep.subr.mxu0 0.0
    %1759 = vmatpush1.msra.mxu0 0.0
    %1760 = vmatprep.subr.mxu0 0.0
    %1761 = vmatpush1.msra.mxu0 0.0
    %1762 = vmatprep.subr.mxu0 0.0
    %1763 = vmatpush1.msra.mxu0 0.0
    %1764 = vmatprep.subr.mxu0 0.0
    %1765 = vmatpush1.msra.mxu0 0.0
    %1766 = vmatprep.subr.mxu0 0.0
    %1767 = vmatpush1.msra.mxu0 0.0
    %1768 = vmatprep.subr.mxu0 0.0
    %1769 = vmatpush1.msra.mxu0 0.0
    %1770 = vmatprep.subr.mxu0 0.0
    %1771 = vmatpush1.msra.mxu0 0.0
    %1772 = vmatprep.subr.mxu0 0.0
    %1773 = vmatpush1.msra.mxu0 0.0
    %1774 = vmatprep.subr.mxu0 0.0
    %1775 = vmatpush1.msra.mxu0 0.0
    %1776 = vmatprep.subr.mxu0 0.0
    %1777 = vmatpush1.msra.mxu0 0.0
    %1778 = vmatprep.subr.mxu0 0.0
    %1779 = vmatpush1.msra.mxu0 0.0
    %1780 = vmatprep.subr.mxu0 0.0
    %1781 = vmatpush1.msra.mxu0 0.0
    %1782 = vmatprep.subr.mxu0 0.0
    %1783 = vmatpush1.msra.mxu0 0.0
    %1784 = vmatprep.subr.mxu0 0.0
    %1785 = vmatpush1.msra.mxu0 0.0
    %1786 = vmatprep.subr.mxu0 0.0
    %1787 = vmatpush1.msra.mxu0 0.0
    %1788 = vmatprep.mubr.f32.mxu0 0.0
    %1789 = vmatmul.mubr.f32.gmra.mrb[0].mxu0 %v1722
    %v1790 = vpop.f32.mrb[0].mxu0
    %v1791 = vadd.f32 0.0, %v1790
    %v1792 = vpop.f32.mrb[0].mxu0
    %1793 = vdwg.mxu0
    %v1794 = vsel %vm940, %v1022, 0
    %1796 = vmatprep.subr.mxu0 0.0
    %1797 = vmatpush1.msra.mxu0 %v290
    %1798 = vmatprep.subr.mxu0 0.0
    %1799 = vmatpush1.msra.mxu0 0.0
    %1800 = vmatprep.subr.mxu0 0.0
    %1801 = vmatpush1.msra.mxu0 0.0
    %1802 = vmatprep.subr.mxu0 0.0
    %1803 = vmatpush1.msra.mxu0 0.0
    %1804 = vmatprep.subr.mxu0 0.0
    %1805 = vmatpush1.msra.mxu0 0.0
    %1806 = vmatprep.subr.mxu0 0.0
    %1807 = vmatpush1.msra.mxu0 0.0
    %1808 = vmatprep.subr.mxu0 0.0
    %1809 = vmatpush1.msra.mxu0 0.0
    %1810 = vmatprep.subr.mxu0 0.0
    %1811 = vmatpush1.msra.mxu0 0.0
    %1812 = vmatprep.subr.mxu0 0.0
    %1813 = vmatpush1.msra.mxu0 0.0
    %1814 = vmatprep.subr.mxu0 0.0
    %1815 = vmatpush1.msra.mxu0 0.0
    %1816 = vmatprep.subr.mxu0 0.0
    %1817 = vmatpush1.msra.mxu0 0.0
    %1818 = vmatprep.subr.mxu0 0.0
    %1819 = vmatpush1.msra.mxu0 0.0
    %1820 = vmatprep.subr.mxu0 0.0
    %1821 = vmatpush1.msra.mxu0 0.0
    %1822 = vmatprep.subr.mxu0 0.0
    %1823 = vmatpush1.msra.mxu0 0.0
    %1824 = vmatprep.subr.mxu0 0.0
    %1825 = vmatpush1.msra.mxu0 0.0
    %1826 = vmatprep.subr.mxu0 0.0
    %1827 = vmatpush1.msra.mxu0 0.0
    %1828 = vmatprep.subr.mxu0 0.0
    %1829 = vmatpush1.msra.mxu0 0.0
    %1830 = vmatprep.subr.mxu0 0.0
    %1831 = vmatpush1.msra.mxu0 0.0
    %1832 = vmatprep.subr.mxu0 0.0
    %1833 = vmatpush1.msra.mxu0 0.0
    %1834 = vmatprep.subr.mxu0 0.0
    %1835 = vmatpush1.msra.mxu0 0.0
    %1836 = vmatprep.subr.mxu0 0.0
    %1837 = vmatpush1.msra.mxu0 0.0
    %1838 = vmatprep.subr.mxu0 0.0
    %1839 = vmatpush1.msra.mxu0 0.0
    %1840 = vmatprep.subr.mxu0 0.0
    %1841 = vmatpush1.msra.mxu0 0.0
    %1842 = vmatprep.subr.mxu0 0.0
    %1843 = vmatpush1.msra.mxu0 0.0
    %1844 = vmatprep.subr.mxu0 0.0
    %1845 = vmatpush1.msra.mxu0 0.0
    %1846 = vmatprep.subr.mxu0 0.0
    %1847 = vmatpush1.msra.mxu0 0.0
    %1848 = vmatprep.subr.mxu0 0.0
    %1849 = vmatpush1.msra.mxu0 0.0
    %1850 = vmatprep.subr.mxu0 0.0
    %1851 = vmatpush1.msra.mxu0 0.0
    %1852 = vmatprep.subr.mxu0 0.0
    %1853 = vmatpush1.msra.mxu0 0.0
    %1854 = vmatprep.subr.mxu0 0.0
    %1855 = vmatpush1.msra.mxu0 0.0
    %1856 = vmatprep.subr.mxu0 0.0
    %1857 = vmatpush1.msra.mxu0 0.0
    %1858 = vmatprep.subr.mxu0 0.0
    %1859 = vmatpush1.msra.mxu0 0.0
    %1860 = vmatprep.mubr.f32.mxu0 0.0
    %1861 = vmatmul.mubr.f32.gmra.mrb[0].mxu0 %v1794
    %v1862 = vpop.f32.mrb[0].mxu0
    %v1863 = vadd.f32 0.0, %v1862
    %v1864 = vpop.f32.mrb[0].mxu0
    %1865 = vdwg.mxu0
    %v1866 = vsel %vm940, %v1023, 0
    %1868 = vmatprep.subr.mxu0 0.0
    %1869 = vmatpush1.msra.mxu0 %v322
    %1870 = vmatprep.subr.mxu0 0.0
    %1871 = vmatpush1.msra.mxu0 0.0
    %1872 = vmatprep.subr.mxu0 0.0
    %1873 = vmatpush1.msra.mxu0 0.0
    %1874 = vmatprep.subr.mxu0 0.0
    %1875 = vmatpush1.msra.mxu0 0.0
    %1876 = vmatprep.subr.mxu0 0.0
    %1877 = vmatpush1.msra.mxu0 0.0
    %1878 = vmatprep.subr.mxu0 0.0
    %1879 = vmatpush1.msra.mxu0 0.0
    %1880 = vmatprep.subr.mxu0 0.0
    %1881 = vmatpush1.msra.mxu0 0.0
    %1882 = vmatprep.subr.mxu0 0.0
    %1883 = vmatpush1.msra.mxu0 0.0
    %1884 = vmatprep.subr.mxu0 0.0
    %1885 = vmatpush1.msra.mxu0 0.0
    %1886 = vmatprep.subr.mxu0 0.0
    %1887 = vmatpush1.msra.mxu0 0.0
    %1888 = vmatprep.subr.mxu0 0.0
    %1889 = vmatpush1.msra.mxu0 0.0
    %1890 = vmatprep.subr.mxu0 0.0
    %1891 = vmatpush1.msra.mxu0 0.0
    %1892 = vmatprep.subr.mxu0 0.0
    %1893 = vmatpush1.msra.mxu0 0.0
    %1894 = vmatprep.subr.mxu0 0.0
    %1895 = vmatpush1.msra.mxu0 0.0
    %1896 = vmatprep.subr.mxu0 0.0
    %1897 = vmatpush1.msra.mxu0 0.0
    %1898 = vmatprep.subr.mxu0 0.0
    %1899 = vmatpush1.msra.mxu0 0.0
    %1900 = vmatprep.subr.mxu0 0.0
    %1901 = vmatpush1.msra.mxu0 0.0
    %1902 = vmatprep.subr.mxu0 0.0
    %1903 = vmatpush1.msra.mxu0 0.0
    %1904 = vmatprep.subr.mxu0 0.0
    %1905 = vmatpush1.msra.mxu0 0.0
    %1906 = vmatprep.subr.mxu0 0.0
    %1907 = vmatpush1.msra.mxu0 0.0
    %1908 = vmatprep.subr.mxu0 0.0
    %1909 = vmatpush1.msra.mxu0 0.0
    %1910 = vmatprep.subr.mxu0 0.0
    %1911 = vmatpush1.msra.mxu0 0.0
    %1912 = vmatprep.subr.mxu0 0.0
    %1913 = vmatpush1.msra.mxu0 0.0
    %1914 = vmatprep.subr.mxu0 0.0
    %1915 = vmatpush1.msra.mxu0 0.0
    %1916 = vmatprep.subr.mxu0 0.0
    %1917 = vmatpush1.msra.mxu0 0.0
    %1918 = vmatprep.subr.mxu0 0.0
    %1919 = vmatpush1.msra.mxu0 0.0
    %1920 = vmatprep.subr.mxu0 0.0
    %1921 = vmatpush1.msra.mxu0 0.0
    %1922 = vmatprep.subr.mxu0 0.0
    %1923 = vmatpush1.msra.mxu0 0.0
    %1924 = vmatprep.subr.mxu0 0.0
    %1925 = vmatpush1.msra.mxu0 0.0
    %1926 = vmatprep.subr.mxu0 0.0
    %1927 = vmatpush1.msra.mxu0 0.0
    %1928 = vmatprep.subr.mxu0 0.0
    %1929 = vmatpush1.msra.mxu0 0.0
    %1930 = vmatprep.subr.mxu0 0.0
    %1931 = vmatpush1.msra.mxu0 0.0
    %1932 = vmatprep.mubr.f32.mxu0 0.0
    %1933 = vmatmul.mubr.f32.gmra.mrb[0].mxu0 %v1866
    %v1934 = vpop.f32.mrb[0].mxu0
    %v1935 = vadd.f32 0.0, %v1934
    %v1936 = vpop.f32.mrb[0].mxu0
    %1937 = vdwg.mxu0
    %v1938 = vsel %vm940, %v1024, 0
    %1940 = vmatprep.subr.mxu0 0.0
    %1941 = vmatpush1.msra.mxu0 %v324
    %1942 = vmatprep.subr.mxu0 0.0
    %1943 = vmatpush1.msra.mxu0 0.0
    %1944 = vmatprep.subr.mxu0 0.0
    %1945 = vmatpush1.msra.mxu0 0.0
    %1946 = vmatprep.subr.mxu0 0.0
    %1947 = vmatpush1.msra.mxu0 0.0
    %1948 = vmatprep.subr.mxu0 0.0
    %1949 = vmatpush1.msra.mxu0 0.0
    %1950 = vmatprep.subr.mxu0 0.0
    %1951 = vmatpush1.msra.mxu0 0.0
    %1952 = vmatprep.subr.mxu0 0.0
    %1953 = vmatpush1.msra.mxu0 0.0
    %1954 = vmatprep.subr.mxu0 0.0
    %1955 = vmatpush1.msra.mxu0 0.0
    %1956 = vmatprep.subr.mxu0 0.0
    %1957 = vmatpush1.msra.mxu0 0.0
    %1958 = vmatprep.subr.mxu0 0.0
    %1959 = vmatpush1.msra.mxu0 0.0
    %1960 = vmatprep.subr.mxu0 0.0
    %1961 = vmatpush1.msra.mxu0 0.0
    %1962 = vmatprep.subr.mxu0 0.0
    %1963 = vmatpush1.msra.mxu0 0.0
    %1964 = vmatprep.subr.mxu0 0.0
    %1965 = vmatpush1.msra.mxu0 0.0
    %1966 = vmatprep.subr.mxu0 0.0
    %1967 = vmatpush1.msra.mxu0 0.0
    %1968 = vmatprep.subr.mxu0 0.0
    %1969 = vmatpush1.msra.mxu0 0.0
    %1970 = vmatprep.subr.mxu0 0.0
    %1971 = vmatpush1.msra.mxu0 0.0
    %1972 = vmatprep.subr.mxu0 0.0
    %1973 = vmatpush1.msra.mxu0 0.0
    %1974 = vmatprep.subr.mxu0 0.0
    %1975 = vmatpush1.msra.mxu0 0.0
    %1976 = vmatprep.subr.mxu0 0.0
    %1977 = vmatpush1.msra.mxu0 0.0
    %1978 = vmatprep.subr.mxu0 0.0
    %1979 = vmatpush1.msra.mxu0 0.0
    %1980 = vmatprep.subr.mxu0 0.0
    %1981 = vmatpush1.msra.mxu0 0.0
    %1982 = vmatprep.subr.mxu0 0.0
    %1983 = vmatpush1.msra.mxu0 0.0
    %1984 = vmatprep.subr.mxu0 0.0
    %1985 = vmatpush1.msra.mxu0 0.0
    %1986 = vmatprep.subr.mxu0 0.0
    %1987 = vmatpush1.msra.mxu0 0.0
    %1988 = vmatprep.subr.mxu0 0.0
    %1989 = vmatpush1.msra.mxu0 0.0
    %1990 = vmatprep.subr.mxu0 0.0
    %1991 = vmatpush1.msra.mxu0 0.0
    %1992 = vmatprep.subr.mxu0 0.0
    %1993 = vmatpush1.msra.mxu0 0.0
    %1994 = vmatprep.subr.mxu0 0.0
    %1995 = vmatpush1.msra.mxu0 0.0
    %1996 = vmatprep.subr.mxu0 0.0
    %1997 = vmatpush1.msra.mxu0 0.0
    %1998 = vmatprep.subr.mxu0 0.0
    %1999 = vmatpush1.msra.mxu0 0.0
    %2000 = vmatprep.subr.mxu0 0.0
    %2001 = vmatpush1.msra.mxu0 0.0
    %2002 = vmatprep.subr.mxu0 0.0
    %2003 = vmatpush1.msra.mxu0 0.0
    %2004 = vmatprep.mubr.f32.mxu0 0.0
    %2005 = vmatmul.mubr.f32.gmra.mrb[0].mxu0 %v1938
    %v2006 = vpop.f32.mrb[0].mxu0
    %v2007 = vadd.f32 0.0, %v2006
    %v2008 = vpop.f32.mrb[0].mxu0
    %2009 = vdwg.mxu0
    %v2010 = vsel %vm940, %v1025, 0
    %2012 = vmatprep.subr.mxu0 0.0
    %2013 = vmatpush1.msra.mxu0 %v328
    %2014 = vmatprep.subr.mxu0 0.0
    %2015 = vmatpush1.msra.mxu0 0.0
    %2016 = vmatprep.subr.mxu0 0.0
    %2017 = vmatpush1.msra.mxu0 0.0
    %2018 = vmatprep.subr.mxu0 0.0
    %2019 = vmatpush1.msra.mxu0 0.0
    %2020 = vmatprep.subr.mxu0 0.0
    %2021 = vmatpush1.msra.mxu0 0.0
    %2022 = vmatprep.subr.mxu0 0.0
    %2023 = vmatpush1.msra.mxu0 0.0
    %2024 = vmatprep.subr.mxu0 0.0
    %2025 = vmatpush1.msra.mxu0 0.0
    %2026 = vmatprep.subr.mxu0 0.0
    %2027 = vmatpush1.msra.mxu0 0.0
    %2028 = vmatprep.subr.mxu0 0.0
    %2029 = vmatpush1.msra.mxu0 0.0
    %2030 = vmatprep.subr.mxu0 0.0
    %2031 = vmatpush1.msra.mxu0 0.0
    %2032 = vmatprep.subr.mxu0 0.0
    %2033 = vmatpush1.msra.mxu0 0.0
    %2034 = vmatprep.subr.mxu0 0.0
    %2035 = vmatpush1.msra.mxu0 0.0
    %2036 = vmatprep.subr.mxu0 0.0
    %2037 = vmatpush1.msra.mxu0 0.0
    %2038 = vmatprep.subr.mxu0 0.0
    %2039 = vmatpush1.msra.mxu0 0.0
    %2040 = vmatprep.subr.mxu0 0.0
    %2041 = vmatpush1.msra.mxu0 0.0
    %2042 = vmatprep.subr.mxu0 0.0
    %2043 = vmatpush1.msra.mxu0 0.0
    %2044 = vmatprep.subr.mxu0 0.0
    %2045 = vmatpush1.msra.mxu0 0.0
    %2046 = vmatprep.subr.mxu0 0.0
    %2047 = vmatpush1.msra.mxu0 0.0
    %2048 = vmatprep.subr.mxu0 0.0
    %2049 = vmatpush1.msra.mxu0 0.0
    %2050 = vmatprep.subr.mxu0 0.0
    %2051 = vmatpush1.msra.mxu0 0.0
    %2052 = vmatprep.subr.mxu0 0.0
    %2053 = vmatpush1.msra.mxu0 0.0
    %2054 = vmatprep.subr.mxu0 0.0
    %2055 = vmatpush1.msra.mxu0 0.0
    %2056 = vmatprep.subr.mxu0 0.0
    %2057 = vmatpush1.msra.mxu0 0.0
    %2058 = vmatprep.subr.mxu0 0.0
    %2059 = vmatpush1.msra.mxu0 0.0
    %2060 = vmatprep.subr.mxu0 0.0
    %2061 = vmatpush1.msra.mxu0 0.0
    %2062 = vmatprep.subr.mxu0 0.0
    %2063 = vmatpush1.msra.mxu0 0.0
    %2064 = vmatprep.subr.mxu0 0.0
    %2065 = vmatpush1.msra.mxu0 0.0
    %2066 = vmatprep.subr.mxu0 0.0
    %2067 = vmatpush1.msra.mxu0 0.0
    %2068 = vmatprep.subr.mxu0 0.0
    %2069 = vmatpush1.msra.mxu0 0.0
    %2070 = vmatprep.subr.mxu0 0.0
    %2071 = vmatpush1.msra.mxu0 0.0
    %2072 = vmatprep.subr.mxu0 0.0
    %2073 = vmatpush1.msra.mxu0 0.0
    %2074 = vmatprep.subr.mxu0 0.0
    %2075 = vmatpush1.msra.mxu0 0.0
    %2076 = vmatprep.mubr.f32.mxu0 0.0
    %2077 = vmatmul.mubr.f32.gmra.mrb[0].mxu0 %v2010
    %v2078 = vpop.f32.mrb[0].mxu0
    %v2079 = vadd.f32 0.0, %v2078
    %v2080 = vpop.f32.mrb[0].mxu0
    %2081 = vdwg.mxu0
    %v2082 = vsel %vm940, %v1026, 0
    %2084 = vmatprep.subr.mxu0 0.0
    %2085 = vmatpush1.msra.mxu0 %v330
    %2086 = vmatprep.subr.mxu0 0.0
    %2087 = vmatpush1.msra.mxu0 0.0
    %2088 = vmatprep.subr.mxu0 0.0
    %2089 = vmatpush1.msra.mxu0 0.0
    %2090 = vmatprep.subr.mxu0 0.0
    %2091 = vmatpush1.msra.mxu0 0.0
    %2092 = vmatprep.subr.mxu0 0.0
    %2093 = vmatpush1.msra.mxu0 0.0
    %2094 = vmatprep.subr.mxu0 0.0
    %2095 = vmatpush1.msra.mxu0 0.0
    %2096 = vmatprep.subr.mxu0 0.0
    %2097 = vmatpush1.msra.mxu0 0.0
    %2098 = vmatprep.subr.mxu0 0.0
    %2099 = vmatpush1.msra.mxu0 0.0
    %2100 = vmatprep.subr.mxu0 0.0
    %2101 = vmatpush1.msra.mxu0 0.0
    %2102 = vmatprep.subr.mxu0 0.0
    %2103 = vmatpush1.msra.mxu0 0.0
    %2104 = vmatprep.subr.mxu0 0.0
    %2105 = vmatpush1.msra.mxu0 0.0
    %2106 = vmatprep.subr.mxu0 0.0
    %2107 = vmatpush1.msra.mxu0 0.0
    %2108 = vmatprep.subr.mxu0 0.0
    %2109 = vmatpush1.msra.mxu0 0.0
    %2110 = vmatprep.subr.mxu0 0.0
    %2111 = vmatpush1.msra.mxu0 0.0
    %2112 = vmatprep.subr.mxu0 0.0
    %2113 = vmatpush1.msra.mxu0 0.0
    %2114 = vmatprep.subr.mxu0 0.0
    %2115 = vmatpush1.msra.mxu0 0.0
    %2116 = vmatprep.subr.mxu0 0.0
    %2117 = vmatpush1.msra.mxu0 0.0
    %2118 = vmatprep.subr.mxu0 0.0
    %2119 = vmatpush1.msra.mxu0 0.0
    %2120 = vmatprep.subr.mxu0 0.0
    %2121 = vmatpush1.msra.mxu0 0.0
    %2122 = vmatprep.subr.mxu0 0.0
    %2123 = vmatpush1.msra.mxu0 0.0
    %2124 = vmatprep.subr.mxu0 0.0
    %2125 = vmatpush1.msra.mxu0 0.0
    %2126 = vmatprep.subr.mxu0 0.0
    %2127 = vmatpush1.msra.mxu0 0.0
    %2128 = vmatprep.subr.mxu0 0.0
    %2129 = vmatpush1.msra.mxu0 0.0
    %2130 = vmatprep.subr.mxu0 0.0
    %2131 = vmatpush1.msra.mxu0 0.0
    %2132 = vmatprep.subr.mxu0 0.0
    %2133 = vmatpush1.msra.mxu0 0.0
    %2134 = vmatprep.subr.mxu0 0.0
    %2135 = vmatpush1.msra.mxu0 0.0
    %2136 = vmatprep.subr.mxu0 0.0
    %2137 = vmatpush1.msra.mxu0 0.0
    %2138 = vmatprep.subr.mxu0 0.0
    %2139 = vmatpush1.msra.mxu0 0.0
    %2140 = vmatprep.subr.mxu0 0.0
    %2141 = vmatpush1.msra.mxu0 0.0
    %2142 = vmatprep.subr.mxu0 0.0
    %2143 = vmatpush1.msra.mxu0 0.0
    %2144 = vmatprep.subr.mxu0 0.0
    %2145 = vmatpush1.msra.mxu0 0.0
    %2146 = vmatprep.subr.mxu0 0.0
    %2147 = vmatpush1.msra.mxu0 0.0
    %2148 = vmatprep.mubr.f32.mxu0 0.0
    %2149 = vmatmul.mubr.f32.gmra.mrb[0].mxu0 %v2082
    %v2150 = vpop.f32.mrb[0].mxu0
    %v2151 = vadd.f32 0.0, %v2150
    %v2152 = vpop.f32.mrb[0].mxu0
    %2153 = vdwg.mxu0
    %v2154 = vsel %vm940, %v1027, 0
    %2156 = vmatprep.subr.mxu0 0.0
    %2157 = vmatpush1.msra.mxu0 %v334
    %2158 = vmatprep.subr.mxu0 0.0
    %2159 = vmatpush1.msra.mxu0 0.0
    %2160 = vmatprep.subr.mxu0 0.0
    %2161 = vmatpush1.msra.mxu0 0.0
    %2162 = vmatprep.subr.mxu0 0.0
    %2163 = vmatpush1.msra.mxu0 0.0
    %2164 = vmatprep.subr.mxu0 0.0
    %2165 = vmatpush1.msra.mxu0 0.0
    %2166 = vmatprep.subr.mxu0 0.0
    %2167 = vmatpush1.msra.mxu0 0.0
    %2168 = vmatprep.subr.mxu0 0.0
    %2169 = vmatpush1.msra.mxu0 0.0
    %2170 = vmatprep.subr.mxu0 0.0
    %2171 = vmatpush1.msra.mxu0 0.0
    %2172 = vmatprep.subr.mxu0 0.0
    %2173 = vmatpush1.msra.mxu0 0.0
    %2174 = vmatprep.subr.mxu0 0.0
    %2175 = vmatpush1.msra.mxu0 0.0
    %2176 = vmatprep.subr.mxu0 0.0
    %2177 = vmatpush1.msra.mxu0 0.0
    %2178 = vmatprep.subr.mxu0 0.0
    %2179 = vmatpush1.msra.mxu0 0.0
    %2180 = vmatprep.subr.mxu0 0.0
    %2181 = vmatpush1.msra.mxu0 0.0
    %2182 = vmatprep.subr.mxu0 0.0
    %2183 = vmatpush1.msra.mxu0 0.0
    %2184 = vmatprep.subr.mxu0 0.0
    %2185 = vmatpush1.msra.mxu0 0.0
    %2186 = vmatprep.subr.mxu0 0.0
    %2187 = vmatpush1.msra.mxu0 0.0
    %2188 = vmatprep.subr.mxu0 0.0
    %2189 = vmatpush1.msra.mxu0 0.0
    %2190 = vmatprep.subr.mxu0 0.0
    %2191 = vmatpush1.msra.mxu0 0.0
    %2192 = vmatprep.subr.mxu0 0.0
    %2193 = vmatpush1.msra.mxu0 0.0
    %2194 = vmatprep.subr.mxu0 0.0
    %2195 = vmatpush1.msra.mxu0 0.0
    %2196 = vmatprep.subr.mxu0 0.0
    %2197 = vmatpush1.msra.mxu0 0.0
    %2198 = vmatprep.subr.mxu0 0.0
    %2199 = vmatpush1.msra.mxu0 0.0
    %2200 = vmatprep.subr.mxu0 0.0
    %2201 = vmatpush1.msra.mxu0 0.0
    %2202 = vmatprep.subr.mxu0 0.0
    %2203 = vmatpush1.msra.mxu0 0.0
    %2204 = vmatprep.subr.mxu0 0.0
    %2205 = vmatpush1.msra.mxu0 0.0
    %2206 = vmatprep.subr.mxu0 0.0
    %2207 = vmatpush1.msra.mxu0 0.0
    %2208 = vmatprep.subr.mxu0 0.0
    %2209 = vmatpush1.msra.mxu0 0.0
    %2210 = vmatprep.subr.mxu0 0.0
    %2211 = vmatpush1.msra.mxu0 0.0
    %2212 = vmatprep.subr.mxu0 0.0
    %2213 = vmatpush1.msra.mxu0 0.0
    %2214 = vmatprep.subr.mxu0 0.0
    %2215 = vmatpush1.msra.mxu0 0.0
    %2216 = vmatprep.subr.mxu0 0.0
    %2217 = vmatpush1.msra.mxu0 0.0
    %2218 = vmatprep.subr.mxu0 0.0
    %2219 = vmatpush1.msra.mxu0 0.0
    %2220 = vmatprep.mubr.f32.mxu0 0.0
    %2221 = vmatmul.mubr.f32.gmra.mrb[0].mxu0 %v2154
    %v2222 = vpop.f32.mrb[0].mxu0
    %v2223 = vadd.f32 0.0, %v2222
    %v2224 = vpop.f32.mrb[0].mxu0
    %2225 = vdwg.mxu0
    %v2226 = vsel %vm940, %v1028, 0
    %2228 = vmatprep.subr.mxu0 0.0
    %2229 = vmatpush1.msra.mxu0 %v336
    %2230 = vmatprep.subr.mxu0 0.0
    %2231 = vmatpush1.msra.mxu0 0.0
    %2232 = vmatprep.subr.mxu0 0.0
    %2233 = vmatpush1.msra.mxu0 0.0
    %2234 = vmatprep.subr.mxu0 0.0
    %2235 = vmatpush1.msra.mxu0 0.0
    %2236 = vmatprep.subr.mxu0 0.0
    %2237 = vmatpush1.msra.mxu0 0.0
    %2238 = vmatprep.subr.mxu0 0.0
    %2239 = vmatpush1.msra.mxu0 0.0
    %2240 = vmatprep.subr.mxu0 0.0
    %2241 = vmatpush1.msra.mxu0 0.0
    %2242 = vmatprep.subr.mxu0 0.0
    %2243 = vmatpush1.msra.mxu0 0.0
    %2244 = vmatprep.subr.mxu0 0.0
    %2245 = vmatpush1.msra.mxu0 0.0
    %2246 = vmatprep.subr.mxu0 0.0
    %2247 = vmatpush1.msra.mxu0 0.0
    %2248 = vmatprep.subr.mxu0 0.0
    %2249 = vmatpush1.msra.mxu0 0.0
    %2250 = vmatprep.subr.mxu0 0.0
    %2251 = vmatpush1.msra.mxu0 0.0
    %2252 = vmatprep.subr.mxu0 0.0
    %2253 = vmatpush1.msra.mxu0 0.0
    %2254 = vmatprep.subr.mxu0 0.0
    %2255 = vmatpush1.msra.mxu0 0.0
    %2256 = vmatprep.subr.mxu0 0.0
    %2257 = vmatpush1.msra.mxu0 0.0
    %2258 = vmatprep.subr.mxu0 0.0
    %2259 = vmatpush1.msra.mxu0 0.0
    %2260 = vmatprep.subr.mxu0 0.0
    %2261 = vmatpush1.msra.mxu0 0.0
    %2262 = vmatprep.subr.mxu0 0.0
    %2263 = vmatpush1.msra.mxu0 0.0
    %2264 = vmatprep.subr.mxu0 0.0
    %2265 = vmatpush1.msra.mxu0 0.0
    %2266 = vmatprep.subr.mxu0 0.0
    %2267 = vmatpush1.msra.mxu0 0.0
    %2268 = vmatprep.subr.mxu0 0.0
    %2269 = vmatpush1.msra.mxu0 0.0
    %2270 = vmatprep.subr.mxu0 0.0
    %2271 = vmatpush1.msra.mxu0 0.0
    %2272 = vmatprep.subr.mxu0 0.0
    %2273 = vmatpush1.msra.mxu0 0.0
    %2274 = vmatprep.subr.mxu0 0.0
    %2275 = vmatpush1.msra.mxu0 0.0
    %2276 = vmatprep.subr.mxu0 0.0
    %2277 = vmatpush1.msra.mxu0 0.0
    %2278 = vmatprep.subr.mxu0 0.0
    %2279 = vmatpush1.msra.mxu0 0.0
    %2280 = vmatprep.subr.mxu0 0.0
    %2281 = vmatpush1.msra.mxu0 0.0
    %2282 = vmatprep.subr.mxu0 0.0
    %2283 = vmatpush1.msra.mxu0 0.0
    %2284 = vmatprep.subr.mxu0 0.0
    %2285 = vmatpush1.msra.mxu0 0.0
    %2286 = vmatprep.subr.mxu0 0.0
    %2287 = vmatpush1.msra.mxu0 0.0
    %2288 = vmatprep.subr.mxu0 0.0
    %2289 = vmatpush1.msra.mxu0 0.0
    %2290 = vmatprep.subr.mxu0 0.0
    %2291 = vmatpush1.msra.mxu0 0.0
    %2292 = vmatprep.mubr.f32.mxu0 0.0
    %2293 = vmatmul.mubr.f32.gmra.mrb[0].mxu0 %v2226
    %v2294 = vpop.f32.mrb[0].mxu0
    %v2295 = vadd.f32 0.0, %v2294
    %v2296 = vpop.f32.mrb[0].mxu0
    %2297 = vdwg.mxu0
    %2298 = vst.msk [vmem:[#allocation2] sm:$0xff] %vm339, %v1791
    %2299 = vst.msk [vmem:[#allocation2 + $0x8] sm:$0xff] %vm339, %v1863
    %2302 = vrot.lane.b32.xlu0 %v1935, 32
    %v2303 = vpop.permute.xlu0 %2302
    %2304 = vrot.lane.b32.xlu0 %v2007, 32
    %v2305 = vpop.permute.xlu0 %2304
    %vm2308 = vcmask 523520
    %2309 = vst.msk [vmem:[#allocation2] sm:$0xff] %vm2308, %v2303
    %2310 = vst.msk [vmem:[#allocation2 + $0x8] sm:$0xff] %vm2308, %v2305
    %2313 = vrot.lane.b32.xlu0 %v2079, 64
    %v2314 = vpop.permute.xlu0 %2313
    %2315 = vrot.lane.b32.xlu0 %v2151, 64
    %v2316 = vpop.permute.xlu0 %2315
    %vm2319 = vcmask 785920
    %2320 = vst.msk [vmem:[#allocation2] sm:$0xff] %vm2319, %v2314
    %2321 = vst.msk [vmem:[#allocation2 + $0x8] sm:$0xff] %vm2319, %v2316
    %2324 = vrot.lane.b32.xlu0 %v2223, 96
    %v2325 = vpop.permute.xlu0 %2324
    %2326 = vrot.lane.b32.xlu0 %v2295, 96
    %v2327 = vpop.permute.xlu0 %2326
    %vm2330 = vcmask 1048320
    %2331 = vst.msk [vmem:[#allocation2] sm:$0xff] %vm2330, %v2325
    %2332 = vst.msk [vmem:[#allocation2 + $0x8] sm:$0xff] %vm2330, %v2327
    %v2333 = vld [vmem:[#allocation2] sm:$0xff]
    %v2334 = vld [vmem:[#allocation2 + $0x8] sm:$0xff]
    %v2335 = vld [vmem:[%s2] sm:$0xff]
    %v2336 = vld [vmem:[%s2 + $0x8] sm:$0xff]
    %v2337 = vld [vmem:[%s2 + $0x10] sm:$0xff]
    %v2338 = vld [vmem:[%s2 + $0x18] sm:$0xff]
    %v2339 = vld [vmem:[%s2 + $0x20] sm:$0xff]
    %v2340 = vld [vmem:[%s2 + $0x28] sm:$0xff]
    %v2341 = vld [vmem:[%s2 + $0x30] sm:$0xff]
    %v2342 = vld [vmem:[%s2 + $0x38] sm:$0xff]
    %v2343 = vld [vmem:[%s2 + $0x40] sm:$0xff]
    %v2344 = vld [vmem:[%s2 + $0x48] sm:$0xff]
    %v2345 = vld [vmem:[%s2 + $0x50] sm:$0xff]
    %v2346 = vld [vmem:[%s2 + $0x58] sm:$0xff]
    %v2347 = vld [vmem:[%s2 + $0x60] sm:$0xff]
    %v2348 = vld [vmem:[%s2 + $0x68] sm:$0xff]
    %v2349 = vld [vmem:[%s2 + $0x70] sm:$0xff]
    %v2350 = vld [vmem:[%s2 + $0x78] sm:$0xff]
    %v2351 = vlaneseq
    %v2352 = vshrl.u32 %v2351, 7
    %v2353 = vsub.s32 3, %v2352
    %v2354 = vrot.slane %v57, %v2353
    %2355 = vmatprep.subr.mxu0 0.0
    %2356 = vmatpush1.msra.mxu0 %v2335
    %2357 = vmatprep.subr.mxu0 0.0
    %2358 = vmatpush1.msra.mxu0 %v2336
    %2359 = vmatprep.subr.mxu0 0.0
    %2360 = vmatpush1.msra.mxu0 %v2337
    %2361 = vmatprep.subr.mxu0 0.0
    %2362 = vmatpush1.msra.mxu0 %v2338
    %2363 = vmatprep.subr.mxu0 0.0
    %2364 = vmatpush1.msra.mxu0 %v2339
    %2365 = vmatprep.subr.mxu0 0.0
    %2366 = vmatpush1.msra.mxu0 %v2340
    %2367 = vmatprep.subr.mxu0 0.0
    %2368 = vmatpush1.msra.mxu0 %v2341
    %2369 = vmatprep.subr.mxu0 0.0
    %2370 = vmatpush1.msra.mxu0 %v2342
    %2371 = vmatprep.subr.mxu0 0.0
    %2372 = vmatpush1.msra.mxu0 %v2343
    %2373 = vmatprep.subr.mxu0 0.0
    %2374 = vmatpush1.msra.mxu0 %v2344
    %2375 = vmatprep.subr.mxu0 0.0
    %2376 = vmatpush1.msra.mxu0 %v2345
    %2377 = vmatprep.subr.mxu0 0.0
    %2378 = vmatpush1.msra.mxu0 %v2346
    %2379 = vmatprep.subr.mxu0 0.0
    %2380 = vmatpush1.msra.mxu0 %v2347
    %2381 = vmatprep.subr.mxu0 0.0
    %2382 = vmatpush1.msra.mxu0 %v2348
    %2383 = vmatprep.subr.mxu0 0.0
    %2384 = vmatpush1.msra.mxu0 %v2349
    %2385 = vmatprep.subr.mxu0 0.0
    %2386 = vmatpush1.msra.mxu0 %v2350
    %2387 = vmatprep.subr.mxu0 0.0
    %2388 = vmatpush1.msra.mxu0 0.0
    %2389 = vmatprep.subr.mxu0 0.0
    %2390 = vmatpush1.msra.mxu0 0.0
    %2391 = vmatprep.subr.mxu0 0.0
    %2392 = vmatpush1.msra.mxu0 0.0
    %2393 = vmatprep.subr.mxu0 0.0
    %2394 = vmatpush1.msra.mxu0 0.0
    %2395 = vmatprep.subr.mxu0 0.0
    %2396 = vmatpush1.msra.mxu0 0.0
    %2397 = vmatprep.subr.mxu0 0.0
    %2398 = vmatpush1.msra.mxu0 0.0
    %2399 = vmatprep.subr.mxu0 0.0
    %2400 = vmatpush1.msra.mxu0 0.0
    %2401 = vmatprep.subr.mxu0 0.0
    %2402 = vmatpush1.msra.mxu0 0.0
    %2403 = vmatprep.subr.mxu0 0.0
    %2404 = vmatpush1.msra.mxu0 0.0
    %2405 = vmatprep.subr.mxu0 0.0
    %2406 = vmatpush1.msra.mxu0 0.0
    %2407 = vmatprep.subr.mxu0 0.0
    %2408 = vmatpush1.msra.mxu0 0.0
    %2409 = vmatprep.subr.mxu0 0.0
    %2410 = vmatpush1.msra.mxu0 0.0
    %2411 = vmatprep.subr.mxu0 0.0
    %2412 = vmatpush1.msra.mxu0 0.0
    %2413 = vmatprep.subr.mxu0 0.0
    %2414 = vmatpush1.msra.mxu0 0.0
    %2415 = vmatprep.subr.mxu0 0.0
    %2416 = vmatpush1.msra.mxu0 0.0
    %2417 = vmatprep.subr.mxu0 0.0
    %2418 = vmatpush1.msra.mxu0 0.0
    %2419 = vmatprep.mubr.f32.mxu0 0.0
    %2420 = vmatmul.mubr.f32.gmra.mrb[0].mxu0 %v2333
    %v2421 = vpop.f32.mrb[0].mxu0
    %v2422 = vadd.f32 %v2354, %v2421
    %v2423 = vpop.f32.mrb[0].mxu0
    %2424 = vmatprep.mubr.f32.mxu0 0.0
    %2425 = vmatmul.mubr.f32.gmra.mrb[0].mxu0 %v2334
    %v2426 = vpop.f32.mrb[0].mxu0
    %v2427 = vadd.f32 %v2354, %v2426
    %v2428 = vpop.f32.mrb[0].mxu0
    %2429 = vdwg.mxu0
    %v2430 = vadd.f32 %v2422, %v55
    %v2431 = vadd.f32 %v2427, %v56
    %v2432 = vsel %vm104, %v2430, 0.0
    %2433 = vadd.xlane.f32.xlu0 %v2432
    %v2434 = vpop.xlane.xlu0 %2433
    %v2435 = vsel %vm104, %v2431, 0.0
    %2436 = vadd.xlane.f32.xlu0 %v2435
    %v2437 = vpop.xlane.xlu0 %2436
    %v2438 = vrcp.pop 116.0
    %v2439 = vmul.f32 %v2434, %v2438
    %v2440 = vmul.f32 %v2437, %v2438
    %v2441 = vsub.f32 %v2430, %v2439
    %v2442 = vsub.f32 %v2431, %v2440
    %v2443 = vmul.f32 %v2441, %v2441
    %v2444 = vmul.f32 %v2442, %v2442
    %v2445 = vsel %vm104, %v2443, 0.0
    %2446 = vadd.xlane.f32.xlu0 %v2445
    %v2447 = vpop.xlane.xlu0 %2446
    %v2448 = vsel %vm104, %v2444, 0.0
    %2449 = vadd.xlane.f32.xlu0 %v2448
    %v2450 = vpop.xlane.xlu0 %2449
    %v2451 = vmul.f32 %v2447, %v2438
    %v2452 = vmul.f32 %v2450, %v2438
    %v2453 = vadd.f32 %v2451, 1e-05
    %v2454 = vadd.f32 %v2452, 1e-05
    %v2455 = vrsqrt.pop %v2453
    %v2456 = vrsqrt.pop %v2454
    %v2457 = vmul.f32 %v2441, %v2455
    %v2458 = vmul.f32 %v2442, %v2456
    %v2459 = vlaneseq
    %v2460 = vshrl.u32 %v2459, 7
    %v2461 = vsub.s32 4, %v2460
    %v2462 = vrot.slane %v57, %v2461
    %v2463 = vmul.f32 %v2457, %v2462
    %v2464 = vmul.f32 %v2458, %v2462
    %v2465 = vlaneseq
    %v2466 = vshrl.u32 %v2465, 7
    %v2467 = vsub.s32 5, %v2466
    %v2468 = vrot.slane %v57, %v2467
    %v2469 = vadd.f32 %v2463, %v2468
    %v2470 = vadd.f32 %v2464, %v2468
    %v2471 = vld [vmem:[%s3] sm:$0xff]
    %v2472 = vld [vmem:[%s3 + $0x8] sm:$0xff]
    %v2473 = vld [vmem:[%s3 + $0x10] sm:$0xff]
    %v2474 = vld [vmem:[%s3 + $0x18] sm:$0xff]
    %v2475 = vld [vmem:[%s3 + $0x20] sm:$0xff]
    %v2476 = vld [vmem:[%s3 + $0x28] sm:$0xff]
    %v2477 = vld [vmem:[%s3 + $0x30] sm:$0xff]
    %v2478 = vld [vmem:[%s3 + $0x38] sm:$0xff]
    %v2479 = vld [vmem:[%s3 + $0x40] sm:$0xff]
    %v2480 = vld [vmem:[%s3 + $0x48] sm:$0xff]
    %v2481 = vld [vmem:[%s3 + $0x50] sm:$0xff]
    %v2482 = vld [vmem:[%s3 + $0x58] sm:$0xff]
    %v2483 = vld [vmem:[%s3 + $0x60] sm:$0xff]
    %v2484 = vld [vmem:[%s3 + $0x68] sm:$0xff]
    %v2485 = vld [vmem:[%s3 + $0x70] sm:$0xf]
    %v2486 = vlaneseq
    %v2487 = vshrl.u32 %v2486, 7
    %v2488 = vsub.s32 6, %v2487
    %v2489 = vrot.slane %v57, %v2488
    %v2491 = vsel %vm104, %v2469, 0
    %v2494 = vsel %vm104, %v2470, 0
    %v2497 = vsel %vm111, %v2485, 0
    %2499 = vmatprep.subr.mxu0 0.0
    %2500 = vmatpush1.msra.mxu0 %v2471
    %2501 = vmatprep.subr.mxu0 0.0
    %2502 = vmatpush1.msra.mxu0 %v2472
    %2503 = vmatprep.subr.mxu0 0.0
    %2504 = vmatpush1.msra.mxu0 %v2473
    %2505 = vmatprep.subr.mxu0 0.0
    %2506 = vmatpush1.msra.mxu0 %v2474
    %2507 = vmatprep.subr.mxu0 0.0
    %2508 = vmatpush1.msra.mxu0 %v2475
    %2509 = vmatprep.subr.mxu0 0.0
    %2510 = vmatpush1.msra.mxu0 %v2476
    %2511 = vmatprep.subr.mxu0 0.0
    %2512 = vmatpush1.msra.mxu0 %v2477
    %2513 = vmatprep.subr.mxu0 0.0
    %2514 = vmatpush1.msra.mxu0 %v2478
    %2515 = vmatprep.subr.mxu0 0.0
    %2516 = vmatpush1.msra.mxu0 %v2479
    %2517 = vmatprep.subr.mxu0 0.0
    %2518 = vmatpush1.msra.mxu0 %v2480
    %2519 = vmatprep.subr.mxu0 0.0
    %2520 = vmatpush1.msra.mxu0 %v2481
    %2521 = vmatprep.subr.mxu0 0.0
    %2522 = vmatpush1.msra.mxu0 %v2482
    %2523 = vmatprep.subr.mxu0 0.0
    %2524 = vmatpush1.msra.mxu0 %v2483
    %2525 = vmatprep.subr.mxu0 0.0
    %2526 = vmatpush1.msra.mxu0 %v2484
    %2527 = vmatprep.subr.mxu0 0.0
    %2528 = vmatpush1.msra.mxu0 %v2497
    %2529 = vmatprep.subr.mxu0 0.0
    %2530 = vmatpush1.msra.mxu0 0.0
    %2531 = vmatprep.subr.mxu0 0.0
    %2532 = vmatpush1.msra.mxu0 0.0
    %2533 = vmatprep.subr.mxu0 0.0
    %2534 = vmatpush1.msra.mxu0 0.0
    %2535 = vmatprep.subr.mxu0 0.0
    %2536 = vmatpush1.msra.mxu0 0.0
    %2537 = vmatprep.subr.mxu0 0.0
    %2538 = vmatpush1.msra.mxu0 0.0
    %2539 = vmatprep.subr.mxu0 0.0
    %2540 = vmatpush1.msra.mxu0 0.0
    %2541 = vmatprep.subr.mxu0 0.0
    %2542 = vmatpush1.msra.mxu0 0.0
    %2543 = vmatprep.subr.mxu0 0.0
    %2544 = vmatpush1.msra.mxu0 0.0
    %2545 = vmatprep.subr.mxu0 0.0
    %2546 = vmatpush1.msra.mxu0 0.0
    %2547 = vmatprep.subr.mxu0 0.0
    %2548 = vmatpush1.msra.mxu0 0.0
    %2549 = vmatprep.subr.mxu0 0.0
    %2550 = vmatpush1.msra.mxu0 0.0
    %2551 = vmatprep.subr.mxu0 0.0
    %2552 = vmatpush1.msra.mxu0 0.0
    %2553 = vmatprep.subr.mxu0 0.0
    %2554 = vmatpush1.msra.mxu0 0.0
    %2555 = vmatprep.subr.mxu0 0.0
    %2556 = vmatpush1.msra.mxu0 0.0
    %2557 = vmatprep.subr.mxu0 0.0
    %2558 = vmatpush1.msra.mxu0 0.0
    %2559 = vmatprep.subr.mxu0 0.0
    %2560 = vmatpush1.msra.mxu0 0.0
    %2561 = vmatprep.subr.mxu0 0.0
    %2562 = vmatpush1.msra.mxu0 0.0
    %2563 = vmatprep.mubr.f32.mxu0 0.0
    %2564 = vmatmul.mubr.f32.gmra.mrb[0].mxu0 %v2491
    %v2565 = vpop.f32.mrb[0].mxu0
    %v2566 = vadd.f32 %v2489, %v2565
    %v2567 = vpop.f32.mrb[0].mxu0
    %2568 = vmatprep.mubr.f32.mxu0 0.0
    %2569 = vmatmul.mubr.f32.gmra.mrb[0].mxu0 %v2494
    %v2570 = vpop.f32.mrb[0].mxu0
    %v2571 = vadd.f32 %v2489, %v2570
    %v2572 = vpop.f32.mrb[0].mxu0
    %2573 = vdwg.mxu0
    %v2574 = vmax.f32 %v2566, 0.0
    %v2575 = vmax.f32 %v2571, 0.0
    %v2576 = vld [vmem:[%s4] sm:$0xff]
    %v2577 = vld [vmem:[%s4 + $0x8] sm:$0xff]
    %v2578 = vld [vmem:[%s4 + $0x10] sm:$0xff]
    %v2579 = vld [vmem:[%s4 + $0x18] sm:$0xff]
    %v2580 = vld [vmem:[%s4 + $0x20] sm:$0xff]
    %v2581 = vld [vmem:[%s4 + $0x28] sm:$0xff]
    %v2582 = vld [vmem:[%s4 + $0x30] sm:$0xff]
    %v2583 = vld [vmem:[%s4 + $0x38] sm:$0xff]
    %v2584 = vld [vmem:[%s4 + $0x40] sm:$0xff]
    %v2585 = vld [vmem:[%s4 + $0x48] sm:$0xff]
    %v2586 = vld [vmem:[%s4 + $0x50] sm:$0xff]
    %v2587 = vld [vmem:[%s4 + $0x58] sm:$0xff]
    %v2588 = vld [vmem:[%s4 + $0x60] sm:$0xff]
    %v2589 = vld [vmem:[%s4 + $0x68] sm:$0xff]
    %v2590 = vld [vmem:[%s4 + $0x70] sm:$0xf]
    %v2591 = vlaneseq
    %v2592 = vshrl.u32 %v2591, 7
    %v2593 = vsub.s32 7, %v2592
    %v2594 = vrot.slane %v57, %v2593
    %v2596 = vsel %vm104, %v2574, 0
    %v2599 = vsel %vm104, %v2575, 0
    %v2602 = vsel %vm111, %v2590, 0
    %2604 = vmatprep.subr.mxu0 0.0
    %2605 = vmatpush1.msra.mxu0 %v2576
    %2606 = vmatprep.subr.mxu0 0.0
    %2607 = vmatpush1.msra.mxu0 %v2577
    %2608 = vmatprep.subr.mxu0 0.0
    %2609 = vmatpush1.msra.mxu0 %v2578
    %2610 = vmatprep.subr.mxu0 0.0
    %2611 = vmatpush1.msra.mxu0 %v2579
    %2612 = vmatprep.subr.mxu0 0.0
    %2613 = vmatpush1.msra.mxu0 %v2580
    %2614 = vmatprep.subr.mxu0 0.0
    %2615 = vmatpush1.msra.mxu0 %v2581
    %2616 = vmatprep.subr.mxu0 0.0
    %2617 = vmatpush1.msra.mxu0 %v2582
    %2618 = vmatprep.subr.mxu0 0.0
    %2619 = vmatpush1.msra.mxu0 %v2583
    %2620 = vmatprep.subr.mxu0 0.0
    %2621 = vmatpush1.msra.mxu0 %v2584
    %2622 = vmatprep.subr.mxu0 0.0
    %2623 = vmatpush1.msra.mxu0 %v2585
    %2624 = vmatprep.subr.mxu0 0.0
    %2625 = vmatpush1.msra.mxu0 %v2586
    %2626 = vmatprep.subr.mxu0 0.0
    %2627 = vmatpush1.msra.mxu0 %v2587
    %2628 = vmatprep.subr.mxu0 0.0
    %2629 = vmatpush1.msra.mxu0 %v2588
    %2630 = vmatprep.subr.mxu0 0.0
    %2631 = vmatpush1.msra.mxu0 %v2589
    %2632 = vmatprep.subr.mxu0 0.0
    %2633 = vmatpush1.msra.mxu0 %v2602
    %2634 = vmatprep.subr.mxu0 0.0
    %2635 = vmatpush1.msra.mxu0 0.0
    %2636 = vmatprep.subr.mxu0 0.0
    %2637 = vmatpush1.msra.mxu0 0.0
    %2638 = vmatprep.subr.mxu0 0.0
    %2639 = vmatpush1.msra.mxu0 0.0
    %2640 = vmatprep.subr.mxu0 0.0
    %2641 = vmatpush1.msra.mxu0 0.0
    %2642 = vmatprep.subr.mxu0 0.0
    %2643 = vmatpush1.msra.mxu0 0.0
    %2644 = vmatprep.subr.mxu0 0.0
    %2645 = vmatpush1.msra.mxu0 0.0
    %2646 = vmatprep.subr.mxu0 0.0
    %2647 = vmatpush1.msra.mxu0 0.0
    %2648 = vmatprep.subr.mxu0 0.0
    %2649 = vmatpush1.msra.mxu0 0.0
    %2650 = vmatprep.subr.mxu0 0.0
    %2651 = vmatpush1.msra.mxu0 0.0
    %2652 = vmatprep.subr.mxu0 0.0
    %2653 = vmatpush1.msra.mxu0 0.0
    %2654 = vmatprep.subr.mxu0 0.0
    %2655 = vmatpush1.msra.mxu0 0.0
    %2656 = vmatprep.subr.mxu0 0.0
    %2657 = vmatpush1.msra.mxu0 0.0
    %2658 = vmatprep.subr.mxu0 0.0
    %2659 = vmatpush1.msra.mxu0 0.0
    %2660 = vmatprep.subr.mxu0 0.0
    %2661 = vmatpush1.msra.mxu0 0.0
    %2662 = vmatprep.subr.mxu0 0.0
    %2663 = vmatpush1.msra.mxu0 0.0
    %2664 = vmatprep.subr.mxu0 0.0
    %2665 = vmatpush1.msra.mxu0 0.0
    %2666 = vmatprep.subr.mxu0 0.0
    %2667 = vmatpush1.msra.mxu0 0.0
    %2668 = vmatprep.mubr.f32.mxu0 0.0
    %2669 = vmatmul.mubr.f32.gmra.mrb[0].mxu0 %v2596
    %v2670 = vpop.f32.mrb[0].mxu0
    %v2671 = vadd.f32 %v2594, %v2670
    %v2672 = vpop.f32.mrb[0].mxu0
    %2673 = vmatprep.mubr.f32.mxu0 0.0
    %2674 = vmatmul.mubr.f32.gmra.mrb[0].mxu0 %v2599
    %v2675 = vpop.f32.mrb[0].mxu0
    %v2676 = vadd.f32 %v2594, %v2675
    %v2677 = vpop.f32.mrb[0].mxu0
    %2678 = vdwg.mxu0
    %v2679 = vadd.f32 %v2671, %v2469
    %v2680 = vadd.f32 %v2676, %v2470
    %v2681 = vsel %vm104, %v2679, 0.0
    %2682 = vadd.xlane.f32.xlu0 %v2681
    %v2683 = vpop.xlane.xlu0 %2682
    %v2684 = vsel %vm104, %v2680, 0.0
    %2685 = vadd.xlane.f32.xlu0 %v2684
    %v2686 = vpop.xlane.xlu0 %2685
    %v2687 = vmul.f32 %v2683, %v2438
    %v2688 = vmul.f32 %v2686, %v2438
    %v2689 = vsub.f32 %v2679, %v2687
    %v2690 = vsub.f32 %v2680, %v2688
    %v2691 = vmul.f32 %v2689, %v2689
    %v2692 = vmul.f32 %v2690, %v2690
    %v2693 = vsel %vm104, %v2691, 0.0
    %2694 = vadd.xlane.f32.xlu0 %v2693
    %v2695 = vpop.xlane.xlu0 %2694
    %v2696 = vsel %vm104, %v2692, 0.0
    %2697 = vadd.xlane.f32.xlu0 %v2696
    %v2698 = vpop.xlane.xlu0 %2697
    %v2699 = vmul.f32 %v2695, %v2438
    %v2700 = vmul.f32 %v2698, %v2438
    %v2701 = vadd.f32 %v2699, 1e-05
    %v2702 = vadd.f32 %v2700, 1e-05
    %v2703 = vrsqrt.pop %v2701
    %v2704 = vrsqrt.pop %v2702
    %v2705 = vmul.f32 %v2689, %v2703
    %v2706 = vmul.f32 %v2690, %v2704
    %v2707 = vlaneseq
    %v2708 = vshrl.u32 %v2707, 7
    %v2709 = vsub.s32 0, %v2708
    %v2710 = vrot.slane %v58, %v2709
    %v2711 = vmul.f32 %v2705, %v2710
    %v2712 = vmul.f32 %v2706, %v2710
    %v2713 = vlaneseq
    %v2714 = vshrl.u32 %v2713, 7
    %v2715 = vsub.s32 1, %v2714
    %v2716 = vrot.slane %v58, %v2715
    %v2717 = vadd.f32 %v2711, %v2716
    %v2718 = vadd.f32 %v2712, %v2716
    %2719 = vst.msk [vmem:[#allocation8] sm:$0xff] %vm104, %v2717
    %2720 = vst.msk [vmem:[#allocation8 + $0x8] sm:$0xff] %vm104, %v2718
    // Predicated region
    $region34: #{tpu_custom_call.1} parent=1 // pred_check
      _
    $region35: #{tpu_custom_call.1} parent=1 // pred_check_branch
      %2722 = sbr.rel (0) target = $region37
    $region36: #{tpu_custom_call.1} parent=1 // pred_region
      %s2724 = ssub.s32 256, 256
      %2725 = vsyncadd [#allocation5], %s2724
      %s2726 = sshll.u32 [#allocation8], 4
      %s2727 = int_to_ptr.vmem [resolvable:$true] %s2726
      %2732 = dma.vmem_to_hbm [thread:$0]  %s2727, 256, %s6, [#allocation5], 128, 128, 8
    $region37: #{tpu_custom_call.1} parent=1 // pred_fallthru
      _
    // Predicated region
    $region38: #{tpu_custom_call.1} parent=1 // pred_check
      _
    $region39: #{tpu_custom_call.1} parent=1 // pred_check_branch
      %2734 = sbr.rel (0) target = $region41
    $region40: #{tpu_custom_call.1} parent=1 // pred_region
      %s2736 = ssub.s32 64, 64
      %2737 = vsyncadd [#allocation10], %s2736
      %s2738 = sshll.u32 [#allocation9], 4
      %s2739 = int_to_ptr.vmem [resolvable:$true] %s2738
      %2744 = dma.vmem_to_hbm [thread:$0]  %s2739, 64, %s7, [#allocation10], 32, 32, 2
    $region41: #{tpu_custom_call.1} parent=1 // pred_fallthru
      _
    // Predicated region
    $region42: #{tpu_custom_call.1} parent=1 // pred_check
      _
    $region43: #{tpu_custom_call.1} parent=1 // pred_check_branch
      %2746 = sbr.rel (0) target = $region45
    $region44: #{tpu_custom_call.1} parent=1 // pred_region
      %2747 = dma.done [#allocation5], 256
    $region45: #{tpu_custom_call.1} parent=1 // pred_fallthru
      _
    // Predicated region
    $region46: #{tpu_custom_call.1} parent=1 // pred_check
      _
    $region47: #{tpu_custom_call.1} parent=1 // pred_check_branch
      %2749 = sbr.rel (0) target = $region49
    $region48: #{tpu_custom_call.1} parent=1 // pred_region
      %2750 = dma.done [#allocation10], 64
    $region49: #{tpu_custom_call.1} parent=1 // pred_fallthru
      _
    %2751 = vsyncpa [#allocation4], 1
    %2752 = vsyncpa [#allocation7], 1
    %2753 = vsyncpa [#allocation5], 1
    %2754 = vsyncpa [#allocation10], 1

</llo_original>
